<compile_context>
chip_gen: v7x
topology: tpu7x:2x2x1
jax: 0.10.0
libtpu: 0.0.40
codegen_flags: <defaults>
</compile_context>

<pallas_src>
import jax
import jax.numpy as jnp
from jax.experimental import pallas as pl
from jax.experimental.pallas import tpu as pltpu

NUM_CLASSES = 10
FEAT = 1024        # googlenet fc.in_features
FC_OUT = 300       # replaced pretrained.fc output
F1_OUT = 50
M1_OUT = 200
COUNTS = 6


def _rup(n, m):
    return ((n + m - 1) // m) * m


def _classifier_kernel(img_ref, counts_ref,
                       w_bb_ref, b_bb_ref,
                       w_fc_ref, b_fc_ref,
                       w_f1_ref, b_f1_ref,
                       w_m1_ref, b_m1_ref,
                       w_f2x_ref, w_f2c_ref, b_f2_ref,
                       out_ref):
    f32 = jnp.float32

    # Backbone stand-in: global-avg-pool + 3->1024 linear, folded into a single
    # bf16 MXU matmul (w_bb rows repeated H*W times and scaled 1/(H*W) in the
    # wrapper); f32 accumulation.
    feat = jnp.dot(img_ref[...], w_bb_ref[...], preferred_element_type=f32)
    feat = jnp.maximum(feat + b_bb_ref[...], 0.0)                         # (TB, 1024) f32

    # pretrained.fc : 1024 -> 300 (lane-padded to 384), then F.relu(...).
    # bf16 inputs (relu output is non-negative, stub precision is fine),
    # f32 accumulation.
    x = jnp.dot(feat.astype(jnp.bfloat16), w_fc_ref[...],
                preferred_element_type=f32) + b_fc_ref[...]
    x = jnp.maximum(x, 0.0)                                               # (TB, 384)

    # dropout1: inference -> identity
    # f1 : 300 -> 50 (padded 384 -> 128), relu.  Zero pads stay zero through relu.
    x = jnp.maximum(
        jnp.dot(x, w_f1_ref[...], preferred_element_type=f32) + b_f1_ref[...],
        0.0)                                                              # (TB, 128)

    # m1 : 6 -> 200 (padded to 256), relu.  K=6 would be zero-padded to the MXU's
    # 128/256 contraction dim, so do it on the VPU as six broadcast FMAs instead.
    c = b_m1_ref[...] + counts_ref[:, 0:1] * w_m1_ref[0:1, :]
    for k in range(1, counts_ref.shape[1]):
        c = c + counts_ref[:, k:k + 1] * w_m1_ref[k:k + 1, :]
    c = jnp.maximum(c, 0.0)                                               # (TB, 256)

    # torch.cat([x, counts], dim=1) + dropout2 (identity) + f2 : the concat is
    # replaced by two split-weight matmuls, so no unaligned (offset-50) scratch.
    logits = (jnp.dot(x, w_f2x_ref[...], preferred_element_type=f32)
              + jnp.dot(c, w_f2c_ref[...], preferred_element_type=f32)
              + b_f2_ref[...])                                            # (TB, NC)

    # softmax(dim=1), all elementwise math kept in f32.
    m = jnp.max(logits, axis=-1, keepdims=True)
    e = jnp.exp(logits - m)
    out_ref[...] = (e / jnp.sum(e, axis=-1, keepdims=True)).astype(out_ref.dtype)


def classifier_forward(x_nchw, counts, params):
    """x_nchw: (B, C, H, W) image; counts: (B, 6) numeric."""
    B, C, H, W = x_nchw.shape
    HW = H * W
    CHW = C * HW
    num_classes = params["w_f2"].shape[1]

    # bf16 image halves HBM traffic / VMEM footprint of the dominant read;
    # accumulation stays f32 via preferred_element_type in the kernel.
    img = x_nchw.reshape(B, CHW).astype(jnp.bfloat16)
    # `counts.to(x.dtype)` in the original; kept f32 so integer counts lose no precision.
    counts = counts.astype(jnp.float32)

    # ---- one-time weight preprocessing (would be precomputed in production) ----
    # Fold the global-average-pool into the backbone projection:
    #   mean_s(img[b, c, s]) @ w_bb  ==  img_flat[b, c*HW + s] @ (repeat(w_bb, HW) / HW)
    w_bb = (jnp.repeat(params["w_bb"], HW, axis=0) * (1.0 / HW)).astype(jnp.bfloat16)
    b_bb = params["b_bb"].astype(jnp.float32)

    def pad2(a, rows, cols):
        return jnp.pad(a, ((0, rows - a.shape[0]), (0, cols - a.shape[1])))

    FC_P = _rup(FC_OUT, 128)   # 300 -> 384
    F1_P = _rup(F1_OUT, 128)   # 50  -> 128
    M1_P = _rup(M1_OUT, 128)   # 200 -> 256

    w_fc = pad2(params["w_fc"], FEAT, FC_P).astype(jnp.bfloat16)
    b_fc = pad2(params["b_fc"], 1, FC_P)
    w_f1 = pad2(params["w_f1"], FC_P, F1_P)
    b_f1 = pad2(params["b_f1"], 1, F1_P)
    w_m1 = pad2(params["w_m1"], COUNTS, M1_P)
    b_m1 = pad2(params["b_m1"], 1, M1_P)
    # Split f2 so the kernel never materialises the unaligned concat.
    w_f2x = pad2(params["w_f2"][:F1_OUT], F1_P, num_classes)
    w_f2c = pad2(params["w_f2"][F1_OUT:], M1_P, num_classes)
    b_f2 = params["b_f2"]

    # Batch tile: full batch if small, else 128 (multiple of 16 for bf16 sublane
    # packing); sized so double-buffered image tiles + resident weights stay well
    # inside v7x's 64 MiB physical VMEM.
    TB = B if B <= 128 else 128
    grid = (pl.cdiv(B, TB),)

    def resident(a):
        # Constant block index -> DMA'd once, stays VMEM-resident across the grid.
        return pl.BlockSpec(a.shape, lambda b: (0, 0))

    args = (img, counts, w_bb, b_bb, w_fc, b_fc, w_f1, b_f1,
            w_m1, b_m1, w_f2x, w_f2c, b_f2)

    in_specs = [
        pl.BlockSpec((TB, CHW), lambda b: (b, 0)),      # image: batch-tiled, pipelined
        pl.BlockSpec((TB, COUNTS), lambda b: (b, 0)),   # counts: batch-tiled
    ] + [resident(a) for a in args[2:]]

    grid_spec = pltpu.PrefetchScalarGridSpec(
        num_scalar_prefetch=0,
        grid=grid,
        in_specs=in_specs,
        out_specs=pl.BlockSpec((TB, num_classes), lambda b: (b, 0)),
    )

    return pl.pallas_call(
        _classifier_kernel,
        out_shape=jax.ShapeDtypeStruct((B, num_classes), jnp.float32),
        grid_spec=grid_spec,
        compiler_params=pltpu.CompilerParams(
            dimension_semantics=("parallel",),        # batch rows independent -> both v7x TCs
            vmem_limit_bytes=48 * 1024 * 1024,        # explicit; within v7x's 64 MiB VMEM
        ),
    )(*args)


def init_params(key, num_classes=NUM_CLASSES, in_ch=3):
    """Deterministic PyTorch-style (U[-1/sqrt(fan_in), 1/sqrt(fan_in)]) init."""
    ks = jax.random.split(key, 10)

    def lin(kw, kb, fan_in, fan_out):
        bound = 1.0 / float(fan_in) ** 0.5
        w = jax.random.uniform(kw, (fan_in, fan_out), jnp.float32, -bound, bound)
        b = jax.random.uniform(kb, (1, fan_out), jnp.float32, -bound, bound)
        return w, b

    w_bb, b_bb = lin(ks[0], ks[1], in_ch, FEAT)             # backbone stand-in proj
    w_fc, b_fc = lin(ks[2], ks[3], FEAT, FC_OUT)            # pretrained.fc (replaced)
    w_f1, b_f1 = lin(ks[4], ks[5], FC_OUT, F1_OUT)          # self.f1
    w_m1, b_m1 = lin(ks[6], ks[7], COUNTS, M1_OUT)          # self.m1
    w_f2, b_f2 = lin(ks[8], ks[9], F1_OUT + M1_OUT, num_classes)  # self.f2
    return dict(w_bb=w_bb, b_bb=b_bb, w_fc=w_fc, b_fc=b_fc,
                w_f1=w_f1, b_f1=b_f1, w_m1=w_m1, b_m1=b_m1,
                w_f2=w_f2, b_f2=b_f2)


if __name__ == "__main__":
    key = jax.random.PRNGKey(0)
    kx, kc, kp = jax.random.split(key, 3)

    x = jax.random.normal(kx, (2, 3, 16, 16), jnp.float32)            # NCHW image
    counts = jax.random.randint(kc, (2, 6), 0, 10).astype(jnp.int32)  # integer counts
    params = init_params(kp)

    out = classifier_forward(x, counts, params)
    out = jax.block_until_ready(out)

    assert out.shape == (2, NUM_CLASSES), out.shape
    assert bool(jnp.all(jnp.isfinite(out)))
    assert bool(jnp.allclose(jnp.sum(out, axis=1), 1.0, atol=1e-5))
    print("KERNEL_OK")
</pallas_src>

<mosaic_0001>
module attributes {stable_mosaic.version = 11 : i64} {
  func.func @_classifier_kernel(%arg0: i32, %arg1: memref<2x768xbf16, #tpu.memory_space<vmem>>, %arg2: memref<2x6xf32, #tpu.memory_space<vmem>>, %arg3: memref<768x1024xbf16, #tpu.memory_space<vmem>>, %arg4: memref<1x1024xf32, #tpu.memory_space<vmem>>, %arg5: memref<1024x384xbf16, #tpu.memory_space<vmem>>, %arg6: memref<1x384xf32, #tpu.memory_space<vmem>>, %arg7: memref<384x128xf32, #tpu.memory_space<vmem>>, %arg8: memref<1x128xf32, #tpu.memory_space<vmem>>, %arg9: memref<6x256xf32, #tpu.memory_space<vmem>>, %arg10: memref<1x256xf32, #tpu.memory_space<vmem>>, %arg11: memref<128x10xf32, #tpu.memory_space<vmem>>, %arg12: memref<256x10xf32, #tpu.memory_space<vmem>>, %arg13: memref<1x10xf32, #tpu.memory_space<vmem>>, %arg14: memref<2x10xf32, #tpu.memory_space<vmem>>) attributes {dimension_semantics = [#tpu.dimension_semantics<parallel>], iteration_bounds = array<i64: 1>, scalar_prefetch = 0 : i64, scratch_operands = 0 : i64, tpu.core_type = #tpu.core_type<tc>, window_params = [{transform_indices = @transform_0, window_bounds = array<i64: 2, 768>}, {transform_indices = @transform_1, window_bounds = array<i64: 2, 6>}, {pipeline_mode = #tpu.pipeline_mode<synchronous>, transform_indices = @transform_2, window_bounds = array<i64: 768, 1024>}, {pipeline_mode = #tpu.pipeline_mode<synchronous>, transform_indices = @transform_3, window_bounds = array<i64: 1, 1024>}, {pipeline_mode = #tpu.pipeline_mode<synchronous>, transform_indices = @transform_4, window_bounds = array<i64: 1024, 384>}, {pipeline_mode = #tpu.pipeline_mode<synchronous>, transform_indices = @transform_5, window_bounds = array<i64: 1, 384>}, {pipeline_mode = #tpu.pipeline_mode<synchronous>, transform_indices = @transform_6, window_bounds = array<i64: 384, 128>}, {pipeline_mode = #tpu.pipeline_mode<synchronous>, transform_indices = @transform_7, window_bounds = array<i64: 1, 128>}, {pipeline_mode = #tpu.pipeline_mode<synchronous>, transform_indices = @transform_8, window_bounds = array<i64: 6, 256>}, {pipeline_mode = #tpu.pipeline_mode<synchronous>, transform_indices = @transform_9, window_bounds = array<i64: 1, 256>}, {pipeline_mode = #tpu.pipeline_mode<synchronous>, transform_indices = @transform_10, window_bounds = array<i64: 128, 10>}, {pipeline_mode = #tpu.pipeline_mode<synchronous>, transform_indices = @transform_11, window_bounds = array<i64: 256, 10>}, {pipeline_mode = #tpu.pipeline_mode<synchronous>, transform_indices = @transform_12, window_bounds = array<i64: 1, 10>}, {transform_indices = @transform_13, window_bounds = array<i64: 2, 10>}]} {
    %c0 = arith.constant 0 : index
    %c0_0 = arith.constant 0 : index
    %0 = vector.load %arg1[%c0, %c0_0] : memref<2x768xbf16, #tpu.memory_space<vmem>>, vector<2x768xbf16>
    %c0_1 = arith.constant 0 : index
    %c0_2 = arith.constant 0 : index
    %1 = vector.load %arg3[%c0_1, %c0_2] : memref<768x1024xbf16, #tpu.memory_space<vmem>>, vector<768x1024xbf16>
    %cst = arith.constant dense<0.000000e+00> : vector<2x1024xf32>
    %2 = tpu.matmul %0, %1, %cst {dimension_numbers = #tpu.dot_dimension_numbers<[1], [0], [0], [1], [0, 0, 1, 1], [], []>} : vector<2x768xbf16>, vector<768x1024xbf16>, vector<2x1024xf32> -> vector<2x1024xf32>
    %c0_3 = arith.constant 0 : index
    %c0_4 = arith.constant 0 : index
    %3 = vector.load %arg4[%c0_3, %c0_4] : memref<1x1024xf32, #tpu.memory_space<vmem>>, vector<1x1024xf32>
    %4 = vector.broadcast %3 : vector<1x1024xf32> to vector<2x1024xf32>
    %5 = arith.addf %2, %4 : vector<2x1024xf32>
    %cst_5 = arith.constant 0.000000e+00 : f32
    %6 = vector.broadcast %cst_5 : f32 to vector<2x1024xf32>
    %7 = arith.maximumf %5, %6 : vector<2x1024xf32>
    %8 = arith.truncf %7 : vector<2x1024xf32> to vector<2x1024xbf16>
    %c0_6 = arith.constant 0 : index
    %c0_7 = arith.constant 0 : index
    %9 = vector.load %arg5[%c0_6, %c0_7] : memref<1024x384xbf16, #tpu.memory_space<vmem>>, vector<1024x384xbf16>
    %cst_8 = arith.constant dense<0.000000e+00> : vector<2x384xf32>
    %10 = tpu.matmul %8, %9, %cst_8 {dimension_numbers = #tpu.dot_dimension_numbers<[1], [0], [0], [1], [0, 0, 1, 1], [], []>} : vector<2x1024xbf16>, vector<1024x384xbf16>, vector<2x384xf32> -> vector<2x384xf32>
    %c0_9 = arith.constant 0 : index
    %c0_10 = arith.constant 0 : index
    %11 = vector.load %arg6[%c0_9, %c0_10] : memref<1x384xf32, #tpu.memory_space<vmem>>, vector<1x384xf32>
    %12 = vector.broadcast %11 : vector<1x384xf32> to vector<2x384xf32>
    %13 = arith.addf %10, %12 : vector<2x384xf32>
    %cst_11 = arith.constant 0.000000e+00 : f32
    %14 = vector.broadcast %cst_11 : f32 to vector<2x384xf32>
    %15 = arith.maximumf %13, %14 : vector<2x384xf32>
    %c0_12 = arith.constant 0 : index
    %c0_13 = arith.constant 0 : index
    %16 = vector.load %arg7[%c0_12, %c0_13] : memref<384x128xf32, #tpu.memory_space<vmem>>, vector<384x128xf32>
    %cst_14 = arith.constant dense<0.000000e+00> : vector<2x128xf32>
    %17 = tpu.matmul %15, %16, %cst_14 {dimension_numbers = #tpu.dot_dimension_numbers<[1], [0], [0], [1], [0, 0, 1, 1], [], []>} : vector<2x384xf32>, vector<384x128xf32>, vector<2x128xf32> -> vector<2x128xf32>
    %c0_15 = arith.constant 0 : index
    %c0_16 = arith.constant 0 : index
    %18 = vector.load %arg8[%c0_15, %c0_16] : memref<1x128xf32, #tpu.memory_space<vmem>>, vector<1x128xf32>
    %19 = vector.broadcast %18 : vector<1x128xf32> to vector<2x128xf32>
    %20 = arith.addf %17, %19 : vector<2x128xf32>
    %cst_17 = arith.constant 0.000000e+00 : f32
    %21 = vector.broadcast %cst_17 : f32 to vector<2x128xf32>
    %22 = arith.maximumf %20, %21 : vector<2x128xf32>
    %c0_18 = arith.constant 0 : index
    %c0_19 = arith.constant 0 : index
    %23 = vector.load %arg10[%c0_18, %c0_19] : memref<1x256xf32, #tpu.memory_space<vmem>>, vector<1x256xf32>
    %c0_20 = arith.constant 0 : index
    %c0_21 = arith.constant 0 : index
    %24 = vector.load %arg2[%c0_20, %c0_21] : memref<2x6xf32, #tpu.memory_space<vmem>>, vector<2x1xf32>
    %c0_22 = arith.constant 0 : index
    %c0_23 = arith.constant 0 : index
    %25 = vector.load %arg9[%c0_22, %c0_23] : memref<6x256xf32, #tpu.memory_space<vmem>>, vector<1x256xf32>
    %26 = vector.broadcast %24 : vector<2x1xf32> to vector<2x256xf32>
    %27 = vector.broadcast %25 : vector<1x256xf32> to vector<2x256xf32>
    %28 = arith.mulf %26, %27 : vector<2x256xf32>
    %29 = vector.broadcast %23 : vector<1x256xf32> to vector<2x256xf32>
    %30 = arith.addf %29, %28 : vector<2x256xf32>
    %c0_24 = arith.constant 0 : index
    %c1 = arith.constant 1 : index
    %31 = vector.load %arg2[%c0_24, %c1] : memref<2x6xf32, #tpu.memory_space<vmem>>, vector<2x1xf32>
    %c1_25 = arith.constant 1 : index
    %c0_26 = arith.constant 0 : index
    %32 = vector.load %arg9[%c1_25, %c0_26] : memref<6x256xf32, #tpu.memory_space<vmem>>, vector<1x256xf32>
    %33 = vector.broadcast %31 : vector<2x1xf32> to vector<2x256xf32>
    %34 = vector.broadcast %32 : vector<1x256xf32> to vector<2x256xf32>
    %35 = arith.mulf %33, %34 : vector<2x256xf32>
    %36 = arith.addf %30, %35 : vector<2x256xf32>
    %c0_27 = arith.constant 0 : index
    %c2 = arith.constant 2 : index
    %37 = vector.load %arg2[%c0_27, %c2] : memref<2x6xf32, #tpu.memory_space<vmem>>, vector<2x1xf32>
    %c2_28 = arith.constant 2 : index
    %c0_29 = arith.constant 0 : index
    %38 = vector.load %arg9[%c2_28, %c0_29] : memref<6x256xf32, #tpu.memory_space<vmem>>, vector<1x256xf32>
    %39 = vector.broadcast %37 : vector<2x1xf32> to vector<2x256xf32>
    %40 = vector.broadcast %38 : vector<1x256xf32> to vector<2x256xf32>
    %41 = arith.mulf %39, %40 : vector<2x256xf32>
    %42 = arith.addf %36, %41 : vector<2x256xf32>
    %c0_30 = arith.constant 0 : index
    %c3 = arith.constant 3 : index
    %43 = vector.load %arg2[%c0_30, %c3] : memref<2x6xf32, #tpu.memory_space<vmem>>, vector<2x1xf32>
    %c3_31 = arith.constant 3 : index
    %c0_32 = arith.constant 0 : index
    %44 = vector.load %arg9[%c3_31, %c0_32] : memref<6x256xf32, #tpu.memory_space<vmem>>, vector<1x256xf32>
    %45 = vector.broadcast %43 : vector<2x1xf32> to vector<2x256xf32>
    %46 = vector.broadcast %44 : vector<1x256xf32> to vector<2x256xf32>
    %47 = arith.mulf %45, %46 : vector<2x256xf32>
    %48 = arith.addf %42, %47 : vector<2x256xf32>
    %c0_33 = arith.constant 0 : index
    %c4 = arith.constant 4 : index
    %49 = vector.load %arg2[%c0_33, %c4] : memref<2x6xf32, #tpu.memory_space<vmem>>, vector<2x1xf32>
    %c4_34 = arith.constant 4 : index
    %c0_35 = arith.constant 0 : index
    %50 = vector.load %arg9[%c4_34, %c0_35] : memref<6x256xf32, #tpu.memory_space<vmem>>, vector<1x256xf32>
    %51 = vector.broadcast %49 : vector<2x1xf32> to vector<2x256xf32>
    %52 = vector.broadcast %50 : vector<1x256xf32> to vector<2x256xf32>
    %53 = arith.mulf %51, %52 : vector<2x256xf32>
    %54 = arith.addf %48, %53 : vector<2x256xf32>
    %c0_36 = arith.constant 0 : index
    %c5 = arith.constant 5 : index
    %55 = vector.load %arg2[%c0_36, %c5] : memref<2x6xf32, #tpu.memory_space<vmem>>, vector<2x1xf32>
    %c5_37 = arith.constant 5 : index
    %c0_38 = arith.constant 0 : index
    %56 = vector.load %arg9[%c5_37, %c0_38] : memref<6x256xf32, #tpu.memory_space<vmem>>, vector<1x256xf32>
    %57 = vector.broadcast %55 : vector<2x1xf32> to vector<2x256xf32>
    %58 = vector.broadcast %56 : vector<1x256xf32> to vector<2x256xf32>
    %59 = arith.mulf %57, %58 : vector<2x256xf32>
    %60 = arith.addf %54, %59 : vector<2x256xf32>
    %cst_39 = arith.constant 0.000000e+00 : f32
    %61 = vector.broadcast %cst_39 : f32 to vector<2x256xf32>
    %62 = arith.maximumf %60, %61 : vector<2x256xf32>
    %c0_40 = arith.constant 0 : index
    %c0_41 = arith.constant 0 : index
    %63 = vector.load %arg11[%c0_40, %c0_41] : memref<128x10xf32, #tpu.memory_space<vmem>>, vector<128x10xf32>
    %cst_42 = arith.constant dense<0.000000e+00> : vector<2x10xf32>
    %64 = tpu.matmul %22, %63, %cst_42 {dimension_numbers = #tpu.dot_dimension_numbers<[1], [0], [0], [1], [0, 0, 1, 1], [], []>} : vector<2x128xf32>, vector<128x10xf32>, vector<2x10xf32> -> vector<2x10xf32>
    %c0_43 = arith.constant 0 : index
    %c0_44 = arith.constant 0 : index
    %65 = vector.load %arg12[%c0_43, %c0_44] : memref<256x10xf32, #tpu.memory_space<vmem>>, vector<256x10xf32>
    %cst_45 = arith.constant dense<0.000000e+00> : vector<2x10xf32>
    %66 = tpu.matmul %62, %65, %cst_45 {dimension_numbers = #tpu.dot_dimension_numbers<[1], [0], [0], [1], [0, 0, 1, 1], [], []>} : vector<2x256xf32>, vector<256x10xf32>, vector<2x10xf32> -> vector<2x10xf32>
    %67 = arith.addf %64, %66 : vector<2x10xf32>
    %c0_46 = arith.constant 0 : index
    %c0_47 = arith.constant 0 : index
    %68 = vector.load %arg13[%c0_46, %c0_47] : memref<1x10xf32, #tpu.memory_space<vmem>>, vector<1x10xf32>
    %69 = vector.broadcast %68 : vector<1x10xf32> to vector<2x10xf32>
    %70 = arith.addf %67, %69 : vector<2x10xf32>
    %cst_48 = arith.constant dense<0xFF800000> : vector<2xf32>
    %71 = vector.multi_reduction <maximumf>, %70, %cst_48 [1] : vector<2x10xf32> to vector<2xf32>
    %72 = vector.shape_cast %71 : vector<2xf32> to vector<2x1xf32>
    %73 = vector.broadcast %72 : vector<2x1xf32> to vector<2x10xf32>
    %74 = arith.subf %70, %73 : vector<2x10xf32>
    %75 = math.exp %74 : vector<2x10xf32>
    %cst_49 = arith.constant dense<0.000000e+00> : vector<2xf32>
    %76 = vector.multi_reduction <add>, %75, %cst_49 [1] : vector<2x10xf32> to vector<2xf32>
    %77 = vector.shape_cast %76 : vector<2xf32> to vector<2x1xf32>
    %78 = vector.broadcast %77 : vector<2x1xf32> to vector<2x10xf32>
    %79 = arith.divf %75, %78 : vector<2x10xf32>
    %c0_50 = arith.constant 0 : index
    %c0_51 = arith.constant 0 : index
    %80 = vector.load %arg14[%c0_50, %c0_51] : memref<2x10xf32, #tpu.memory_space<vmem>>, vector<2x10xf32>
    tpu.vector_store %arg14[%c0_50, %c0_51], %79 {strides = array<i32>} : memref<2x10xf32, #tpu.memory_space<vmem>>, vector<2x10xf32>,
    return
  }
  func.func @transform_0(%arg0: i32) -> (i32, i32) {
    %c0_i32 = arith.constant 0 : i32
    %c0_i32_0 = arith.constant 0 : i32
    return %arg0, %c0_i32 : i32, i32
  }
  func.func @transform_1(%arg0: i32) -> (i32, i32) {
    %c0_i32 = arith.constant 0 : i32
    %c0_i32_0 = arith.constant 0 : i32
    return %arg0, %c0_i32 : i32, i32
  }
  func.func @transform_2(%arg0: i32) -> (i32, i32) {
    %c0_i32 = arith.constant 0 : i32
    %c0_i32_0 = arith.constant 0 : i32
    %c0_i32_1 = arith.constant 0 : i32
    return %c0_i32, %c0_i32_0 : i32, i32
  }
  func.func @transform_3(%arg0: i32) -> (i32, i32) {
    %c0_i32 = arith.constant 0 : i32
    %c0_i32_0 = arith.constant 0 : i32
    %c0_i32_1 = arith.constant 0 : i32
    return %c0_i32, %c0_i32_0 : i32, i32
  }
  func.func @transform_4(%arg0: i32) -> (i32, i32) {
    %c0_i32 = arith.constant 0 : i32
    %c0_i32_0 = arith.constant 0 : i32
    %c0_i32_1 = arith.constant 0 : i32
    return %c0_i32, %c0_i32_0 : i32, i32
  }
  func.func @transform_5(%arg0: i32) -> (i32, i32) {
    %c0_i32 = arith.constant 0 : i32
    %c0_i32_0 = arith.constant 0 : i32
    %c0_i32_1 = arith.constant 0 : i32
    return %c0_i32, %c0_i32_0 : i32, i32
  }
  func.func @transform_6(%arg0: i32) -> (i32, i32) {
    %c0_i32 = arith.constant 0 : i32
    %c0_i32_0 = arith.constant 0 : i32
    %c0_i32_1 = arith.constant 0 : i32
    return %c0_i32, %c0_i32_0 : i32, i32
  }
  func.func @transform_7(%arg0: i32) -> (i32, i32) {
    %c0_i32 = arith.constant 0 : i32
    %c0_i32_0 = arith.constant 0 : i32
    %c0_i32_1 = arith.constant 0 : i32
    return %c0_i32, %c0_i32_0 : i32, i32
  }
  func.func @transform_8(%arg0: i32) -> (i32, i32) {
    %c0_i32 = arith.constant 0 : i32
    %c0_i32_0 = arith.constant 0 : i32
    %c0_i32_1 = arith.constant 0 : i32
    return %c0_i32, %c0_i32_0 : i32, i32
  }
  func.func @transform_9(%arg0: i32) -> (i32, i32) {
    %c0_i32 = arith.constant 0 : i32
    %c0_i32_0 = arith.constant 0 : i32
    %c0_i32_1 = arith.constant 0 : i32
    return %c0_i32, %c0_i32_0 : i32, i32
  }
  func.func @transform_10(%arg0: i32) -> (i32, i32) {
    %c0_i32 = arith.constant 0 : i32
    %c0_i32_0 = arith.constant 0 : i32
    %c0_i32_1 = arith.constant 0 : i32
    return %c0_i32, %c0_i32_0 : i32, i32
  }
  func.func @transform_11(%arg0: i32) -> (i32, i32) {
    %c0_i32 = arith.constant 0 : i32
    %c0_i32_0 = arith.constant 0 : i32
    %c0_i32_1 = arith.constant 0 : i32
    return %c0_i32, %c0_i32_0 : i32, i32
  }
  func.func @transform_12(%arg0: i32) -> (i32, i32) {
    %c0_i32 = arith.constant 0 : i32
    %c0_i32_0 = arith.constant 0 : i32
    %c0_i32_1 = arith.constant 0 : i32
    return %c0_i32, %c0_i32_0 : i32, i32
  }
  func.func @transform_13(%arg0: i32) -> (i32, i32) {
    %c0_i32 = arith.constant 0 : i32
    %c0_i32_0 = arith.constant 0 : i32
    return %arg0, %c0_i32 : i32, i32
  }
}

</mosaic_0001>

<llo_original>
// kernel: tpu_custom_call.1
$region0: #{tpu_custom_call.1}
  #allocation0 [shape = 'u32[]', space=smem, size = 0x4, offset = 0x4, fixed_abs, tag = 'smem constant byte address 0x4 - core index']
  #allocation1 [shape = 'u32[144,128]{1,0:T(1,128)}', space=vmem, size = 0x12000, scoped, tag = 'internal scratch']
  %s0 = inlined_call_operand.hbm [shape: bf16[2,768], index: 0, kind: input, shape index: {}]
  %s1 = inlined_call_operand.hbm [shape: f32[2,6], index: 1, kind: input, shape index: {}]
  %s2 = inlined_call_operand.hbm [shape: bf16[768,1024], index: 2, kind: input, shape index: {}]
  %s3 = inlined_call_operand.hbm [shape: f32[1,1024], index: 3, kind: input, shape index: {}]
  %s4 = inlined_call_operand.hbm [shape: bf16[1024,384], index: 4, kind: input, shape index: {}]
  %s5 = inlined_call_operand.hbm [shape: f32[1,384], index: 5, kind: input, shape index: {}]
  %s6 = inlined_call_operand.hbm [shape: f32[384,128], index: 6, kind: input, shape index: {}]
  %s7 = inlined_call_operand.hbm [shape: f32[1,128], index: 7, kind: input, shape index: {}]
  %s8 = inlined_call_operand.hbm [shape: f32[6,256], index: 8, kind: input, shape index: {}]
  %s9 = inlined_call_operand.hbm [shape: f32[1,256], index: 9, kind: input, shape index: {}]
  %s10 = inlined_call_operand.vmem [shape: f32[128,10], index: 10, kind: input, shape index: {}]
  %s11 = inlined_call_operand.vmem [shape: f32[256,10], index: 11, kind: input, shape index: {}]
  %s12 = inlined_call_operand.hbm [shape: f32[1,10], index: 12, kind: input, shape index: {}]
  %s13 = inlined_call_operand.hbm [shape: f32[2,10], index: 13, kind: output, shape index: {}]
  %s14 = sld [smem:[#allocation0]]
  $region106: #{tpu_custom_call.1} parent=0
    _
  %s16 = ssub.s32 1, %s14
  %s17 = scalar_select 0, %s16, %s14
  $region1: #{tpu_custom_call.1} parent=0
    #allocation2 [shape = 'u8[3072]{0}', space=vmem, size = 0xc00, scoped, tag = 'input window, operand 0, single buffered']
    #allocation3 [shape = 's32[1]{0}', space=sflag, size = 0x4, scoped, tag = 'scoped memory for tpu_custom_call.1']
    #allocation4 [shape = 's32[1]{0}', space=sflag, size = 0x4, scoped, tag = 'scoped memory for tpu_custom_call.1']
    #allocation5 [shape = 'u8[1024]{0}', space=vmem, size = 0x400, scoped, tag = 'input window, operand 1, single buffered']
    #allocation6 [shape = 's32[1]{0}', space=sflag, size = 0x4, scoped, tag = 'scoped memory for tpu_custom_call.1']
    #allocation7 [shape = 'u8[1572864]{0}', space=vmem, size = 0x180000, scoped, tag = 'input window, operand 2, single buffered']
    #allocation8 [shape = 'u8[4096]{0}', space=vmem, size = 0x1000, scoped, tag = 'input window, operand 3, single buffered']
    #allocation9 [shape = 's32[1]{0}', space=sflag, size = 0x4, scoped, tag = 'scoped memory for tpu_custom_call.1']
    #allocation10 [shape = 'u8[786432]{0}', space=vmem, size = 0xc0000, scoped, tag = 'input window, operand 4, single buffered']
    #allocation11 [shape = 'u8[1536]{0}', space=vmem, size = 0x800, scoped, tag = 'input window, operand 5, single buffered']
    #allocation12 [shape = 's32[1]{0}', space=sflag, size = 0x4, scoped, tag = 'scoped memory for tpu_custom_call.1']
    #allocation13 [shape = 'u8[196608]{0}', space=vmem, size = 0x30000, scoped, tag = 'input window, operand 6, single buffered']
    #allocation14 [shape = 'u8[512]{0}', space=vmem, size = 0x400, scoped, tag = 'input window, operand 7, single buffered']
    #allocation15 [shape = 's32[1]{0}', space=sflag, size = 0x4, scoped, tag = 'scoped memory for tpu_custom_call.1']
    #allocation16 [shape = 'u8[8192]{0}', space=vmem, size = 0x2000, scoped, tag = 'input window, operand 8, single buffered']
    #allocation17 [shape = 'u8[1024]{0}', space=vmem, size = 0x400, scoped, tag = 'input window, operand 9, single buffered']
    #allocation18 [shape = 's32[1]{0}', space=sflag, size = 0x4, scoped, tag = 'scoped memory for tpu_custom_call.1']
    #allocation19 [shape = 'u8[512]{0}', space=vmem, size = 0x400, scoped, tag = 'input window, operand 12, single buffered']
    #allocation20 [shape = 'u8[1024]{0}', space=vmem, size = 0x400, scoped, tag = 'output window, operand 0, single buffered']
    %18 = vsyncpa [#allocation3], 0
    %19 = vsyncpa [#allocation6], 0
    %20 = vsyncpa [#allocation9], 0
    %21 = vsyncpa [#allocation12], 0
    %22 = vsyncpa [#allocation15], 0
    %23 = vsyncpa [#allocation18], 0
    %24 = vsyncpa [#allocation4], 0
    // Predicated region
    $region2: #{tpu_custom_call.1} parent=1 // pred_check
      _
    $region3: #{tpu_custom_call.1} parent=1 // pred_check_branch
      %26 = sbr.rel (0) target = $region5
    $region4: #{tpu_custom_call.1} parent=1 // pred_region
      %s28 = ssub.s32 96, 96
      %29 = vsyncadd [#allocation3], %s28
      %s31 = sshll.u32 [#allocation2], 4
      %s32 = int_to_ptr.vmem [resolvable:$true] %s31
      %34 = dma.hbm_to_vmem [thread:$0]  %s0, 96, %s32, [#allocation3]
    $region5: #{tpu_custom_call.1} parent=1 // pred_fallthru
      _
    // Predicated region
    $region6: #{tpu_custom_call.1} parent=1 // pred_check
      _
    $region7: #{tpu_custom_call.1} parent=1 // pred_check_branch
      %36 = sbr.rel (0) target = $region9
    $region8: #{tpu_custom_call.1} parent=1 // pred_region
      %s38 = ssub.s32 32, 32
      %39 = vsyncadd [#allocation6], %s38
      %s41 = sshll.u32 [#allocation5], 4
      %s42 = int_to_ptr.vmem [resolvable:$true] %s41
      %44 = dma.hbm_to_vmem [thread:$0]  %s1, 32, %s42, [#allocation6]
    $region9: #{tpu_custom_call.1} parent=1 // pred_fallthru
      _
    // Predicated region
    $region10: #{tpu_custom_call.1} parent=1 // pred_check
      _
    $region11: #{tpu_custom_call.1} parent=1 // pred_check_branch
      %46 = sbr.rel (0) target = $region13
    $region12: #{tpu_custom_call.1} parent=1 // pred_region
      %s48 = ssub.s32 49152, 49152
      %49 = vsyncadd [#allocation6], %s48
      %s50 = sshll.u32 [#allocation7], 4
      %s51 = int_to_ptr.vmem [resolvable:$true] %s50
      %56 = dma.hbm_to_vmem [thread:$0]  %s2, 49152, %s51, [#allocation6], 512, 512, 32
    $region13: #{tpu_custom_call.1} parent=1 // pred_fallthru
      _
    // Predicated region
    $region14: #{tpu_custom_call.1} parent=1 // pred_check
      _
    $region15: #{tpu_custom_call.1} parent=1 // pred_check_branch
      %58 = sbr.rel (0) target = $region17
    $region16: #{tpu_custom_call.1} parent=1 // pred_region
      %s60 = ssub.s32 128, 128
      %61 = vsyncadd [#allocation9], %s60
      %s63 = sshll.u32 [#allocation8], 4
      %s64 = int_to_ptr.vmem [resolvable:$true] %s63
      %66 = dma.hbm_to_vmem [thread:$0]  %s3, 128, %s64, [#allocation9]
    $region17: #{tpu_custom_call.1} parent=1 // pred_fallthru
      _
    // Predicated region
    $region18: #{tpu_custom_call.1} parent=1 // pred_check
      _
    $region19: #{tpu_custom_call.1} parent=1 // pred_check_branch
      %68 = sbr.rel (0) target = $region21
    $region20: #{tpu_custom_call.1} parent=1 // pred_region
      %s70 = ssub.s32 24576, 24576
      %71 = vsyncadd [#allocation9], %s70
      %s72 = sshll.u32 [#allocation10], 4
      %s73 = int_to_ptr.vmem [resolvable:$true] %s72
      %78 = dma.hbm_to_vmem [thread:$0]  %s4, 24576, %s73, [#allocation9], 192, 192, 12
    $region21: #{tpu_custom_call.1} parent=1 // pred_fallthru
      _
    // Predicated region
    $region22: #{tpu_custom_call.1} parent=1 // pred_check
      _
    $region23: #{tpu_custom_call.1} parent=1 // pred_check_branch
      %80 = sbr.rel (0) target = $region25
    $region24: #{tpu_custom_call.1} parent=1 // pred_region
      %s82 = ssub.s32 48, 48
      %83 = vsyncadd [#allocation12], %s82
      %s85 = sshll.u32 [#allocation11], 4
      %s86 = int_to_ptr.vmem [resolvable:$true] %s85
      %88 = dma.hbm_to_vmem [thread:$0]  %s5, 48, %s86, [#allocation12]
    $region25: #{tpu_custom_call.1} parent=1 // pred_fallthru
      _
    // Predicated region
    $region26: #{tpu_custom_call.1} parent=1 // pred_check
      _
    $region27: #{tpu_custom_call.1} parent=1 // pred_check_branch
      %90 = sbr.rel (0) target = $region29
    $region28: #{tpu_custom_call.1} parent=1 // pred_region
      %s92 = ssub.s32 6144, 6144
      %93 = vsyncadd [#allocation12], %s92
      %s94 = sshll.u32 [#allocation13], 4
      %s95 = int_to_ptr.vmem [resolvable:$true] %s94
      %100 = dma.hbm_to_vmem [thread:$0]  %s6, 6144, %s95, [#allocation12], 128, 128, 8
    $region29: #{tpu_custom_call.1} parent=1 // pred_fallthru
      _
    // Predicated region
    $region30: #{tpu_custom_call.1} parent=1 // pred_check
      _
    $region31: #{tpu_custom_call.1} parent=1 // pred_check_branch
      %102 = sbr.rel (0) target = $region33
    $region32: #{tpu_custom_call.1} parent=1 // pred_region
      %s104 = ssub.s32 16, 16
      %105 = vsyncadd [#allocation15], %s104
      %s107 = sshll.u32 [#allocation14], 4
      %s108 = int_to_ptr.vmem [resolvable:$true] %s107
      %110 = dma.hbm_to_vmem [thread:$0]  %s7, 16, %s108, [#allocation15]
    $region33: #{tpu_custom_call.1} parent=1 // pred_fallthru
      _
    // Predicated region
    $region34: #{tpu_custom_call.1} parent=1 // pred_check
      _
    $region35: #{tpu_custom_call.1} parent=1 // pred_check_branch
      %112 = sbr.rel (0) target = $region37
    $region36: #{tpu_custom_call.1} parent=1 // pred_region
      %s114 = ssub.s32 256, 256
      %115 = vsyncadd [#allocation15], %s114
      %s117 = sshll.u32 [#allocation16], 4
      %s118 = int_to_ptr.vmem [resolvable:$true] %s117
      %120 = dma.hbm_to_vmem [thread:$0]  %s8, 256, %s118, [#allocation15]
    $region37: #{tpu_custom_call.1} parent=1 // pred_fallthru
      _
    // Predicated region
    $region38: #{tpu_custom_call.1} parent=1 // pred_check
      _
    $region39: #{tpu_custom_call.1} parent=1 // pred_check_branch
      %122 = sbr.rel (0) target = $region41
    $region40: #{tpu_custom_call.1} parent=1 // pred_region
      %s124 = ssub.s32 32, 32
      %125 = vsyncadd [#allocation18], %s124
      %s127 = sshll.u32 [#allocation17], 4
      %s128 = int_to_ptr.vmem [resolvable:$true] %s127
      %130 = dma.hbm_to_vmem [thread:$0]  %s9, 32, %s128, [#allocation18]
    $region41: #{tpu_custom_call.1} parent=1 // pred_fallthru
      _
    // Predicated region
    $region42: #{tpu_custom_call.1} parent=1 // pred_check
      _
    $region43: #{tpu_custom_call.1} parent=1 // pred_check_branch
      %132 = sbr.rel (0) target = $region45
    $region44: #{tpu_custom_call.1} parent=1 // pred_region
      _
    $region45: #{tpu_custom_call.1} parent=1 // pred_fallthru
      _
    // Predicated region
    $region46: #{tpu_custom_call.1} parent=1 // pred_check
      _
    $region47: #{tpu_custom_call.1} parent=1 // pred_check_branch
      %134 = sbr.rel (0) target = $region49
    $region48: #{tpu_custom_call.1} parent=1 // pred_region
      _
    $region49: #{tpu_custom_call.1} parent=1 // pred_fallthru
      _
    // Predicated region
    $region50: #{tpu_custom_call.1} parent=1 // pred_check
      _
    $region51: #{tpu_custom_call.1} parent=1 // pred_check_branch
      %136 = sbr.rel (0) target = $region53
    $region52: #{tpu_custom_call.1} parent=1 // pred_region
      %s138 = ssub.s32 16, 16
      %139 = vsyncadd [#allocation18], %s138
      %s141 = sshll.u32 [#allocation19], 4
      %s142 = int_to_ptr.vmem [resolvable:$true] %s141
      %144 = dma.hbm_to_vmem [thread:$0]  %s12, 16, %s142, [#allocation18]
    $region53: #{tpu_custom_call.1} parent=1 // pred_fallthru
      _
    // Predicated region
    $region54: #{tpu_custom_call.1} parent=1 // pred_check
      _
    $region55: #{tpu_custom_call.1} parent=1 // pred_check_branch
      %146 = sbr.rel (0) target = $region57
    $region56: #{tpu_custom_call.1} parent=1 // pred_region
      %147 = dma.done [#allocation3], 96
    $region57: #{tpu_custom_call.1} parent=1 // pred_fallthru
      _
    // Predicated region
    $region58: #{tpu_custom_call.1} parent=1 // pred_check
      _
    $region59: #{tpu_custom_call.1} parent=1 // pred_check_branch
      %149 = sbr.rel (0) target = $region61
    $region60: #{tpu_custom_call.1} parent=1 // pred_region
      %150 = dma.done [#allocation6], 32
    $region61: #{tpu_custom_call.1} parent=1 // pred_fallthru
      _
    // Predicated region
    $region62: #{tpu_custom_call.1} parent=1 // pred_check
      _
    $region63: #{tpu_custom_call.1} parent=1 // pred_check_branch
      %152 = sbr.rel (0) target = $region65
    $region64: #{tpu_custom_call.1} parent=1 // pred_region
      %153 = dma.done [#allocation6], 49152
    $region65: #{tpu_custom_call.1} parent=1 // pred_fallthru
      _
    // Predicated region
    $region66: #{tpu_custom_call.1} parent=1 // pred_check
      _
    $region67: #{tpu_custom_call.1} parent=1 // pred_check_branch
      %155 = sbr.rel (0) target = $region69
    $region68: #{tpu_custom_call.1} parent=1 // pred_region
      %156 = dma.done [#allocation9], 128
    $region69: #{tpu_custom_call.1} parent=1 // pred_fallthru
      _
    // Predicated region
    $region70: #{tpu_custom_call.1} parent=1 // pred_check
      _
    $region71: #{tpu_custom_call.1} parent=1 // pred_check_branch
      %158 = sbr.rel (0) target = $region73
    $region72: #{tpu_custom_call.1} parent=1 // pred_region
      %159 = dma.done [#allocation9], 24576
    $region73: #{tpu_custom_call.1} parent=1 // pred_fallthru
      _
    // Predicated region
    $region74: #{tpu_custom_call.1} parent=1 // pred_check
      _
    $region75: #{tpu_custom_call.1} parent=1 // pred_check_branch
      %161 = sbr.rel (0) target = $region77
    $region76: #{tpu_custom_call.1} parent=1 // pred_region
      %162 = dma.done [#allocation12], 48
    $region77: #{tpu_custom_call.1} parent=1 // pred_fallthru
      _
    // Predicated region
    $region78: #{tpu_custom_call.1} parent=1 // pred_check
      _
    $region79: #{tpu_custom_call.1} parent=1 // pred_check_branch
      %164 = sbr.rel (0) target = $region81
    $region80: #{tpu_custom_call.1} parent=1 // pred_region
      %165 = dma.done [#allocation12], 6144
    $region81: #{tpu_custom_call.1} parent=1 // pred_fallthru
      _
    // Predicated region
    $region82: #{tpu_custom_call.1} parent=1 // pred_check
      _
    $region83: #{tpu_custom_call.1} parent=1 // pred_check_branch
      %167 = sbr.rel (0) target = $region85
    $region84: #{tpu_custom_call.1} parent=1 // pred_region
      %168 = dma.done [#allocation15], 16
    $region85: #{tpu_custom_call.1} parent=1 // pred_fallthru
      _
    // Predicated region
    $region86: #{tpu_custom_call.1} parent=1 // pred_check
      _
    $region87: #{tpu_custom_call.1} parent=1 // pred_check_branch
      %170 = sbr.rel (0) target = $region89
    $region88: #{tpu_custom_call.1} parent=1 // pred_region
      %171 = dma.done [#allocation15], 256
    $region89: #{tpu_custom_call.1} parent=1 // pred_fallthru
      _
    // Predicated region
    $region90: #{tpu_custom_call.1} parent=1 // pred_check
      _
    $region91: #{tpu_custom_call.1} parent=1 // pred_check_branch
      %173 = sbr.rel (0) target = $region93
    $region92: #{tpu_custom_call.1} parent=1 // pred_region
      %174 = dma.done [#allocation18], 32
    $region93: #{tpu_custom_call.1} parent=1 // pred_fallthru
      _
    // Predicated region
    $region94: #{tpu_custom_call.1} parent=1 // pred_check
      _
    $region95: #{tpu_custom_call.1} parent=1 // pred_check_branch
      %176 = sbr.rel (0) target = $region97
    $region96: #{tpu_custom_call.1} parent=1 // pred_region
      %177 = dma.done [#allocation18], 16
    $region97: #{tpu_custom_call.1} parent=1 // pred_fallthru
      _
    %v179 = vld [vmem:[#allocation2] sm:$0x3f]
    %v180 = vld [vmem:[#allocation7] sm:$0xff]
    %v181 = vld [vmem:[#allocation7 + $0x8] sm:$0xff]
    %v182 = vld [vmem:[#allocation7 + $0x10] sm:$0xff]
    %v183 = vld [vmem:[#allocation7 + $0x18] sm:$0xff]
    %v184 = vld [vmem:[#allocation7 + $0x20] sm:$0xff]
    %v185 = vld [vmem:[#allocation7 + $0x28] sm:$0xff]
    %v186 = vld [vmem:[#allocation7 + $0x30] sm:$0xff]
    %v187 = vld [vmem:[#allocation7 + $0x38] sm:$0xff]
    %v188 = vld [vmem:[#allocation7 + $0x40] sm:$0xff]
    %v189 = vld [vmem:[#allocation7 + $0x48] sm:$0xff]
    %v190 = vld [vmem:[#allocation7 + $0x50] sm:$0xff]
    %v191 = vld [vmem:[#allocation7 + $0x58] sm:$0xff]
    %v192 = vld [vmem:[#allocation7 + $0x60] sm:$0xff]
    %v193 = vld [vmem:[#allocation7 + $0x68] sm:$0xff]
    %v194 = vld [vmem:[#allocation7 + $0x70] sm:$0xff]
    %v195 = vld [vmem:[#allocation7 + $0x78] sm:$0xff]
    %v196 = vld [vmem:[#allocation7 + $0x80] sm:$0xff]
    %v197 = vld [vmem:[#allocation7 + $0x88] sm:$0xff]
    %v198 = vld [vmem:[#allocation7 + $0x90] sm:$0xff]
    %v199 = vld [vmem:[#allocation7 + $0x98] sm:$0xff]
    %v200 = vld [vmem:[#allocation7 + $0xa0] sm:$0xff]
    %v201 = vld [vmem:[#allocation7 + $0xa8] sm:$0xff]
    %v202 = vld [vmem:[#allocation7 + $0xb0] sm:$0xff]
    %v203 = vld [vmem:[#allocation7 + $0xb8] sm:$0xff]
    %v204 = vld [vmem:[#allocation7 + $0xc0] sm:$0xff]
    %v205 = vld [vmem:[#allocation7 + $0xc8] sm:$0xff]
    %v206 = vld [vmem:[#allocation7 + $0xd0] sm:$0xff]
    %v207 = vld [vmem:[#allocation7 + $0xd8] sm:$0xff]
    %v208 = vld [vmem:[#allocation7 + $0xe0] sm:$0xff]
    %v209 = vld [vmem:[#allocation7 + $0xe8] sm:$0xff]
    %v210 = vld [vmem:[#allocation7 + $0xf0] sm:$0xff]
    %v211 = vld [vmem:[#allocation7 + $0xf8] sm:$0xff]
    %v212 = vld [vmem:[#allocation7 + $0x100] sm:$0xff]
    %v213 = vld [vmem:[#allocation7 + $0x108] sm:$0xff]
    %v214 = vld [vmem:[#allocation7 + $0x110] sm:$0xff]
    %v215 = vld [vmem:[#allocation7 + $0x118] sm:$0xff]
    %v216 = vld [vmem:[#allocation7 + $0x120] sm:$0xff]
    %v217 = vld [vmem:[#allocation7 + $0x128] sm:$0xff]
    %v218 = vld [vmem:[#allocation7 + $0x130] sm:$0xff]
    %v219 = vld [vmem:[#allocation7 + $0x138] sm:$0xff]
    %v220 = vld [vmem:[#allocation7 + $0x140] sm:$0xff]
    %v221 = vld [vmem:[#allocation7 + $0x148] sm:$0xff]
    %v222 = vld [vmem:[#allocation7 + $0x150] sm:$0xff]
    %v223 = vld [vmem:[#allocation7 + $0x158] sm:$0xff]
    %v224 = vld [vmem:[#allocation7 + $0x160] sm:$0xff]
    %v225 = vld [vmem:[#allocation7 + $0x168] sm:$0xff]
    %v226 = vld [vmem:[#allocation7 + $0x170] sm:$0xff]
    %v227 = vld [vmem:[#allocation7 + $0x178] sm:$0xff]
    %v228 = vld [vmem:[#allocation7 + $0x180] sm:$0xff]
    %v229 = vld [vmem:[#allocation7 + $0x188] sm:$0xff]
    %v230 = vld [vmem:[#allocation7 + $0x190] sm:$0xff]
    %v231 = vld [vmem:[#allocation7 + $0x198] sm:$0xff]
    %v232 = vld [vmem:[#allocation7 + $0x1a0] sm:$0xff]
    %v233 = vld [vmem:[#allocation7 + $0x1a8] sm:$0xff]
    %v234 = vld [vmem:[#allocation7 + $0x1b0] sm:$0xff]
    %v235 = vld [vmem:[#allocation7 + $0x1b8] sm:$0xff]
    %v236 = vld [vmem:[#allocation7 + $0x1c0] sm:$0xff]
    %v237 = vld [vmem:[#allocation7 + $0x1c8] sm:$0xff]
    %v238 = vld [vmem:[#allocation7 + $0x1d0] sm:$0xff]
    %v239 = vld [vmem:[#allocation7 + $0x1d8] sm:$0xff]
    %v240 = vld [vmem:[#allocation7 + $0x1e0] sm:$0xff]
    %v241 = vld [vmem:[#allocation7 + $0x1e8] sm:$0xff]
    %v242 = vld [vmem:[#allocation7 + $0x1f0] sm:$0xff]
    %v243 = vld [vmem:[#allocation7 + $0x1f8] sm:$0xff]
    %v244 = vld [vmem:[#allocation7 + $0x200] sm:$0xff]
    %v245 = vld [vmem:[#allocation7 + $0x208] sm:$0xff]
    %v246 = vld [vmem:[#allocation7 + $0x210] sm:$0xff]
    %v247 = vld [vmem:[#allocation7 + $0x218] sm:$0xff]
    %v248 = vld [vmem:[#allocation7 + $0x220] sm:$0xff]
    %v249 = vld [vmem:[#allocation7 + $0x228] sm:$0xff]
    %v250 = vld [vmem:[#allocation7 + $0x230] sm:$0xff]
    %v251 = vld [vmem:[#allocation7 + $0x238] sm:$0xff]
    %v252 = vld [vmem:[#allocation7 + $0x240] sm:$0xff]
    %v253 = vld [vmem:[#allocation7 + $0x248] sm:$0xff]
    %v254 = vld [vmem:[#allocation7 + $0x250] sm:$0xff]
    %v255 = vld [vmem:[#allocation7 + $0x258] sm:$0xff]
    %v256 = vld [vmem:[#allocation7 + $0x260] sm:$0xff]
    %v257 = vld [vmem:[#allocation7 + $0x268] sm:$0xff]
    %v258 = vld [vmem:[#allocation7 + $0x270] sm:$0xff]
    %v259 = vld [vmem:[#allocation7 + $0x278] sm:$0xff]
    %v260 = vld [vmem:[#allocation7 + $0x280] sm:$0xff]
    %v261 = vld [vmem:[#allocation7 + $0x288] sm:$0xff]
    %v262 = vld [vmem:[#allocation7 + $0x290] sm:$0xff]
    %v263 = vld [vmem:[#allocation7 + $0x298] sm:$0xff]
    %v264 = vld [vmem:[#allocation7 + $0x2a0] sm:$0xff]
    %v265 = vld [vmem:[#allocation7 + $0x2a8] sm:$0xff]
    %v266 = vld [vmem:[#allocation7 + $0x2b0] sm:$0xff]
    %v267 = vld [vmem:[#allocation7 + $0x2b8] sm:$0xff]
    %v268 = vld [vmem:[#allocation7 + $0x2c0] sm:$0xff]
    %v269 = vld [vmem:[#allocation7 + $0x2c8] sm:$0xff]
    %v270 = vld [vmem:[#allocation7 + $0x2d0] sm:$0xff]
    %v271 = vld [vmem:[#allocation7 + $0x2d8] sm:$0xff]
    %v272 = vld [vmem:[#allocation7 + $0x2e0] sm:$0xff]
    %v273 = vld [vmem:[#allocation7 + $0x2e8] sm:$0xff]
    %v274 = vld [vmem:[#allocation7 + $0x2f0] sm:$0xff]
    %v275 = vld [vmem:[#allocation7 + $0x2f8] sm:$0xff]
    %v276 = vld [vmem:[#allocation7 + $0x300] sm:$0xff]
    %v277 = vld [vmem:[#allocation7 + $0x308] sm:$0xff]
    %v278 = vld [vmem:[#allocation7 + $0x310] sm:$0xff]
    %v279 = vld [vmem:[#allocation7 + $0x318] sm:$0xff]
    %v280 = vld [vmem:[#allocation7 + $0x320] sm:$0xff]
    %v281 = vld [vmem:[#allocation7 + $0x328] sm:$0xff]
    %v282 = vld [vmem:[#allocation7 + $0x330] sm:$0xff]
    %v283 = vld [vmem:[#allocation7 + $0x338] sm:$0xff]
    %v284 = vld [vmem:[#allocation7 + $0x340] sm:$0xff]
    %v285 = vld [vmem:[#allocation7 + $0x348] sm:$0xff]
    %v286 = vld [vmem:[#allocation7 + $0x350] sm:$0xff]
    %v287 = vld [vmem:[#allocation7 + $0x358] sm:$0xff]
    %v288 = vld [vmem:[#allocation7 + $0x360] sm:$0xff]
    %v289 = vld [vmem:[#allocation7 + $0x368] sm:$0xff]
    %v290 = vld [vmem:[#allocation7 + $0x370] sm:$0xff]
    %v291 = vld [vmem:[#allocation7 + $0x378] sm:$0xff]
    %v292 = vld [vmem:[#allocation7 + $0x380] sm:$0xff]
    %v293 = vld [vmem:[#allocation7 + $0x388] sm:$0xff]
    %v294 = vld [vmem:[#allocation7 + $0x390] sm:$0xff]
    %v295 = vld [vmem:[#allocation7 + $0x398] sm:$0xff]
    %v296 = vld [vmem:[#allocation7 + $0x3a0] sm:$0xff]
    %v297 = vld [vmem:[#allocation7 + $0x3a8] sm:$0xff]
    %v298 = vld [vmem:[#allocation7 + $0x3b0] sm:$0xff]
    %v299 = vld [vmem:[#allocation7 + $0x3b8] sm:$0xff]
    %v300 = vld [vmem:[#allocation7 + $0x3c0] sm:$0xff]
    %v301 = vld [vmem:[#allocation7 + $0x3c8] sm:$0xff]
    %v302 = vld [vmem:[#allocation7 + $0x3d0] sm:$0xff]
    %v303 = vld [vmem:[#allocation7 + $0x3d8] sm:$0xff]
    %v304 = vld [vmem:[#allocation7 + $0x3e0] sm:$0xff]
    %v305 = vld [vmem:[#allocation7 + $0x3e8] sm:$0xff]
    %v306 = vld [vmem:[#allocation7 + $0x3f0] sm:$0xff]
    %v307 = vld [vmem:[#allocation7 + $0x3f8] sm:$0xff]
    %v308 = vld [vmem:[#allocation7 + $0x400] sm:$0xff]
    %v309 = vld [vmem:[#allocation7 + $0x408] sm:$0xff]
    %v310 = vld [vmem:[#allocation7 + $0x410] sm:$0xff]
    %v311 = vld [vmem:[#allocation7 + $0x418] sm:$0xff]
    %v312 = vld [vmem:[#allocation7 + $0x420] sm:$0xff]
    %v313 = vld [vmem:[#allocation7 + $0x428] sm:$0xff]
    %v314 = vld [vmem:[#allocation7 + $0x430] sm:$0xff]
    %v315 = vld [vmem:[#allocation7 + $0x438] sm:$0xff]
    %v316 = vld [vmem:[#allocation7 + $0x440] sm:$0xff]
    %v317 = vld [vmem:[#allocation7 + $0x448] sm:$0xff]
    %v318 = vld [vmem:[#allocation7 + $0x450] sm:$0xff]
    %v319 = vld [vmem:[#allocation7 + $0x458] sm:$0xff]
    %v320 = vld [vmem:[#allocation7 + $0x460] sm:$0xff]
    %v321 = vld [vmem:[#allocation7 + $0x468] sm:$0xff]
    %v322 = vld [vmem:[#allocation7 + $0x470] sm:$0xff]
    %v323 = vld [vmem:[#allocation7 + $0x478] sm:$0xff]
    %v324 = vld [vmem:[#allocation7 + $0x480] sm:$0xff]
    %v325 = vld [vmem:[#allocation7 + $0x488] sm:$0xff]
    %v326 = vld [vmem:[#allocation7 + $0x490] sm:$0xff]
    %v327 = vld [vmem:[#allocation7 + $0x498] sm:$0xff]
    %v328 = vld [vmem:[#allocation7 + $0x4a0] sm:$0xff]
    %v329 = vld [vmem:[#allocation7 + $0x4a8] sm:$0xff]
    %v330 = vld [vmem:[#allocation7 + $0x4b0] sm:$0xff]
    %v331 = vld [vmem:[#allocation7 + $0x4b8] sm:$0xff]
    %v332 = vld [vmem:[#allocation7 + $0x4c0] sm:$0xff]
    %v333 = vld [vmem:[#allocation7 + $0x4c8] sm:$0xff]
    %v334 = vld [vmem:[#allocation7 + $0x4d0] sm:$0xff]
    %v335 = vld [vmem:[#allocation7 + $0x4d8] sm:$0xff]
    %v336 = vld [vmem:[#allocation7 + $0x4e0] sm:$0xff]
    %v337 = vld [vmem:[#allocation7 + $0x4e8] sm:$0xff]
    %v338 = vld [vmem:[#allocation7 + $0x4f0] sm:$0xff]
    %v339 = vld [vmem:[#allocation7 + $0x4f8] sm:$0xff]
    %v340 = vld [vmem:[#allocation7 + $0x500] sm:$0xff]
    %v341 = vld [vmem:[#allocation7 + $0x508] sm:$0xff]
    %v342 = vld [vmem:[#allocation7 + $0x510] sm:$0xff]
    %v343 = vld [vmem:[#allocation7 + $0x518] sm:$0xff]
    %v344 = vld [vmem:[#allocation7 + $0x520] sm:$0xff]
    %v345 = vld [vmem:[#allocation7 + $0x528] sm:$0xff]
    %v346 = vld [vmem:[#allocation7 + $0x530] sm:$0xff]
    %v347 = vld [vmem:[#allocation7 + $0x538] sm:$0xff]
    %v348 = vld [vmem:[#allocation7 + $0x540] sm:$0xff]
    %v349 = vld [vmem:[#allocation7 + $0x548] sm:$0xff]
    %v350 = vld [vmem:[#allocation7 + $0x550] sm:$0xff]
    %v351 = vld [vmem:[#allocation7 + $0x558] sm:$0xff]
    %v352 = vld [vmem:[#allocation7 + $0x560] sm:$0xff]
    %v353 = vld [vmem:[#allocation7 + $0x568] sm:$0xff]
    %v354 = vld [vmem:[#allocation7 + $0x570] sm:$0xff]
    %v355 = vld [vmem:[#allocation7 + $0x578] sm:$0xff]
    %v356 = vld [vmem:[#allocation7 + $0x580] sm:$0xff]
    %v357 = vld [vmem:[#allocation7 + $0x588] sm:$0xff]
    %v358 = vld [vmem:[#allocation7 + $0x590] sm:$0xff]
    %v359 = vld [vmem:[#allocation7 + $0x598] sm:$0xff]
    %v360 = vld [vmem:[#allocation7 + $0x5a0] sm:$0xff]
    %v361 = vld [vmem:[#allocation7 + $0x5a8] sm:$0xff]
    %v362 = vld [vmem:[#allocation7 + $0x5b0] sm:$0xff]
    %v363 = vld [vmem:[#allocation7 + $0x5b8] sm:$0xff]
    %v364 = vld [vmem:[#allocation7 + $0x5c0] sm:$0xff]
    %v365 = vld [vmem:[#allocation7 + $0x5c8] sm:$0xff]
    %v366 = vld [vmem:[#allocation7 + $0x5d0] sm:$0xff]
    %v367 = vld [vmem:[#allocation7 + $0x5d8] sm:$0xff]
    %v368 = vld [vmem:[#allocation7 + $0x5e0] sm:$0xff]
    %v369 = vld [vmem:[#allocation7 + $0x5e8] sm:$0xff]
    %v370 = vld [vmem:[#allocation7 + $0x5f0] sm:$0xff]
    %v371 = vld [vmem:[#allocation7 + $0x5f8] sm:$0xff]
    %v372 = vld [vmem:[#allocation7 + $0x600] sm:$0xff]
    %v373 = vld [vmem:[#allocation7 + $0x608] sm:$0xff]
    %v374 = vld [vmem:[#allocation7 + $0x610] sm:$0xff]
    %v375 = vld [vmem:[#allocation7 + $0x618] sm:$0xff]
    %v376 = vld [vmem:[#allocation7 + $0x620] sm:$0xff]
    %v377 = vld [vmem:[#allocation7 + $0x628] sm:$0xff]
    %v378 = vld [vmem:[#allocation7 + $0x630] sm:$0xff]
    %v379 = vld [vmem:[#allocation7 + $0x638] sm:$0xff]
    %v380 = vld [vmem:[#allocation7 + $0x640] sm:$0xff]
    %v381 = vld [vmem:[#allocation7 + $0x648] sm:$0xff]
    %v382 = vld [vmem:[#allocation7 + $0x650] sm:$0xff]
    %v383 = vld [vmem:[#allocation7 + $0x658] sm:$0xff]
    %v384 = vld [vmem:[#allocation7 + $0x660] sm:$0xff]
    %v385 = vld [vmem:[#allocation7 + $0x668] sm:$0xff]
    %v386 = vld [vmem:[#allocation7 + $0x670] sm:$0xff]
    %v387 = vld [vmem:[#allocation7 + $0x678] sm:$0xff]
    %v388 = vld [vmem:[#allocation7 + $0x680] sm:$0xff]
    %v389 = vld [vmem:[#allocation7 + $0x688] sm:$0xff]
    %v390 = vld [vmem:[#allocation7 + $0x690] sm:$0xff]
    %v391 = vld [vmem:[#allocation7 + $0x698] sm:$0xff]
    %v392 = vld [vmem:[#allocation7 + $0x6a0] sm:$0xff]
    %v393 = vld [vmem:[#allocation7 + $0x6a8] sm:$0xff]
    %v394 = vld [vmem:[#allocation7 + $0x6b0] sm:$0xff]
    %v395 = vld [vmem:[#allocation7 + $0x6b8] sm:$0xff]
    %v396 = vld [vmem:[#allocation7 + $0x6c0] sm:$0xff]
    %v397 = vld [vmem:[#allocation7 + $0x6c8] sm:$0xff]
    %v398 = vld [vmem:[#allocation7 + $0x6d0] sm:$0xff]
    %v399 = vld [vmem:[#allocation7 + $0x6d8] sm:$0xff]
    %v400 = vld [vmem:[#allocation7 + $0x6e0] sm:$0xff]
    %v401 = vld [vmem:[#allocation7 + $0x6e8] sm:$0xff]
    %v402 = vld [vmem:[#allocation7 + $0x6f0] sm:$0xff]
    %v403 = vld [vmem:[#allocation7 + $0x6f8] sm:$0xff]
    %v404 = vld [vmem:[#allocation7 + $0x700] sm:$0xff]
    %v405 = vld [vmem:[#allocation7 + $0x708] sm:$0xff]
    %v406 = vld [vmem:[#allocation7 + $0x710] sm:$0xff]
    %v407 = vld [vmem:[#allocation7 + $0x718] sm:$0xff]
    %v408 = vld [vmem:[#allocation7 + $0x720] sm:$0xff]
    %v409 = vld [vmem:[#allocation7 + $0x728] sm:$0xff]
    %v410 = vld [vmem:[#allocation7 + $0x730] sm:$0xff]
    %v411 = vld [vmem:[#allocation7 + $0x738] sm:$0xff]
    %v412 = vld [vmem:[#allocation7 + $0x740] sm:$0xff]
    %v413 = vld [vmem:[#allocation7 + $0x748] sm:$0xff]
    %v414 = vld [vmem:[#allocation7 + $0x750] sm:$0xff]
    %v415 = vld [vmem:[#allocation7 + $0x758] sm:$0xff]
    %v416 = vld [vmem:[#allocation7 + $0x760] sm:$0xff]
    %v417 = vld [vmem:[#allocation7 + $0x768] sm:$0xff]
    %v418 = vld [vmem:[#allocation7 + $0x770] sm:$0xff]
    %v419 = vld [vmem:[#allocation7 + $0x778] sm:$0xff]
    %v420 = vld [vmem:[#allocation7 + $0x780] sm:$0xff]
    %v421 = vld [vmem:[#allocation7 + $0x788] sm:$0xff]
    %v422 = vld [vmem:[#allocation7 + $0x790] sm:$0xff]
    %v423 = vld [vmem:[#allocation7 + $0x798] sm:$0xff]
    %v424 = vld [vmem:[#allocation7 + $0x7a0] sm:$0xff]
    %v425 = vld [vmem:[#allocation7 + $0x7a8] sm:$0xff]
    %v426 = vld [vmem:[#allocation7 + $0x7b0] sm:$0xff]
    %v427 = vld [vmem:[#allocation7 + $0x7b8] sm:$0xff]
    %v428 = vld [vmem:[#allocation7 + $0x7c0] sm:$0xff]
    %v429 = vld [vmem:[#allocation7 + $0x7c8] sm:$0xff]
    %v430 = vld [vmem:[#allocation7 + $0x7d0] sm:$0xff]
    %v431 = vld [vmem:[#allocation7 + $0x7d8] sm:$0xff]
    %v432 = vld [vmem:[#allocation7 + $0x7e0] sm:$0xff]
    %v433 = vld [vmem:[#allocation7 + $0x7e8] sm:$0xff]
    %v434 = vld [vmem:[#allocation7 + $0x7f0] sm:$0xff]
    %v435 = vld [vmem:[#allocation7 + $0x7f8] sm:$0xff]
    %v436 = vld [vmem:[#allocation7 + $0x800] sm:$0xff]
    %v437 = vld [vmem:[#allocation7 + $0x808] sm:$0xff]
    %v438 = vld [vmem:[#allocation7 + $0x810] sm:$0xff]
    %v439 = vld [vmem:[#allocation7 + $0x818] sm:$0xff]
    %v440 = vld [vmem:[#allocation7 + $0x820] sm:$0xff]
    %v441 = vld [vmem:[#allocation7 + $0x828] sm:$0xff]
    %v442 = vld [vmem:[#allocation7 + $0x830] sm:$0xff]
    %v443 = vld [vmem:[#allocation7 + $0x838] sm:$0xff]
    %v444 = vld [vmem:[#allocation7 + $0x840] sm:$0xff]
    %v445 = vld [vmem:[#allocation7 + $0x848] sm:$0xff]
    %v446 = vld [vmem:[#allocation7 + $0x850] sm:$0xff]
    %v447 = vld [vmem:[#allocation7 + $0x858] sm:$0xff]
    %v448 = vld [vmem:[#allocation7 + $0x860] sm:$0xff]
    %v449 = vld [vmem:[#allocation7 + $0x868] sm:$0xff]
    %v450 = vld [vmem:[#allocation7 + $0x870] sm:$0xff]
    %v451 = vld [vmem:[#allocation7 + $0x878] sm:$0xff]
    %v452 = vld [vmem:[#allocation7 + $0x880] sm:$0xff]
    %v453 = vld [vmem:[#allocation7 + $0x888] sm:$0xff]
    %v454 = vld [vmem:[#allocation7 + $0x890] sm:$0xff]
    %v455 = vld [vmem:[#allocation7 + $0x898] sm:$0xff]
    %v456 = vld [vmem:[#allocation7 + $0x8a0] sm:$0xff]
    %v457 = vld [vmem:[#allocation7 + $0x8a8] sm:$0xff]
    %v458 = vld [vmem:[#allocation7 + $0x8b0] sm:$0xff]
    %v459 = vld [vmem:[#allocation7 + $0x8b8] sm:$0xff]
    %v460 = vld [vmem:[#allocation7 + $0x8c0] sm:$0xff]
    %v461 = vld [vmem:[#allocation7 + $0x8c8] sm:$0xff]
    %v462 = vld [vmem:[#allocation7 + $0x8d0] sm:$0xff]
    %v463 = vld [vmem:[#allocation7 + $0x8d8] sm:$0xff]
    %v464 = vld [vmem:[#allocation7 + $0x8e0] sm:$0xff]
    %v465 = vld [vmem:[#allocation7 + $0x8e8] sm:$0xff]
    %v466 = vld [vmem:[#allocation7 + $0x8f0] sm:$0xff]
    %v467 = vld [vmem:[#allocation7 + $0x8f8] sm:$0xff]
    %v468 = vld [vmem:[#allocation7 + $0x900] sm:$0xff]
    %v469 = vld [vmem:[#allocation7 + $0x908] sm:$0xff]
    %v470 = vld [vmem:[#allocation7 + $0x910] sm:$0xff]
    %v471 = vld [vmem:[#allocation7 + $0x918] sm:$0xff]
    %v472 = vld [vmem:[#allocation7 + $0x920] sm:$0xff]
    %v473 = vld [vmem:[#allocation7 + $0x928] sm:$0xff]
    %v474 = vld [vmem:[#allocation7 + $0x930] sm:$0xff]
    %v475 = vld [vmem:[#allocation7 + $0x938] sm:$0xff]
    %v476 = vld [vmem:[#allocation7 + $0x940] sm:$0xff]
    %v477 = vld [vmem:[#allocation7 + $0x948] sm:$0xff]
    %v478 = vld [vmem:[#allocation7 + $0x950] sm:$0xff]
    %v479 = vld [vmem:[#allocation7 + $0x958] sm:$0xff]
    %v480 = vld [vmem:[#allocation7 + $0x960] sm:$0xff]
    %v481 = vld [vmem:[#allocation7 + $0x968] sm:$0xff]
    %v482 = vld [vmem:[#allocation7 + $0x970] sm:$0xff]
    %v483 = vld [vmem:[#allocation7 + $0x978] sm:$0xff]
    %v484 = vld [vmem:[#allocation7 + $0x980] sm:$0xff]
    %v485 = vld [vmem:[#allocation7 + $0x988] sm:$0xff]
    %v486 = vld [vmem:[#allocation7 + $0x990] sm:$0xff]
    %v487 = vld [vmem:[#allocation7 + $0x998] sm:$0xff]
    %v488 = vld [vmem:[#allocation7 + $0x9a0] sm:$0xff]
    %v489 = vld [vmem:[#allocation7 + $0x9a8] sm:$0xff]
    %v490 = vld [vmem:[#allocation7 + $0x9b0] sm:$0xff]
    %v491 = vld [vmem:[#allocation7 + $0x9b8] sm:$0xff]
    %v492 = vld [vmem:[#allocation7 + $0x9c0] sm:$0xff]
    %v493 = vld [vmem:[#allocation7 + $0x9c8] sm:$0xff]
    %v494 = vld [vmem:[#allocation7 + $0x9d0] sm:$0xff]
    %v495 = vld [vmem:[#allocation7 + $0x9d8] sm:$0xff]
    %v496 = vld [vmem:[#allocation7 + $0x9e0] sm:$0xff]
    %v497 = vld [vmem:[#allocation7 + $0x9e8] sm:$0xff]
    %v498 = vld [vmem:[#allocation7 + $0x9f0] sm:$0xff]
    %v499 = vld [vmem:[#allocation7 + $0x9f8] sm:$0xff]
    %v500 = vld [vmem:[#allocation7 + $0xa00] sm:$0xff]
    %v501 = vld [vmem:[#allocation7 + $0xa08] sm:$0xff]
    %v502 = vld [vmem:[#allocation7 + $0xa10] sm:$0xff]
    %v503 = vld [vmem:[#allocation7 + $0xa18] sm:$0xff]
    %v504 = vld [vmem:[#allocation7 + $0xa20] sm:$0xff]
    %v505 = vld [vmem:[#allocation7 + $0xa28] sm:$0xff]
    %v506 = vld [vmem:[#allocation7 + $0xa30] sm:$0xff]
    %v507 = vld [vmem:[#allocation7 + $0xa38] sm:$0xff]
    %v508 = vld [vmem:[#allocation7 + $0xa40] sm:$0xff]
    %v509 = vld [vmem:[#allocation7 + $0xa48] sm:$0xff]
    %v510 = vld [vmem:[#allocation7 + $0xa50] sm:$0xff]
    %v511 = vld [vmem:[#allocation7 + $0xa58] sm:$0xff]
    %v512 = vld [vmem:[#allocation7 + $0xa60] sm:$0xff]
    %v513 = vld [vmem:[#allocation7 + $0xa68] sm:$0xff]
    %v514 = vld [vmem:[#allocation7 + $0xa70] sm:$0xff]
    %v515 = vld [vmem:[#allocation7 + $0xa78] sm:$0xff]
    %v516 = vld [vmem:[#allocation7 + $0xa80] sm:$0xff]
    %v517 = vld [vmem:[#allocation7 + $0xa88] sm:$0xff]
    %v518 = vld [vmem:[#allocation7 + $0xa90] sm:$0xff]
    %v519 = vld [vmem:[#allocation7 + $0xa98] sm:$0xff]
    %v520 = vld [vmem:[#allocation7 + $0xaa0] sm:$0xff]
    %v521 = vld [vmem:[#allocation7 + $0xaa8] sm:$0xff]
    %v522 = vld [vmem:[#allocation7 + $0xab0] sm:$0xff]
    %v523 = vld [vmem:[#allocation7 + $0xab8] sm:$0xff]
    %v524 = vld [vmem:[#allocation7 + $0xac0] sm:$0xff]
    %v525 = vld [vmem:[#allocation7 + $0xac8] sm:$0xff]
    %v526 = vld [vmem:[#allocation7 + $0xad0] sm:$0xff]
    %v527 = vld [vmem:[#allocation7 + $0xad8] sm:$0xff]
    %v528 = vld [vmem:[#allocation7 + $0xae0] sm:$0xff]
    %v529 = vld [vmem:[#allocation7 + $0xae8] sm:$0xff]
    %v530 = vld [vmem:[#allocation7 + $0xaf0] sm:$0xff]
    %v531 = vld [vmem:[#allocation7 + $0xaf8] sm:$0xff]
    %v532 = vld [vmem:[#allocation7 + $0xb00] sm:$0xff]
    %v533 = vld [vmem:[#allocation7 + $0xb08] sm:$0xff]
    %v534 = vld [vmem:[#allocation7 + $0xb10] sm:$0xff]
    %v535 = vld [vmem:[#allocation7 + $0xb18] sm:$0xff]
    %v536 = vld [vmem:[#allocation7 + $0xb20] sm:$0xff]
    %v537 = vld [vmem:[#allocation7 + $0xb28] sm:$0xff]
    %v538 = vld [vmem:[#allocation7 + $0xb30] sm:$0xff]
    %v539 = vld [vmem:[#allocation7 + $0xb38] sm:$0xff]
    %v540 = vld [vmem:[#allocation7 + $0xb40] sm:$0xff]
    %v541 = vld [vmem:[#allocation7 + $0xb48] sm:$0xff]
    %v542 = vld [vmem:[#allocation7 + $0xb50] sm:$0xff]
    %v543 = vld [vmem:[#allocation7 + $0xb58] sm:$0xff]
    %v544 = vld [vmem:[#allocation7 + $0xb60] sm:$0xff]
    %v545 = vld [vmem:[#allocation7 + $0xb68] sm:$0xff]
    %v546 = vld [vmem:[#allocation7 + $0xb70] sm:$0xff]
    %v547 = vld [vmem:[#allocation7 + $0xb78] sm:$0xff]
    %v548 = vld [vmem:[#allocation7 + $0xb80] sm:$0xff]
    %v549 = vld [vmem:[#allocation7 + $0xb88] sm:$0xff]
    %v550 = vld [vmem:[#allocation7 + $0xb90] sm:$0xff]
    %v551 = vld [vmem:[#allocation7 + $0xb98] sm:$0xff]
    %v552 = vld [vmem:[#allocation7 + $0xba0] sm:$0xff]
    %v553 = vld [vmem:[#allocation7 + $0xba8] sm:$0xff]
    %v554 = vld [vmem:[#allocation7 + $0xbb0] sm:$0xff]
    %v555 = vld [vmem:[#allocation7 + $0xbb8] sm:$0xff]
    %v556 = vld [vmem:[#allocation7 + $0xbc0] sm:$0xff]
    %v557 = vld [vmem:[#allocation7 + $0xbc8] sm:$0xff]
    %v558 = vld [vmem:[#allocation7 + $0xbd0] sm:$0xff]
    %v559 = vld [vmem:[#allocation7 + $0xbd8] sm:$0xff]
    %v560 = vld [vmem:[#allocation7 + $0xbe0] sm:$0xff]
    %v561 = vld [vmem:[#allocation7 + $0xbe8] sm:$0xff]
    %v562 = vld [vmem:[#allocation7 + $0xbf0] sm:$0xff]
    %v563 = vld [vmem:[#allocation7 + $0xbf8] sm:$0xff]
    %v564 = vld [vmem:[#allocation8] sm:$0xff]
    %v566 = vlaneseq
    %v567 = vshrl.u32 %v566, 7
    %v568 = vsub.s32 0, %v567
    %v569 = vrot.slane %v564, %v568
    %v570 = vlaneseq
    %v571 = vshrl.u32 %v570, 7
    %v572 = vsub.s32 1, %v571
    %v573 = vrot.slane %v564, %v572
    %v574 = vlaneseq
    %v575 = vshrl.u32 %v574, 7
    %v576 = vsub.s32 2, %v575
    %v577 = vrot.slane %v564, %v576
    %v578 = vlaneseq
    %v579 = vshrl.u32 %v578, 7
    %v580 = vsub.s32 3, %v579
    %v581 = vrot.slane %v564, %v580
    %v582 = vlaneseq
    %v583 = vshrl.u32 %v582, 7
    %v584 = vsub.s32 4, %v583
    %v585 = vrot.slane %v564, %v584
    %v586 = vlaneseq
    %v587 = vshrl.u32 %v586, 7
    %v588 = vsub.s32 5, %v587
    %v589 = vrot.slane %v564, %v588
    %v590 = vlaneseq
    %v591 = vshrl.u32 %v590, 7
    %v592 = vsub.s32 6, %v591
    %v593 = vrot.slane %v564, %v592
    %v594 = vlaneseq
    %v595 = vshrl.u32 %v594, 7
    %v596 = vsub.s32 7, %v595
    %v597 = vrot.slane %v564, %v596
    %v607 = vcombine.high %v179, %v179
    %v609 = vunpack.c.l.s4 1966171168
    %v610 = vunpack.c.0.s8 %v609
    %v611 = vlaneseq
    %v612 = vshrl.u32 %v611, 7
    %v613 = vsub.s32 %v610, %v612
    %v614 = vrot.slane %v179, %v613
    %v616 = vunpack.c.l.s4 1966171168
    %v617 = vunpack.c.0.s8 %v616
    %v618 = vlaneseq
    %v619 = vshrl.u32 %v618, 7
    %v620 = vsub.s32 %v617, %v619
    %v621 = vrot.slane %v607, %v620
    %v622 = vcombine.high %v614, %v614
    %v623 = vcombine.high %v621, %v621
    %v625 = vunpack.c.l.s4 1966171168
    %v626 = vunpack.c.0.s8 %v625
    %v627 = vlaneseq
    %v628 = vshrl.u32 %v627, 7
    %v629 = vsub.s32 %v626, %v628
    %v630 = vrot.slane %v614, %v629
    %v632 = vunpack.c.l.s4 1966171168
    %v633 = vunpack.c.0.s8 %v632
    %v634 = vlaneseq
    %v635 = vshrl.u32 %v634, 7
    %v636 = vsub.s32 %v633, %v635
    %v637 = vrot.slane %v621, %v636
    %v639 = vunpack.c.l.s4 1966171168
    %v640 = vunpack.c.0.s8 %v639
    %v641 = vlaneseq
    %v642 = vshrl.u32 %v641, 7
    %v643 = vsub.s32 %v640, %v642
    %v644 = vrot.slane %v622, %v643
    %v646 = vunpack.c.l.s4 1966171168
    %v647 = vunpack.c.0.s8 %v646
    %v648 = vlaneseq
    %v649 = vshrl.u32 %v648, 7
    %v650 = vsub.s32 %v647, %v649
    %v651 = vrot.slane %v623, %v650
    %v652 = vcombine.high %v630, %v630
    %v653 = vcombine.high %v644, %v644
    %v1044 = vunpack.c.l.b16 %v180
    %v1045 = vunpack.c.h.b16 %v180
    %v1046 = vunpack.c.l.b16 %v181
    %v1047 = vunpack.c.h.b16 %v181
    %v1048 = vunpack.c.l.b16 %v182
    %v1049 = vunpack.c.h.b16 %v182
    %v1050 = vunpack.c.l.b16 %v183
    %v1051 = vunpack.c.h.b16 %v183
    %v1052 = vunpack.c.l.b16 %v184
    %v1053 = vunpack.c.h.b16 %v184
    %v1054 = vunpack.c.l.b16 %v185
    %v1055 = vunpack.c.h.b16 %v185
    %v1056 = vunpack.c.l.b16 %v186
    %v1057 = vunpack.c.h.b16 %v186
    %v1058 = vunpack.c.l.b16 %v187
    %v1059 = vunpack.c.h.b16 %v187
    %v1060 = vunpack.c.l.b16 %v188
    %v1061 = vunpack.c.h.b16 %v188
    %v1062 = vunpack.c.l.b16 %v189
    %v1063 = vunpack.c.h.b16 %v189
    %v1064 = vunpack.c.l.b16 %v190
    %v1065 = vunpack.c.h.b16 %v190
    %v1066 = vunpack.c.l.b16 %v191
    %v1067 = vunpack.c.h.b16 %v191
    %v1068 = vunpack.c.l.b16 %v192
    %v1069 = vunpack.c.h.b16 %v192
    %v1070 = vunpack.c.l.b16 %v193
    %v1071 = vunpack.c.h.b16 %v193
    %v1072 = vunpack.c.l.b16 %v194
    %v1073 = vunpack.c.h.b16 %v194
    %v1074 = vunpack.c.l.b16 %v195
    %v1075 = vunpack.c.h.b16 %v195
    %v1076 = vunpack.c.l.b16 %v196
    %v1077 = vunpack.c.h.b16 %v196
    %v1078 = vunpack.c.l.b16 %v197
    %v1079 = vunpack.c.h.b16 %v197
    %v1080 = vunpack.c.l.b16 %v198
    %v1081 = vunpack.c.h.b16 %v198
    %v1082 = vunpack.c.l.b16 %v199
    %v1083 = vunpack.c.h.b16 %v199
    %v1084 = vunpack.c.l.b16 %v200
    %v1085 = vunpack.c.h.b16 %v200
    %v1086 = vunpack.c.l.b16 %v201
    %v1087 = vunpack.c.h.b16 %v201
    %v1088 = vunpack.c.l.b16 %v202
    %v1089 = vunpack.c.h.b16 %v202
    %v1090 = vunpack.c.l.b16 %v203
    %v1091 = vunpack.c.h.b16 %v203
    %v1092 = vunpack.c.l.b16 %v204
    %v1093 = vunpack.c.h.b16 %v204
    %v1094 = vunpack.c.l.b16 %v205
    %v1095 = vunpack.c.h.b16 %v205
    %v1096 = vunpack.c.l.b16 %v206
    %v1097 = vunpack.c.h.b16 %v206
    %v1098 = vunpack.c.l.b16 %v207
    %v1099 = vunpack.c.h.b16 %v207
    %v1100 = vunpack.c.l.b16 %v208
    %v1101 = vunpack.c.h.b16 %v208
    %v1102 = vunpack.c.l.b16 %v209
    %v1103 = vunpack.c.h.b16 %v209
    %v1104 = vunpack.c.l.b16 %v210
    %v1105 = vunpack.c.h.b16 %v210
    %v1106 = vunpack.c.l.b16 %v211
    %v1107 = vunpack.c.h.b16 %v211
    %v1108 = vunpack.c.l.b16 %v212
    %v1109 = vunpack.c.h.b16 %v212
    %v1110 = vunpack.c.l.b16 %v213
    %v1111 = vunpack.c.h.b16 %v213
    %v1112 = vunpack.c.l.b16 %v214
    %v1113 = vunpack.c.h.b16 %v214
    %v1114 = vunpack.c.l.b16 %v215
    %v1115 = vunpack.c.h.b16 %v215
    %v1116 = vunpack.c.l.b16 %v216
    %v1117 = vunpack.c.h.b16 %v216
    %v1118 = vunpack.c.l.b16 %v217
    %v1119 = vunpack.c.h.b16 %v217
    %v1120 = vunpack.c.l.b16 %v218
    %v1121 = vunpack.c.h.b16 %v218
    %v1122 = vunpack.c.l.b16 %v219
    %v1123 = vunpack.c.h.b16 %v219
    %v1124 = vunpack.c.l.b16 %v220
    %v1125 = vunpack.c.h.b16 %v220
    %v1126 = vunpack.c.l.b16 %v221
    %v1127 = vunpack.c.h.b16 %v221
    %v1128 = vunpack.c.l.b16 %v222
    %v1129 = vunpack.c.h.b16 %v222
    %v1130 = vunpack.c.l.b16 %v223
    %v1131 = vunpack.c.h.b16 %v223
    %v1132 = vunpack.c.l.b16 %v224
    %v1133 = vunpack.c.h.b16 %v224
    %v1134 = vunpack.c.l.b16 %v225
    %v1135 = vunpack.c.h.b16 %v225
    %v1136 = vunpack.c.l.b16 %v226
    %v1137 = vunpack.c.h.b16 %v226
    %v1138 = vunpack.c.l.b16 %v227
    %v1139 = vunpack.c.h.b16 %v227
    %v1140 = vunpack.c.l.b16 %v228
    %v1141 = vunpack.c.h.b16 %v228
    %v1142 = vunpack.c.l.b16 %v229
    %v1143 = vunpack.c.h.b16 %v229
    %v1144 = vunpack.c.l.b16 %v230
    %v1145 = vunpack.c.h.b16 %v230
    %v1146 = vunpack.c.l.b16 %v231
    %v1147 = vunpack.c.h.b16 %v231
    %v1148 = vunpack.c.l.b16 %v232
    %v1149 = vunpack.c.h.b16 %v232
    %v1150 = vunpack.c.l.b16 %v233
    %v1151 = vunpack.c.h.b16 %v233
    %v1152 = vunpack.c.l.b16 %v234
    %v1153 = vunpack.c.h.b16 %v234
    %v1154 = vunpack.c.l.b16 %v235
    %v1155 = vunpack.c.h.b16 %v235
    %v1156 = vunpack.c.l.b16 %v236
    %v1157 = vunpack.c.h.b16 %v236
    %v1158 = vunpack.c.l.b16 %v237
    %v1159 = vunpack.c.h.b16 %v237
    %v1160 = vunpack.c.l.b16 %v238
    %v1161 = vunpack.c.h.b16 %v238
    %v1162 = vunpack.c.l.b16 %v239
    %v1163 = vunpack.c.h.b16 %v239
    %v1164 = vunpack.c.l.b16 %v240
    %v1165 = vunpack.c.h.b16 %v240
    %v1166 = vunpack.c.l.b16 %v241
    %v1167 = vunpack.c.h.b16 %v241
    %v1168 = vunpack.c.l.b16 %v242
    %v1169 = vunpack.c.h.b16 %v242
    %v1170 = vunpack.c.l.b16 %v243
    %v1171 = vunpack.c.h.b16 %v243
    %v1172 = vunpack.c.l.b16 %v244
    %v1173 = vunpack.c.h.b16 %v244
    %v1174 = vunpack.c.l.b16 %v245
    %v1175 = vunpack.c.h.b16 %v245
    %v1176 = vunpack.c.l.b16 %v246
    %v1177 = vunpack.c.h.b16 %v246
    %v1178 = vunpack.c.l.b16 %v247
    %v1179 = vunpack.c.h.b16 %v247
    %v1180 = vunpack.c.l.b16 %v248
    %v1181 = vunpack.c.h.b16 %v248
    %v1182 = vunpack.c.l.b16 %v249
    %v1183 = vunpack.c.h.b16 %v249
    %v1184 = vunpack.c.l.b16 %v250
    %v1185 = vunpack.c.h.b16 %v250
    %v1186 = vunpack.c.l.b16 %v251
    %v1187 = vunpack.c.h.b16 %v251
    %v1188 = vunpack.c.l.b16 %v252
    %v1189 = vunpack.c.h.b16 %v252
    %v1190 = vunpack.c.l.b16 %v253
    %v1191 = vunpack.c.h.b16 %v253
    %v1192 = vunpack.c.l.b16 %v254
    %v1193 = vunpack.c.h.b16 %v254
    %v1194 = vunpack.c.l.b16 %v255
    %v1195 = vunpack.c.h.b16 %v255
    %v1196 = vunpack.c.l.b16 %v256
    %v1197 = vunpack.c.h.b16 %v256
    %v1198 = vunpack.c.l.b16 %v257
    %v1199 = vunpack.c.h.b16 %v257
    %v1200 = vunpack.c.l.b16 %v258
    %v1201 = vunpack.c.h.b16 %v258
    %v1202 = vunpack.c.l.b16 %v259
    %v1203 = vunpack.c.h.b16 %v259
    %v1204 = vunpack.c.l.b16 %v260
    %v1205 = vunpack.c.h.b16 %v260
    %v1206 = vunpack.c.l.b16 %v261
    %v1207 = vunpack.c.h.b16 %v261
    %v1208 = vunpack.c.l.b16 %v262
    %v1209 = vunpack.c.h.b16 %v262
    %v1210 = vunpack.c.l.b16 %v263
    %v1211 = vunpack.c.h.b16 %v263
    %v1212 = vunpack.c.l.b16 %v264
    %v1213 = vunpack.c.h.b16 %v264
    %v1214 = vunpack.c.l.b16 %v265
    %v1215 = vunpack.c.h.b16 %v265
    %v1216 = vunpack.c.l.b16 %v266
    %v1217 = vunpack.c.h.b16 %v266
    %v1218 = vunpack.c.l.b16 %v267
    %v1219 = vunpack.c.h.b16 %v267
    %v1220 = vunpack.c.l.b16 %v268
    %v1221 = vunpack.c.h.b16 %v268
    %v1222 = vunpack.c.l.b16 %v269
    %v1223 = vunpack.c.h.b16 %v269
    %v1224 = vunpack.c.l.b16 %v270
    %v1225 = vunpack.c.h.b16 %v270
    %v1226 = vunpack.c.l.b16 %v271
    %v1227 = vunpack.c.h.b16 %v271
    %v1228 = vunpack.c.l.b16 %v272
    %v1229 = vunpack.c.h.b16 %v272
    %v1230 = vunpack.c.l.b16 %v273
    %v1231 = vunpack.c.h.b16 %v273
    %v1232 = vunpack.c.l.b16 %v274
    %v1233 = vunpack.c.h.b16 %v274
    %v1234 = vunpack.c.l.b16 %v275
    %v1235 = vunpack.c.h.b16 %v275
    %v1236 = vunpack.c.l.b16 %v276
    %v1237 = vunpack.c.h.b16 %v276
    %v1238 = vunpack.c.l.b16 %v277
    %v1239 = vunpack.c.h.b16 %v277
    %v1240 = vunpack.c.l.b16 %v278
    %v1241 = vunpack.c.h.b16 %v278
    %v1242 = vunpack.c.l.b16 %v279
    %v1243 = vunpack.c.h.b16 %v279
    %v1244 = vunpack.c.l.b16 %v280
    %v1245 = vunpack.c.h.b16 %v280
    %v1246 = vunpack.c.l.b16 %v281
    %v1247 = vunpack.c.h.b16 %v281
    %v1248 = vunpack.c.l.b16 %v282
    %v1249 = vunpack.c.h.b16 %v282
    %v1250 = vunpack.c.l.b16 %v283
    %v1251 = vunpack.c.h.b16 %v283
    %v1252 = vunpack.c.l.b16 %v284
    %v1253 = vunpack.c.h.b16 %v284
    %v1254 = vunpack.c.l.b16 %v285
    %v1255 = vunpack.c.h.b16 %v285
    %v1256 = vunpack.c.l.b16 %v286
    %v1257 = vunpack.c.h.b16 %v286
    %v1258 = vunpack.c.l.b16 %v287
    %v1259 = vunpack.c.h.b16 %v287
    %v1260 = vunpack.c.l.b16 %v288
    %v1261 = vunpack.c.h.b16 %v288
    %v1262 = vunpack.c.l.b16 %v289
    %v1263 = vunpack.c.h.b16 %v289
    %v1264 = vunpack.c.l.b16 %v290
    %v1265 = vunpack.c.h.b16 %v290
    %v1266 = vunpack.c.l.b16 %v291
    %v1267 = vunpack.c.h.b16 %v291
    %v1268 = vunpack.c.l.b16 %v292
    %v1269 = vunpack.c.h.b16 %v292
    %v1270 = vunpack.c.l.b16 %v293
    %v1271 = vunpack.c.h.b16 %v293
    %v1272 = vunpack.c.l.b16 %v294
    %v1273 = vunpack.c.h.b16 %v294
    %v1274 = vunpack.c.l.b16 %v295
    %v1275 = vunpack.c.h.b16 %v295
    %v1276 = vunpack.c.l.b16 %v296
    %v1277 = vunpack.c.h.b16 %v296
    %v1278 = vunpack.c.l.b16 %v297
    %v1279 = vunpack.c.h.b16 %v297
    %v1280 = vunpack.c.l.b16 %v298
    %v1281 = vunpack.c.h.b16 %v298
    %v1282 = vunpack.c.l.b16 %v299
    %v1283 = vunpack.c.h.b16 %v299
    %v1284 = vunpack.c.l.b16 %v300
    %v1285 = vunpack.c.h.b16 %v300
    %v1286 = vunpack.c.l.b16 %v301
    %v1287 = vunpack.c.h.b16 %v301
    %v1288 = vunpack.c.l.b16 %v302
    %v1289 = vunpack.c.h.b16 %v302
    %v1290 = vunpack.c.l.b16 %v303
    %v1291 = vunpack.c.h.b16 %v303
    %v1292 = vunpack.c.l.b16 %v304
    %v1293 = vunpack.c.h.b16 %v304
    %v1294 = vunpack.c.l.b16 %v305
    %v1295 = vunpack.c.h.b16 %v305
    %v1296 = vunpack.c.l.b16 %v306
    %v1297 = vunpack.c.h.b16 %v306
    %v1298 = vunpack.c.l.b16 %v307
    %v1299 = vunpack.c.h.b16 %v307
    %v1300 = vunpack.c.l.b16 %v308
    %v1301 = vunpack.c.h.b16 %v308
    %v1302 = vunpack.c.l.b16 %v309
    %v1303 = vunpack.c.h.b16 %v309
    %v1304 = vunpack.c.l.b16 %v310
    %v1305 = vunpack.c.h.b16 %v310
    %v1306 = vunpack.c.l.b16 %v311
    %v1307 = vunpack.c.h.b16 %v311
    %v1308 = vunpack.c.l.b16 %v312
    %v1309 = vunpack.c.h.b16 %v312
    %v1310 = vunpack.c.l.b16 %v313
    %v1311 = vunpack.c.h.b16 %v313
    %v1312 = vunpack.c.l.b16 %v314
    %v1313 = vunpack.c.h.b16 %v314
    %v1314 = vunpack.c.l.b16 %v315
    %v1315 = vunpack.c.h.b16 %v315
    %v1316 = vunpack.c.l.b16 %v316
    %v1317 = vunpack.c.h.b16 %v316
    %v1318 = vunpack.c.l.b16 %v317
    %v1319 = vunpack.c.h.b16 %v317
    %v1320 = vunpack.c.l.b16 %v318
    %v1321 = vunpack.c.h.b16 %v318
    %v1322 = vunpack.c.l.b16 %v319
    %v1323 = vunpack.c.h.b16 %v319
    %v1324 = vunpack.c.l.b16 %v320
    %v1325 = vunpack.c.h.b16 %v320
    %v1326 = vunpack.c.l.b16 %v321
    %v1327 = vunpack.c.h.b16 %v321
    %v1328 = vunpack.c.l.b16 %v322
    %v1329 = vunpack.c.h.b16 %v322
    %v1330 = vunpack.c.l.b16 %v323
    %v1331 = vunpack.c.h.b16 %v323
    %v1332 = vunpack.c.l.b16 %v324
    %v1333 = vunpack.c.h.b16 %v324
    %v1334 = vunpack.c.l.b16 %v325
    %v1335 = vunpack.c.h.b16 %v325
    %v1336 = vunpack.c.l.b16 %v326
    %v1337 = vunpack.c.h.b16 %v326
    %v1338 = vunpack.c.l.b16 %v327
    %v1339 = vunpack.c.h.b16 %v327
    %v1340 = vunpack.c.l.b16 %v328
    %v1341 = vunpack.c.h.b16 %v328
    %v1342 = vunpack.c.l.b16 %v329
    %v1343 = vunpack.c.h.b16 %v329
    %v1344 = vunpack.c.l.b16 %v330
    %v1345 = vunpack.c.h.b16 %v330
    %v1346 = vunpack.c.l.b16 %v331
    %v1347 = vunpack.c.h.b16 %v331
    %v1348 = vunpack.c.l.b16 %v332
    %v1349 = vunpack.c.h.b16 %v332
    %v1350 = vunpack.c.l.b16 %v333
    %v1351 = vunpack.c.h.b16 %v333
    %v1352 = vunpack.c.l.b16 %v334
    %v1353 = vunpack.c.h.b16 %v334
    %v1354 = vunpack.c.l.b16 %v335
    %v1355 = vunpack.c.h.b16 %v335
    %v1356 = vunpack.c.l.b16 %v336
    %v1357 = vunpack.c.h.b16 %v336
    %v1358 = vunpack.c.l.b16 %v337
    %v1359 = vunpack.c.h.b16 %v337
    %v1360 = vunpack.c.l.b16 %v338
    %v1361 = vunpack.c.h.b16 %v338
    %v1362 = vunpack.c.l.b16 %v339
    %v1363 = vunpack.c.h.b16 %v339
    %v1364 = vunpack.c.l.b16 %v340
    %v1365 = vunpack.c.h.b16 %v340
    %v1366 = vunpack.c.l.b16 %v341
    %v1367 = vunpack.c.h.b16 %v341
    %v1368 = vunpack.c.l.b16 %v342
    %v1369 = vunpack.c.h.b16 %v342
    %v1370 = vunpack.c.l.b16 %v343
    %v1371 = vunpack.c.h.b16 %v343
    %v1372 = vunpack.c.l.b16 %v344
    %v1373 = vunpack.c.h.b16 %v344
    %v1374 = vunpack.c.l.b16 %v345
    %v1375 = vunpack.c.h.b16 %v345
    %v1376 = vunpack.c.l.b16 %v346
    %v1377 = vunpack.c.h.b16 %v346
    %v1378 = vunpack.c.l.b16 %v347
    %v1379 = vunpack.c.h.b16 %v347
    %v1380 = vunpack.c.l.b16 %v348
    %v1381 = vunpack.c.h.b16 %v348
    %v1382 = vunpack.c.l.b16 %v349
    %v1383 = vunpack.c.h.b16 %v349
    %v1384 = vunpack.c.l.b16 %v350
    %v1385 = vunpack.c.h.b16 %v350
    %v1386 = vunpack.c.l.b16 %v351
    %v1387 = vunpack.c.h.b16 %v351
    %v1388 = vunpack.c.l.b16 %v352
    %v1389 = vunpack.c.h.b16 %v352
    %v1390 = vunpack.c.l.b16 %v353
    %v1391 = vunpack.c.h.b16 %v353
    %v1392 = vunpack.c.l.b16 %v354
    %v1393 = vunpack.c.h.b16 %v354
    %v1394 = vunpack.c.l.b16 %v355
    %v1395 = vunpack.c.h.b16 %v355
    %v1396 = vunpack.c.l.b16 %v356
    %v1397 = vunpack.c.h.b16 %v356
    %v1398 = vunpack.c.l.b16 %v357
    %v1399 = vunpack.c.h.b16 %v357
    %v1400 = vunpack.c.l.b16 %v358
    %v1401 = vunpack.c.h.b16 %v358
    %v1402 = vunpack.c.l.b16 %v359
    %v1403 = vunpack.c.h.b16 %v359
    %v1404 = vunpack.c.l.b16 %v360
    %v1405 = vunpack.c.h.b16 %v360
    %v1406 = vunpack.c.l.b16 %v361
    %v1407 = vunpack.c.h.b16 %v361
    %v1408 = vunpack.c.l.b16 %v362
    %v1409 = vunpack.c.h.b16 %v362
    %v1410 = vunpack.c.l.b16 %v363
    %v1411 = vunpack.c.h.b16 %v363
    %v1412 = vunpack.c.l.b16 %v364
    %v1413 = vunpack.c.h.b16 %v364
    %v1414 = vunpack.c.l.b16 %v365
    %v1415 = vunpack.c.h.b16 %v365
    %v1416 = vunpack.c.l.b16 %v366
    %v1417 = vunpack.c.h.b16 %v366
    %v1418 = vunpack.c.l.b16 %v367
    %v1419 = vunpack.c.h.b16 %v367
    %v1420 = vunpack.c.l.b16 %v368
    %v1421 = vunpack.c.h.b16 %v368
    %v1422 = vunpack.c.l.b16 %v369
    %v1423 = vunpack.c.h.b16 %v369
    %v1424 = vunpack.c.l.b16 %v370
    %v1425 = vunpack.c.h.b16 %v370
    %v1426 = vunpack.c.l.b16 %v371
    %v1427 = vunpack.c.h.b16 %v371
    %v1428 = vunpack.c.l.b16 %v372
    %v1429 = vunpack.c.h.b16 %v372
    %v1430 = vunpack.c.l.b16 %v373
    %v1431 = vunpack.c.h.b16 %v373
    %v1432 = vunpack.c.l.b16 %v374
    %v1433 = vunpack.c.h.b16 %v374
    %v1434 = vunpack.c.l.b16 %v375
    %v1435 = vunpack.c.h.b16 %v375
    %v1436 = vunpack.c.l.b16 %v376
    %v1437 = vunpack.c.h.b16 %v376
    %v1438 = vunpack.c.l.b16 %v377
    %v1439 = vunpack.c.h.b16 %v377
    %v1440 = vunpack.c.l.b16 %v378
    %v1441 = vunpack.c.h.b16 %v378
    %v1442 = vunpack.c.l.b16 %v379
    %v1443 = vunpack.c.h.b16 %v379
    %v1444 = vunpack.c.l.b16 %v380
    %v1445 = vunpack.c.h.b16 %v380
    %v1446 = vunpack.c.l.b16 %v381
    %v1447 = vunpack.c.h.b16 %v381
    %v1448 = vunpack.c.l.b16 %v382
    %v1449 = vunpack.c.h.b16 %v382
    %v1450 = vunpack.c.l.b16 %v383
    %v1451 = vunpack.c.h.b16 %v383
    %v1452 = vunpack.c.l.b16 %v384
    %v1453 = vunpack.c.h.b16 %v384
    %v1454 = vunpack.c.l.b16 %v385
    %v1455 = vunpack.c.h.b16 %v385
    %v1456 = vunpack.c.l.b16 %v386
    %v1457 = vunpack.c.h.b16 %v386
    %v1458 = vunpack.c.l.b16 %v387
    %v1459 = vunpack.c.h.b16 %v387
    %v1460 = vunpack.c.l.b16 %v388
    %v1461 = vunpack.c.h.b16 %v388
    %v1462 = vunpack.c.l.b16 %v389
    %v1463 = vunpack.c.h.b16 %v389
    %v1464 = vunpack.c.l.b16 %v390
    %v1465 = vunpack.c.h.b16 %v390
    %v1466 = vunpack.c.l.b16 %v391
    %v1467 = vunpack.c.h.b16 %v391
    %v1468 = vunpack.c.l.b16 %v392
    %v1469 = vunpack.c.h.b16 %v392
    %v1470 = vunpack.c.l.b16 %v393
    %v1471 = vunpack.c.h.b16 %v393
    %v1472 = vunpack.c.l.b16 %v394
    %v1473 = vunpack.c.h.b16 %v394
    %v1474 = vunpack.c.l.b16 %v395
    %v1475 = vunpack.c.h.b16 %v395
    %v1476 = vunpack.c.l.b16 %v396
    %v1477 = vunpack.c.h.b16 %v396
    %v1478 = vunpack.c.l.b16 %v397
    %v1479 = vunpack.c.h.b16 %v397
    %v1480 = vunpack.c.l.b16 %v398
    %v1481 = vunpack.c.h.b16 %v398
    %v1482 = vunpack.c.l.b16 %v399
    %v1483 = vunpack.c.h.b16 %v399
    %v1484 = vunpack.c.l.b16 %v400
    %v1485 = vunpack.c.h.b16 %v400
    %v1486 = vunpack.c.l.b16 %v401
    %v1487 = vunpack.c.h.b16 %v401
    %v1488 = vunpack.c.l.b16 %v402
    %v1489 = vunpack.c.h.b16 %v402
    %v1490 = vunpack.c.l.b16 %v403
    %v1491 = vunpack.c.h.b16 %v403
    %v1492 = vunpack.c.l.b16 %v404
    %v1493 = vunpack.c.h.b16 %v404
    %v1494 = vunpack.c.l.b16 %v405
    %v1495 = vunpack.c.h.b16 %v405
    %v1496 = vunpack.c.l.b16 %v406
    %v1497 = vunpack.c.h.b16 %v406
    %v1498 = vunpack.c.l.b16 %v407
    %v1499 = vunpack.c.h.b16 %v407
    %v1500 = vunpack.c.l.b16 %v408
    %v1501 = vunpack.c.h.b16 %v408
    %v1502 = vunpack.c.l.b16 %v409
    %v1503 = vunpack.c.h.b16 %v409
    %v1504 = vunpack.c.l.b16 %v410
    %v1505 = vunpack.c.h.b16 %v410
    %v1506 = vunpack.c.l.b16 %v411
    %v1507 = vunpack.c.h.b16 %v411
    %v1508 = vunpack.c.l.b16 %v412
    %v1509 = vunpack.c.h.b16 %v412
    %v1510 = vunpack.c.l.b16 %v413
    %v1511 = vunpack.c.h.b16 %v413
    %v1512 = vunpack.c.l.b16 %v414
    %v1513 = vunpack.c.h.b16 %v414
    %v1514 = vunpack.c.l.b16 %v415
    %v1515 = vunpack.c.h.b16 %v415
    %v1516 = vunpack.c.l.b16 %v416
    %v1517 = vunpack.c.h.b16 %v416
    %v1518 = vunpack.c.l.b16 %v417
    %v1519 = vunpack.c.h.b16 %v417
    %v1520 = vunpack.c.l.b16 %v418
    %v1521 = vunpack.c.h.b16 %v418
    %v1522 = vunpack.c.l.b16 %v419
    %v1523 = vunpack.c.h.b16 %v419
    %v1524 = vunpack.c.l.b16 %v420
    %v1525 = vunpack.c.h.b16 %v420
    %v1526 = vunpack.c.l.b16 %v421
    %v1527 = vunpack.c.h.b16 %v421
    %v1528 = vunpack.c.l.b16 %v422
    %v1529 = vunpack.c.h.b16 %v422
    %v1530 = vunpack.c.l.b16 %v423
    %v1531 = vunpack.c.h.b16 %v423
    %v1532 = vunpack.c.l.b16 %v424
    %v1533 = vunpack.c.h.b16 %v424
    %v1534 = vunpack.c.l.b16 %v425
    %v1535 = vunpack.c.h.b16 %v425
    %v1536 = vunpack.c.l.b16 %v426
    %v1537 = vunpack.c.h.b16 %v426
    %v1538 = vunpack.c.l.b16 %v427
    %v1539 = vunpack.c.h.b16 %v427
    %v1540 = vunpack.c.l.b16 %v428
    %v1541 = vunpack.c.h.b16 %v428
    %v1542 = vunpack.c.l.b16 %v429
    %v1543 = vunpack.c.h.b16 %v429
    %v1544 = vunpack.c.l.b16 %v430
    %v1545 = vunpack.c.h.b16 %v430
    %v1546 = vunpack.c.l.b16 %v431
    %v1547 = vunpack.c.h.b16 %v431
    %v1548 = vunpack.c.l.b16 %v432
    %v1549 = vunpack.c.h.b16 %v432
    %v1550 = vunpack.c.l.b16 %v433
    %v1551 = vunpack.c.h.b16 %v433
    %v1552 = vunpack.c.l.b16 %v434
    %v1553 = vunpack.c.h.b16 %v434
    %v1554 = vunpack.c.l.b16 %v435
    %v1555 = vunpack.c.h.b16 %v435
    %v1556 = vunpack.c.l.b16 %v436
    %v1557 = vunpack.c.h.b16 %v436
    %v1558 = vunpack.c.l.b16 %v437
    %v1559 = vunpack.c.h.b16 %v437
    %v1560 = vunpack.c.l.b16 %v438
    %v1561 = vunpack.c.h.b16 %v438
    %v1562 = vunpack.c.l.b16 %v439
    %v1563 = vunpack.c.h.b16 %v439
    %v1564 = vunpack.c.l.b16 %v440
    %v1565 = vunpack.c.h.b16 %v440
    %v1566 = vunpack.c.l.b16 %v441
    %v1567 = vunpack.c.h.b16 %v441
    %v1568 = vunpack.c.l.b16 %v442
    %v1569 = vunpack.c.h.b16 %v442
    %v1570 = vunpack.c.l.b16 %v443
    %v1571 = vunpack.c.h.b16 %v443
    %v1572 = vunpack.c.l.b16 %v444
    %v1573 = vunpack.c.h.b16 %v444
    %v1574 = vunpack.c.l.b16 %v445
    %v1575 = vunpack.c.h.b16 %v445
    %v1576 = vunpack.c.l.b16 %v446
    %v1577 = vunpack.c.h.b16 %v446
    %v1578 = vunpack.c.l.b16 %v447
    %v1579 = vunpack.c.h.b16 %v447
    %v1580 = vunpack.c.l.b16 %v448
    %v1581 = vunpack.c.h.b16 %v448
    %v1582 = vunpack.c.l.b16 %v449
    %v1583 = vunpack.c.h.b16 %v449
    %v1584 = vunpack.c.l.b16 %v450
    %v1585 = vunpack.c.h.b16 %v450
    %v1586 = vunpack.c.l.b16 %v451
    %v1587 = vunpack.c.h.b16 %v451
    %v1588 = vunpack.c.l.b16 %v452
    %v1589 = vunpack.c.h.b16 %v452
    %v1590 = vunpack.c.l.b16 %v453
    %v1591 = vunpack.c.h.b16 %v453
    %v1592 = vunpack.c.l.b16 %v454
    %v1593 = vunpack.c.h.b16 %v454
    %v1594 = vunpack.c.l.b16 %v455
    %v1595 = vunpack.c.h.b16 %v455
    %v1596 = vunpack.c.l.b16 %v456
    %v1597 = vunpack.c.h.b16 %v456
    %v1598 = vunpack.c.l.b16 %v457
    %v1599 = vunpack.c.h.b16 %v457
    %v1600 = vunpack.c.l.b16 %v458
    %v1601 = vunpack.c.h.b16 %v458
    %v1602 = vunpack.c.l.b16 %v459
    %v1603 = vunpack.c.h.b16 %v459
    %v1604 = vunpack.c.l.b16 %v460
    %v1605 = vunpack.c.h.b16 %v460
    %v1606 = vunpack.c.l.b16 %v461
    %v1607 = vunpack.c.h.b16 %v461
    %v1608 = vunpack.c.l.b16 %v462
    %v1609 = vunpack.c.h.b16 %v462
    %v1610 = vunpack.c.l.b16 %v463
    %v1611 = vunpack.c.h.b16 %v463
    %v1612 = vunpack.c.l.b16 %v464
    %v1613 = vunpack.c.h.b16 %v464
    %v1614 = vunpack.c.l.b16 %v465
    %v1615 = vunpack.c.h.b16 %v465
    %v1616 = vunpack.c.l.b16 %v466
    %v1617 = vunpack.c.h.b16 %v466
    %v1618 = vunpack.c.l.b16 %v467
    %v1619 = vunpack.c.h.b16 %v467
    %v1620 = vunpack.c.l.b16 %v468
    %v1621 = vunpack.c.h.b16 %v468
    %v1622 = vunpack.c.l.b16 %v469
    %v1623 = vunpack.c.h.b16 %v469
    %v1624 = vunpack.c.l.b16 %v470
    %v1625 = vunpack.c.h.b16 %v470
    %v1626 = vunpack.c.l.b16 %v471
    %v1627 = vunpack.c.h.b16 %v471
    %v1628 = vunpack.c.l.b16 %v472
    %v1629 = vunpack.c.h.b16 %v472
    %v1630 = vunpack.c.l.b16 %v473
    %v1631 = vunpack.c.h.b16 %v473
    %v1632 = vunpack.c.l.b16 %v474
    %v1633 = vunpack.c.h.b16 %v474
    %v1634 = vunpack.c.l.b16 %v475
    %v1635 = vunpack.c.h.b16 %v475
    %v1636 = vunpack.c.l.b16 %v476
    %v1637 = vunpack.c.h.b16 %v476
    %v1638 = vunpack.c.l.b16 %v477
    %v1639 = vunpack.c.h.b16 %v477
    %v1640 = vunpack.c.l.b16 %v478
    %v1641 = vunpack.c.h.b16 %v478
    %v1642 = vunpack.c.l.b16 %v479
    %v1643 = vunpack.c.h.b16 %v479
    %v1644 = vunpack.c.l.b16 %v480
    %v1645 = vunpack.c.h.b16 %v480
    %v1646 = vunpack.c.l.b16 %v481
    %v1647 = vunpack.c.h.b16 %v481
    %v1648 = vunpack.c.l.b16 %v482
    %v1649 = vunpack.c.h.b16 %v482
    %v1650 = vunpack.c.l.b16 %v483
    %v1651 = vunpack.c.h.b16 %v483
    %v1652 = vunpack.c.l.b16 %v484
    %v1653 = vunpack.c.h.b16 %v484
    %v1654 = vunpack.c.l.b16 %v485
    %v1655 = vunpack.c.h.b16 %v485
    %v1656 = vunpack.c.l.b16 %v486
    %v1657 = vunpack.c.h.b16 %v486
    %v1658 = vunpack.c.l.b16 %v487
    %v1659 = vunpack.c.h.b16 %v487
    %v1660 = vunpack.c.l.b16 %v488
    %v1661 = vunpack.c.h.b16 %v488
    %v1662 = vunpack.c.l.b16 %v489
    %v1663 = vunpack.c.h.b16 %v489
    %v1664 = vunpack.c.l.b16 %v490
    %v1665 = vunpack.c.h.b16 %v490
    %v1666 = vunpack.c.l.b16 %v491
    %v1667 = vunpack.c.h.b16 %v491
    %v1668 = vunpack.c.l.b16 %v492
    %v1669 = vunpack.c.h.b16 %v492
    %v1670 = vunpack.c.l.b16 %v493
    %v1671 = vunpack.c.h.b16 %v493
    %v1672 = vunpack.c.l.b16 %v494
    %v1673 = vunpack.c.h.b16 %v494
    %v1674 = vunpack.c.l.b16 %v495
    %v1675 = vunpack.c.h.b16 %v495
    %v1676 = vunpack.c.l.b16 %v496
    %v1677 = vunpack.c.h.b16 %v496
    %v1678 = vunpack.c.l.b16 %v497
    %v1679 = vunpack.c.h.b16 %v497
    %v1680 = vunpack.c.l.b16 %v498
    %v1681 = vunpack.c.h.b16 %v498
    %v1682 = vunpack.c.l.b16 %v499
    %v1683 = vunpack.c.h.b16 %v499
    %v1684 = vunpack.c.l.b16 %v500
    %v1685 = vunpack.c.h.b16 %v500
    %v1686 = vunpack.c.l.b16 %v501
    %v1687 = vunpack.c.h.b16 %v501
    %v1688 = vunpack.c.l.b16 %v502
    %v1689 = vunpack.c.h.b16 %v502
    %v1690 = vunpack.c.l.b16 %v503
    %v1691 = vunpack.c.h.b16 %v503
    %v1692 = vunpack.c.l.b16 %v504
    %v1693 = vunpack.c.h.b16 %v504
    %v1694 = vunpack.c.l.b16 %v505
    %v1695 = vunpack.c.h.b16 %v505
    %v1696 = vunpack.c.l.b16 %v506
    %v1697 = vunpack.c.h.b16 %v506
    %v1698 = vunpack.c.l.b16 %v507
    %v1699 = vunpack.c.h.b16 %v507
    %v1700 = vunpack.c.l.b16 %v508
    %v1701 = vunpack.c.h.b16 %v508
    %v1702 = vunpack.c.l.b16 %v509
    %v1703 = vunpack.c.h.b16 %v509
    %v1704 = vunpack.c.l.b16 %v510
    %v1705 = vunpack.c.h.b16 %v510
    %v1706 = vunpack.c.l.b16 %v511
    %v1707 = vunpack.c.h.b16 %v511
    %v1708 = vunpack.c.l.b16 %v512
    %v1709 = vunpack.c.h.b16 %v512
    %v1710 = vunpack.c.l.b16 %v513
    %v1711 = vunpack.c.h.b16 %v513
    %v1712 = vunpack.c.l.b16 %v514
    %v1713 = vunpack.c.h.b16 %v514
    %v1714 = vunpack.c.l.b16 %v515
    %v1715 = vunpack.c.h.b16 %v515
    %v1716 = vunpack.c.l.b16 %v516
    %v1717 = vunpack.c.h.b16 %v516
    %v1718 = vunpack.c.l.b16 %v517
    %v1719 = vunpack.c.h.b16 %v517
    %v1720 = vunpack.c.l.b16 %v518
    %v1721 = vunpack.c.h.b16 %v518
    %v1722 = vunpack.c.l.b16 %v519
    %v1723 = vunpack.c.h.b16 %v519
    %v1724 = vunpack.c.l.b16 %v520
    %v1725 = vunpack.c.h.b16 %v520
    %v1726 = vunpack.c.l.b16 %v521
    %v1727 = vunpack.c.h.b16 %v521
    %v1728 = vunpack.c.l.b16 %v522
    %v1729 = vunpack.c.h.b16 %v522
    %v1730 = vunpack.c.l.b16 %v523
    %v1731 = vunpack.c.h.b16 %v523
    %v1732 = vunpack.c.l.b16 %v524
    %v1733 = vunpack.c.h.b16 %v524
    %v1734 = vunpack.c.l.b16 %v525
    %v1735 = vunpack.c.h.b16 %v525
    %v1736 = vunpack.c.l.b16 %v526
    %v1737 = vunpack.c.h.b16 %v526
    %v1738 = vunpack.c.l.b16 %v527
    %v1739 = vunpack.c.h.b16 %v527
    %v1740 = vunpack.c.l.b16 %v528
    %v1741 = vunpack.c.h.b16 %v528
    %v1742 = vunpack.c.l.b16 %v529
    %v1743 = vunpack.c.h.b16 %v529
    %v1744 = vunpack.c.l.b16 %v530
    %v1745 = vunpack.c.h.b16 %v530
    %v1746 = vunpack.c.l.b16 %v531
    %v1747 = vunpack.c.h.b16 %v531
    %v1748 = vunpack.c.l.b16 %v532
    %v1749 = vunpack.c.h.b16 %v532
    %v1750 = vunpack.c.l.b16 %v533
    %v1751 = vunpack.c.h.b16 %v533
    %v1752 = vunpack.c.l.b16 %v534
    %v1753 = vunpack.c.h.b16 %v534
    %v1754 = vunpack.c.l.b16 %v535
    %v1755 = vunpack.c.h.b16 %v535
    %v1756 = vunpack.c.l.b16 %v536
    %v1757 = vunpack.c.h.b16 %v536
    %v1758 = vunpack.c.l.b16 %v537
    %v1759 = vunpack.c.h.b16 %v537
    %v1760 = vunpack.c.l.b16 %v538
    %v1761 = vunpack.c.h.b16 %v538
    %v1762 = vunpack.c.l.b16 %v539
    %v1763 = vunpack.c.h.b16 %v539
    %v1764 = vunpack.c.l.b16 %v540
    %v1765 = vunpack.c.h.b16 %v540
    %v1766 = vunpack.c.l.b16 %v541
    %v1767 = vunpack.c.h.b16 %v541
    %v1768 = vunpack.c.l.b16 %v542
    %v1769 = vunpack.c.h.b16 %v542
    %v1770 = vunpack.c.l.b16 %v543
    %v1771 = vunpack.c.h.b16 %v543
    %v1772 = vunpack.c.l.b16 %v544
    %v1773 = vunpack.c.h.b16 %v544
    %v1774 = vunpack.c.l.b16 %v545
    %v1775 = vunpack.c.h.b16 %v545
    %v1776 = vunpack.c.l.b16 %v546
    %v1777 = vunpack.c.h.b16 %v546
    %v1778 = vunpack.c.l.b16 %v547
    %v1779 = vunpack.c.h.b16 %v547
    %v1780 = vunpack.c.l.b16 %v548
    %v1781 = vunpack.c.h.b16 %v548
    %v1782 = vunpack.c.l.b16 %v549
    %v1783 = vunpack.c.h.b16 %v549
    %v1784 = vunpack.c.l.b16 %v550
    %v1785 = vunpack.c.h.b16 %v550
    %v1786 = vunpack.c.l.b16 %v551
    %v1787 = vunpack.c.h.b16 %v551
    %v1788 = vunpack.c.l.b16 %v552
    %v1789 = vunpack.c.h.b16 %v552
    %v1790 = vunpack.c.l.b16 %v553
    %v1791 = vunpack.c.h.b16 %v553
    %v1792 = vunpack.c.l.b16 %v554
    %v1793 = vunpack.c.h.b16 %v554
    %v1794 = vunpack.c.l.b16 %v555
    %v1795 = vunpack.c.h.b16 %v555
    %v1796 = vunpack.c.l.b16 %v556
    %v1797 = vunpack.c.h.b16 %v556
    %v1798 = vunpack.c.l.b16 %v557
    %v1799 = vunpack.c.h.b16 %v557
    %v1800 = vunpack.c.l.b16 %v558
    %v1801 = vunpack.c.h.b16 %v558
    %v1802 = vunpack.c.l.b16 %v559
    %v1803 = vunpack.c.h.b16 %v559
    %v1804 = vunpack.c.l.b16 %v560
    %v1805 = vunpack.c.h.b16 %v560
    %v1806 = vunpack.c.l.b16 %v561
    %v1807 = vunpack.c.h.b16 %v561
    %v1808 = vunpack.c.l.b16 %v562
    %v1809 = vunpack.c.h.b16 %v562
    %v1810 = vunpack.c.l.b16 %v563
    %v1811 = vunpack.c.h.b16 %v563
    %v1812 = vpack.c.b16 %v1052, %v1044
    %v1813 = vpack.c.b16 %v1053, %v1045
    %v1814 = vpack.c.b16 %v1054, %v1046
    %v1815 = vpack.c.b16 %v1055, %v1047
    %v1816 = vpack.c.b16 %v1056, %v1048
    %v1817 = vpack.c.b16 %v1057, %v1049
    %v1818 = vpack.c.b16 %v1058, %v1050
    %v1819 = vpack.c.b16 %v1059, %v1051
    %v1820 = vpack.c.b16 %v1068, %v1060
    %v1821 = vpack.c.b16 %v1069, %v1061
    %v1822 = vpack.c.b16 %v1070, %v1062
    %v1823 = vpack.c.b16 %v1071, %v1063
    %v1824 = vpack.c.b16 %v1072, %v1064
    %v1825 = vpack.c.b16 %v1073, %v1065
    %v1826 = vpack.c.b16 %v1074, %v1066
    %v1827 = vpack.c.b16 %v1075, %v1067
    %v1828 = vpack.c.b16 %v1084, %v1076
    %v1829 = vpack.c.b16 %v1085, %v1077
    %v1830 = vpack.c.b16 %v1086, %v1078
    %v1831 = vpack.c.b16 %v1087, %v1079
    %v1832 = vpack.c.b16 %v1088, %v1080
    %v1833 = vpack.c.b16 %v1089, %v1081
    %v1834 = vpack.c.b16 %v1090, %v1082
    %v1835 = vpack.c.b16 %v1091, %v1083
    %v1836 = vpack.c.b16 %v1100, %v1092
    %v1837 = vpack.c.b16 %v1101, %v1093
    %v1838 = vpack.c.b16 %v1102, %v1094
    %v1839 = vpack.c.b16 %v1103, %v1095
    %v1840 = vpack.c.b16 %v1104, %v1096
    %v1841 = vpack.c.b16 %v1105, %v1097
    %v1842 = vpack.c.b16 %v1106, %v1098
    %v1843 = vpack.c.b16 %v1107, %v1099
    %v1844 = vpack.c.b16 %v1116, %v1108
    %v1845 = vpack.c.b16 %v1117, %v1109
    %v1846 = vpack.c.b16 %v1118, %v1110
    %v1847 = vpack.c.b16 %v1119, %v1111
    %v1848 = vpack.c.b16 %v1120, %v1112
    %v1849 = vpack.c.b16 %v1121, %v1113
    %v1850 = vpack.c.b16 %v1122, %v1114
    %v1851 = vpack.c.b16 %v1123, %v1115
    %v1852 = vpack.c.b16 %v1132, %v1124
    %v1853 = vpack.c.b16 %v1133, %v1125
    %v1854 = vpack.c.b16 %v1134, %v1126
    %v1855 = vpack.c.b16 %v1135, %v1127
    %v1856 = vpack.c.b16 %v1136, %v1128
    %v1857 = vpack.c.b16 %v1137, %v1129
    %v1858 = vpack.c.b16 %v1138, %v1130
    %v1859 = vpack.c.b16 %v1139, %v1131
    %v1860 = vpack.c.b16 %v1148, %v1140
    %v1861 = vpack.c.b16 %v1149, %v1141
    %v1862 = vpack.c.b16 %v1150, %v1142
    %v1863 = vpack.c.b16 %v1151, %v1143
    %v1864 = vpack.c.b16 %v1152, %v1144
    %v1865 = vpack.c.b16 %v1153, %v1145
    %v1866 = vpack.c.b16 %v1154, %v1146
    %v1867 = vpack.c.b16 %v1155, %v1147
    %v1868 = vpack.c.b16 %v1164, %v1156
    %v1869 = vpack.c.b16 %v1165, %v1157
    %v1870 = vpack.c.b16 %v1166, %v1158
    %v1871 = vpack.c.b16 %v1167, %v1159
    %v1872 = vpack.c.b16 %v1168, %v1160
    %v1873 = vpack.c.b16 %v1169, %v1161
    %v1874 = vpack.c.b16 %v1170, %v1162
    %v1875 = vpack.c.b16 %v1171, %v1163
    %v1876 = vpack.c.b16 %v1180, %v1172
    %v1877 = vpack.c.b16 %v1181, %v1173
    %v1878 = vpack.c.b16 %v1182, %v1174
    %v1879 = vpack.c.b16 %v1183, %v1175
    %v1880 = vpack.c.b16 %v1184, %v1176
    %v1881 = vpack.c.b16 %v1185, %v1177
    %v1882 = vpack.c.b16 %v1186, %v1178
    %v1883 = vpack.c.b16 %v1187, %v1179
    %v1884 = vpack.c.b16 %v1196, %v1188
    %v1885 = vpack.c.b16 %v1197, %v1189
    %v1886 = vpack.c.b16 %v1198, %v1190
    %v1887 = vpack.c.b16 %v1199, %v1191
    %v1888 = vpack.c.b16 %v1200, %v1192
    %v1889 = vpack.c.b16 %v1201, %v1193
    %v1890 = vpack.c.b16 %v1202, %v1194
    %v1891 = vpack.c.b16 %v1203, %v1195
    %v1892 = vpack.c.b16 %v1212, %v1204
    %v1893 = vpack.c.b16 %v1213, %v1205
    %v1894 = vpack.c.b16 %v1214, %v1206
    %v1895 = vpack.c.b16 %v1215, %v1207
    %v1896 = vpack.c.b16 %v1216, %v1208
    %v1897 = vpack.c.b16 %v1217, %v1209
    %v1898 = vpack.c.b16 %v1218, %v1210
    %v1899 = vpack.c.b16 %v1219, %v1211
    %v1900 = vpack.c.b16 %v1228, %v1220
    %v1901 = vpack.c.b16 %v1229, %v1221
    %v1902 = vpack.c.b16 %v1230, %v1222
    %v1903 = vpack.c.b16 %v1231, %v1223
    %v1904 = vpack.c.b16 %v1232, %v1224
    %v1905 = vpack.c.b16 %v1233, %v1225
    %v1906 = vpack.c.b16 %v1234, %v1226
    %v1907 = vpack.c.b16 %v1235, %v1227
    %v1908 = vpack.c.b16 %v1244, %v1236
    %v1909 = vpack.c.b16 %v1245, %v1237
    %v1910 = vpack.c.b16 %v1246, %v1238
    %v1911 = vpack.c.b16 %v1247, %v1239
    %v1912 = vpack.c.b16 %v1248, %v1240
    %v1913 = vpack.c.b16 %v1249, %v1241
    %v1914 = vpack.c.b16 %v1250, %v1242
    %v1915 = vpack.c.b16 %v1251, %v1243
    %v1916 = vpack.c.b16 %v1260, %v1252
    %v1917 = vpack.c.b16 %v1261, %v1253
    %v1918 = vpack.c.b16 %v1262, %v1254
    %v1919 = vpack.c.b16 %v1263, %v1255
    %v1920 = vpack.c.b16 %v1264, %v1256
    %v1921 = vpack.c.b16 %v1265, %v1257
    %v1922 = vpack.c.b16 %v1266, %v1258
    %v1923 = vpack.c.b16 %v1267, %v1259
    %v1924 = vpack.c.b16 %v1276, %v1268
    %v1925 = vpack.c.b16 %v1277, %v1269
    %v1926 = vpack.c.b16 %v1278, %v1270
    %v1927 = vpack.c.b16 %v1279, %v1271
    %v1928 = vpack.c.b16 %v1280, %v1272
    %v1929 = vpack.c.b16 %v1281, %v1273
    %v1930 = vpack.c.b16 %v1282, %v1274
    %v1931 = vpack.c.b16 %v1283, %v1275
    %v1932 = vpack.c.b16 %v1292, %v1284
    %v1933 = vpack.c.b16 %v1293, %v1285
    %v1934 = vpack.c.b16 %v1294, %v1286
    %v1935 = vpack.c.b16 %v1295, %v1287
    %v1936 = vpack.c.b16 %v1296, %v1288
    %v1937 = vpack.c.b16 %v1297, %v1289
    %v1938 = vpack.c.b16 %v1298, %v1290
    %v1939 = vpack.c.b16 %v1299, %v1291
    %v1940 = vpack.c.b16 %v1308, %v1300
    %v1941 = vpack.c.b16 %v1309, %v1301
    %v1942 = vpack.c.b16 %v1310, %v1302
    %v1943 = vpack.c.b16 %v1311, %v1303
    %v1944 = vpack.c.b16 %v1312, %v1304
    %v1945 = vpack.c.b16 %v1313, %v1305
    %v1946 = vpack.c.b16 %v1314, %v1306
    %v1947 = vpack.c.b16 %v1315, %v1307
    %v1948 = vpack.c.b16 %v1324, %v1316
    %v1949 = vpack.c.b16 %v1325, %v1317
    %v1950 = vpack.c.b16 %v1326, %v1318
    %v1951 = vpack.c.b16 %v1327, %v1319
    %v1952 = vpack.c.b16 %v1328, %v1320
    %v1953 = vpack.c.b16 %v1329, %v1321
    %v1954 = vpack.c.b16 %v1330, %v1322
    %v1955 = vpack.c.b16 %v1331, %v1323
    %v1956 = vpack.c.b16 %v1340, %v1332
    %v1957 = vpack.c.b16 %v1341, %v1333
    %v1958 = vpack.c.b16 %v1342, %v1334
    %v1959 = vpack.c.b16 %v1343, %v1335
    %v1960 = vpack.c.b16 %v1344, %v1336
    %v1961 = vpack.c.b16 %v1345, %v1337
    %v1962 = vpack.c.b16 %v1346, %v1338
    %v1963 = vpack.c.b16 %v1347, %v1339
    %v1964 = vpack.c.b16 %v1356, %v1348
    %v1965 = vpack.c.b16 %v1357, %v1349
    %v1966 = vpack.c.b16 %v1358, %v1350
    %v1967 = vpack.c.b16 %v1359, %v1351
    %v1968 = vpack.c.b16 %v1360, %v1352
    %v1969 = vpack.c.b16 %v1361, %v1353
    %v1970 = vpack.c.b16 %v1362, %v1354
    %v1971 = vpack.c.b16 %v1363, %v1355
    %v1972 = vpack.c.b16 %v1372, %v1364
    %v1973 = vpack.c.b16 %v1373, %v1365
    %v1974 = vpack.c.b16 %v1374, %v1366
    %v1975 = vpack.c.b16 %v1375, %v1367
    %v1976 = vpack.c.b16 %v1376, %v1368
    %v1977 = vpack.c.b16 %v1377, %v1369
    %v1978 = vpack.c.b16 %v1378, %v1370
    %v1979 = vpack.c.b16 %v1379, %v1371
    %v1980 = vpack.c.b16 %v1388, %v1380
    %v1981 = vpack.c.b16 %v1389, %v1381
    %v1982 = vpack.c.b16 %v1390, %v1382
    %v1983 = vpack.c.b16 %v1391, %v1383
    %v1984 = vpack.c.b16 %v1392, %v1384
    %v1985 = vpack.c.b16 %v1393, %v1385
    %v1986 = vpack.c.b16 %v1394, %v1386
    %v1987 = vpack.c.b16 %v1395, %v1387
    %v1988 = vpack.c.b16 %v1404, %v1396
    %v1989 = vpack.c.b16 %v1405, %v1397
    %v1990 = vpack.c.b16 %v1406, %v1398
    %v1991 = vpack.c.b16 %v1407, %v1399
    %v1992 = vpack.c.b16 %v1408, %v1400
    %v1993 = vpack.c.b16 %v1409, %v1401
    %v1994 = vpack.c.b16 %v1410, %v1402
    %v1995 = vpack.c.b16 %v1411, %v1403
    %v1996 = vpack.c.b16 %v1420, %v1412
    %v1997 = vpack.c.b16 %v1421, %v1413
    %v1998 = vpack.c.b16 %v1422, %v1414
    %v1999 = vpack.c.b16 %v1423, %v1415
    %v2000 = vpack.c.b16 %v1424, %v1416
    %v2001 = vpack.c.b16 %v1425, %v1417
    %v2002 = vpack.c.b16 %v1426, %v1418
    %v2003 = vpack.c.b16 %v1427, %v1419
    %v2004 = vpack.c.b16 %v1436, %v1428
    %v2005 = vpack.c.b16 %v1437, %v1429
    %v2006 = vpack.c.b16 %v1438, %v1430
    %v2007 = vpack.c.b16 %v1439, %v1431
    %v2008 = vpack.c.b16 %v1440, %v1432
    %v2009 = vpack.c.b16 %v1441, %v1433
    %v2010 = vpack.c.b16 %v1442, %v1434
    %v2011 = vpack.c.b16 %v1443, %v1435
    %v2012 = vpack.c.b16 %v1452, %v1444
    %v2013 = vpack.c.b16 %v1453, %v1445
    %v2014 = vpack.c.b16 %v1454, %v1446
    %v2015 = vpack.c.b16 %v1455, %v1447
    %v2016 = vpack.c.b16 %v1456, %v1448
    %v2017 = vpack.c.b16 %v1457, %v1449
    %v2018 = vpack.c.b16 %v1458, %v1450
    %v2019 = vpack.c.b16 %v1459, %v1451
    %v2020 = vpack.c.b16 %v1468, %v1460
    %v2021 = vpack.c.b16 %v1469, %v1461
    %v2022 = vpack.c.b16 %v1470, %v1462
    %v2023 = vpack.c.b16 %v1471, %v1463
    %v2024 = vpack.c.b16 %v1472, %v1464
    %v2025 = vpack.c.b16 %v1473, %v1465
    %v2026 = vpack.c.b16 %v1474, %v1466
    %v2027 = vpack.c.b16 %v1475, %v1467
    %v2028 = vpack.c.b16 %v1484, %v1476
    %v2029 = vpack.c.b16 %v1485, %v1477
    %v2030 = vpack.c.b16 %v1486, %v1478
    %v2031 = vpack.c.b16 %v1487, %v1479
    %v2032 = vpack.c.b16 %v1488, %v1480
    %v2033 = vpack.c.b16 %v1489, %v1481
    %v2034 = vpack.c.b16 %v1490, %v1482
    %v2035 = vpack.c.b16 %v1491, %v1483
    %v2036 = vpack.c.b16 %v1500, %v1492
    %v2037 = vpack.c.b16 %v1501, %v1493
    %v2038 = vpack.c.b16 %v1502, %v1494
    %v2039 = vpack.c.b16 %v1503, %v1495
    %v2040 = vpack.c.b16 %v1504, %v1496
    %v2041 = vpack.c.b16 %v1505, %v1497
    %v2042 = vpack.c.b16 %v1506, %v1498
    %v2043 = vpack.c.b16 %v1507, %v1499
    %v2044 = vpack.c.b16 %v1516, %v1508
    %v2045 = vpack.c.b16 %v1517, %v1509
    %v2046 = vpack.c.b16 %v1518, %v1510
    %v2047 = vpack.c.b16 %v1519, %v1511
    %v2048 = vpack.c.b16 %v1520, %v1512
    %v2049 = vpack.c.b16 %v1521, %v1513
    %v2050 = vpack.c.b16 %v1522, %v1514
    %v2051 = vpack.c.b16 %v1523, %v1515
    %v2052 = vpack.c.b16 %v1532, %v1524
    %v2053 = vpack.c.b16 %v1533, %v1525
    %v2054 = vpack.c.b16 %v1534, %v1526
    %v2055 = vpack.c.b16 %v1535, %v1527
    %v2056 = vpack.c.b16 %v1536, %v1528
    %v2057 = vpack.c.b16 %v1537, %v1529
    %v2058 = vpack.c.b16 %v1538, %v1530
    %v2059 = vpack.c.b16 %v1539, %v1531
    %v2060 = vpack.c.b16 %v1548, %v1540
    %v2061 = vpack.c.b16 %v1549, %v1541
    %v2062 = vpack.c.b16 %v1550, %v1542
    %v2063 = vpack.c.b16 %v1551, %v1543
    %v2064 = vpack.c.b16 %v1552, %v1544
    %v2065 = vpack.c.b16 %v1553, %v1545
    %v2066 = vpack.c.b16 %v1554, %v1546
    %v2067 = vpack.c.b16 %v1555, %v1547
    %v2068 = vpack.c.b16 %v1564, %v1556
    %v2069 = vpack.c.b16 %v1565, %v1557
    %v2070 = vpack.c.b16 %v1566, %v1558
    %v2071 = vpack.c.b16 %v1567, %v1559
    %v2072 = vpack.c.b16 %v1568, %v1560
    %v2073 = vpack.c.b16 %v1569, %v1561
    %v2074 = vpack.c.b16 %v1570, %v1562
    %v2075 = vpack.c.b16 %v1571, %v1563
    %v2076 = vpack.c.b16 %v1580, %v1572
    %v2077 = vpack.c.b16 %v1581, %v1573
    %v2078 = vpack.c.b16 %v1582, %v1574
    %v2079 = vpack.c.b16 %v1583, %v1575
    %v2080 = vpack.c.b16 %v1584, %v1576
    %v2081 = vpack.c.b16 %v1585, %v1577
    %v2082 = vpack.c.b16 %v1586, %v1578
    %v2083 = vpack.c.b16 %v1587, %v1579
    %v2084 = vpack.c.b16 %v1596, %v1588
    %v2085 = vpack.c.b16 %v1597, %v1589
    %v2086 = vpack.c.b16 %v1598, %v1590
    %v2087 = vpack.c.b16 %v1599, %v1591
    %v2088 = vpack.c.b16 %v1600, %v1592
    %v2089 = vpack.c.b16 %v1601, %v1593
    %v2090 = vpack.c.b16 %v1602, %v1594
    %v2091 = vpack.c.b16 %v1603, %v1595
    %v2092 = vpack.c.b16 %v1612, %v1604
    %v2093 = vpack.c.b16 %v1613, %v1605
    %v2094 = vpack.c.b16 %v1614, %v1606
    %v2095 = vpack.c.b16 %v1615, %v1607
    %v2096 = vpack.c.b16 %v1616, %v1608
    %v2097 = vpack.c.b16 %v1617, %v1609
    %v2098 = vpack.c.b16 %v1618, %v1610
    %v2099 = vpack.c.b16 %v1619, %v1611
    %v2100 = vpack.c.b16 %v1628, %v1620
    %v2101 = vpack.c.b16 %v1629, %v1621
    %v2102 = vpack.c.b16 %v1630, %v1622
    %v2103 = vpack.c.b16 %v1631, %v1623
    %v2104 = vpack.c.b16 %v1632, %v1624
    %v2105 = vpack.c.b16 %v1633, %v1625
    %v2106 = vpack.c.b16 %v1634, %v1626
    %v2107 = vpack.c.b16 %v1635, %v1627
    %v2108 = vpack.c.b16 %v1644, %v1636
    %v2109 = vpack.c.b16 %v1645, %v1637
    %v2110 = vpack.c.b16 %v1646, %v1638
    %v2111 = vpack.c.b16 %v1647, %v1639
    %v2112 = vpack.c.b16 %v1648, %v1640
    %v2113 = vpack.c.b16 %v1649, %v1641
    %v2114 = vpack.c.b16 %v1650, %v1642
    %v2115 = vpack.c.b16 %v1651, %v1643
    %v2116 = vpack.c.b16 %v1660, %v1652
    %v2117 = vpack.c.b16 %v1661, %v1653
    %v2118 = vpack.c.b16 %v1662, %v1654
    %v2119 = vpack.c.b16 %v1663, %v1655
    %v2120 = vpack.c.b16 %v1664, %v1656
    %v2121 = vpack.c.b16 %v1665, %v1657
    %v2122 = vpack.c.b16 %v1666, %v1658
    %v2123 = vpack.c.b16 %v1667, %v1659
    %v2124 = vpack.c.b16 %v1676, %v1668
    %v2125 = vpack.c.b16 %v1677, %v1669
    %v2126 = vpack.c.b16 %v1678, %v1670
    %v2127 = vpack.c.b16 %v1679, %v1671
    %v2128 = vpack.c.b16 %v1680, %v1672
    %v2129 = vpack.c.b16 %v1681, %v1673
    %v2130 = vpack.c.b16 %v1682, %v1674
    %v2131 = vpack.c.b16 %v1683, %v1675
    %v2132 = vpack.c.b16 %v1692, %v1684
    %v2133 = vpack.c.b16 %v1693, %v1685
    %v2134 = vpack.c.b16 %v1694, %v1686
    %v2135 = vpack.c.b16 %v1695, %v1687
    %v2136 = vpack.c.b16 %v1696, %v1688
    %v2137 = vpack.c.b16 %v1697, %v1689
    %v2138 = vpack.c.b16 %v1698, %v1690
    %v2139 = vpack.c.b16 %v1699, %v1691
    %v2140 = vpack.c.b16 %v1708, %v1700
    %v2141 = vpack.c.b16 %v1709, %v1701
    %v2142 = vpack.c.b16 %v1710, %v1702
    %v2143 = vpack.c.b16 %v1711, %v1703
    %v2144 = vpack.c.b16 %v1712, %v1704
    %v2145 = vpack.c.b16 %v1713, %v1705
    %v2146 = vpack.c.b16 %v1714, %v1706
    %v2147 = vpack.c.b16 %v1715, %v1707
    %v2148 = vpack.c.b16 %v1724, %v1716
    %v2149 = vpack.c.b16 %v1725, %v1717
    %v2150 = vpack.c.b16 %v1726, %v1718
    %v2151 = vpack.c.b16 %v1727, %v1719
    %v2152 = vpack.c.b16 %v1728, %v1720
    %v2153 = vpack.c.b16 %v1729, %v1721
    %v2154 = vpack.c.b16 %v1730, %v1722
    %v2155 = vpack.c.b16 %v1731, %v1723
    %v2156 = vpack.c.b16 %v1740, %v1732
    %v2157 = vpack.c.b16 %v1741, %v1733
    %v2158 = vpack.c.b16 %v1742, %v1734
    %v2159 = vpack.c.b16 %v1743, %v1735
    %v2160 = vpack.c.b16 %v1744, %v1736
    %v2161 = vpack.c.b16 %v1745, %v1737
    %v2162 = vpack.c.b16 %v1746, %v1738
    %v2163 = vpack.c.b16 %v1747, %v1739
    %v2164 = vpack.c.b16 %v1756, %v1748
    %v2165 = vpack.c.b16 %v1757, %v1749
    %v2166 = vpack.c.b16 %v1758, %v1750
    %v2167 = vpack.c.b16 %v1759, %v1751
    %v2168 = vpack.c.b16 %v1760, %v1752
    %v2169 = vpack.c.b16 %v1761, %v1753
    %v2170 = vpack.c.b16 %v1762, %v1754
    %v2171 = vpack.c.b16 %v1763, %v1755
    %v2172 = vpack.c.b16 %v1772, %v1764
    %v2173 = vpack.c.b16 %v1773, %v1765
    %v2174 = vpack.c.b16 %v1774, %v1766
    %v2175 = vpack.c.b16 %v1775, %v1767
    %v2176 = vpack.c.b16 %v1776, %v1768
    %v2177 = vpack.c.b16 %v1777, %v1769
    %v2178 = vpack.c.b16 %v1778, %v1770
    %v2179 = vpack.c.b16 %v1779, %v1771
    %v2180 = vpack.c.b16 %v1788, %v1780
    %v2181 = vpack.c.b16 %v1789, %v1781
    %v2182 = vpack.c.b16 %v1790, %v1782
    %v2183 = vpack.c.b16 %v1791, %v1783
    %v2184 = vpack.c.b16 %v1792, %v1784
    %v2185 = vpack.c.b16 %v1793, %v1785
    %v2186 = vpack.c.b16 %v1794, %v1786
    %v2187 = vpack.c.b16 %v1795, %v1787
    %v2188 = vpack.c.b16 %v1804, %v1796
    %v2189 = vpack.c.b16 %v1805, %v1797
    %v2190 = vpack.c.b16 %v1806, %v1798
    %v2191 = vpack.c.b16 %v1807, %v1799
    %v2192 = vpack.c.b16 %v1808, %v1800
    %v2193 = vpack.c.b16 %v1809, %v1801
    %v2194 = vpack.c.b16 %v1810, %v1802
    %v2195 = vpack.c.b16 %v1811, %v1803
    %2580 = vmatprep.subr.bf16.mxu0 %v1813
    %2581 = vmatpush1.bf16.msra.mxu0 %v1812
    %2582 = vmatprep.subr.bf16.mxu0 %v1821
    %2583 = vmatpush1.bf16.msra.mxu0 %v1820
    %2584 = vmatprep.subr.bf16.mxu0 %v1829
    %2585 = vmatpush1.bf16.msra.mxu0 %v1828
    %2586 = vmatprep.subr.bf16.mxu0 %v1837
    %2587 = vmatpush1.bf16.msra.mxu0 %v1836
    %2588 = vmatprep.subr.bf16.mxu0 %v1845
    %2589 = vmatpush1.bf16.msra.mxu0 %v1844
    %2590 = vmatprep.subr.bf16.mxu0 %v1853
    %2591 = vmatpush1.bf16.msra.mxu0 %v1852
    %2592 = vmatprep.subr.bf16.mxu0 %v1861
    %2593 = vmatpush1.bf16.msra.mxu0 %v1860
    %2594 = vmatprep.subr.bf16.mxu0 %v1869
    %2595 = vmatpush1.bf16.msra.mxu0 %v1868
    %2596 = vmatprep.subr.bf16.mxu0 %v1877
    %2597 = vmatpush1.bf16.msra.mxu0 %v1876
    %2598 = vmatprep.subr.bf16.mxu0 %v1885
    %2599 = vmatpush1.bf16.msra.mxu0 %v1884
    %2600 = vmatprep.subr.bf16.mxu0 %v1893
    %2601 = vmatpush1.bf16.msra.mxu0 %v1892
    %2602 = vmatprep.subr.bf16.mxu0 %v1901
    %2603 = vmatpush1.bf16.msra.mxu0 %v1900
    %2604 = vmatprep.subr.bf16.mxu0 %v1909
    %2605 = vmatpush1.bf16.msra.mxu0 %v1908
    %2606 = vmatprep.subr.bf16.mxu0 %v1917
    %2607 = vmatpush1.bf16.msra.mxu0 %v1916
    %2608 = vmatprep.subr.bf16.mxu0 %v1925
    %2609 = vmatpush1.bf16.msra.mxu0 %v1924
    %2610 = vmatprep.subr.bf16.mxu0 %v1933
    %2611 = vmatpush1.bf16.msra.mxu0 %v1932
    %2612 = vmatprep.mubr.bf16.mxu0 %v644
    %2613 = vmatmul.mubr.bf16.gmra.mrb[0].mxu0 %v630
    %v2614 = vpop.f32.mrb[0].mxu0
    %v2615 = vadd.f32 %v569, %v2614
    %v2616 = vpop.f32.mrb[0].mxu0
    %v2617 = vadd.f32 %v573, %v2616
    %v2618 = vpop.f32.mrb[0].mxu0
    %v2619 = vpop.f32.mrb[0].mxu0
    %2620 = vdwg.mxu0
    %2621 = vmatprep.subr.bf16.mxu0 %v1941
    %2622 = vmatpush1.bf16.msra.mxu0 %v1940
    %2623 = vmatprep.subr.bf16.mxu0 %v1949
    %2624 = vmatpush1.bf16.msra.mxu0 %v1948
    %2625 = vmatprep.subr.bf16.mxu0 %v1957
    %2626 = vmatpush1.bf16.msra.mxu0 %v1956
    %2627 = vmatprep.subr.bf16.mxu0 %v1965
    %2628 = vmatpush1.bf16.msra.mxu0 %v1964
    %2629 = vmatprep.subr.bf16.mxu0 %v1973
    %2630 = vmatpush1.bf16.msra.mxu0 %v1972
    %2631 = vmatprep.subr.bf16.mxu0 %v1981
    %2632 = vmatpush1.bf16.msra.mxu0 %v1980
    %2633 = vmatprep.subr.bf16.mxu0 %v1989
    %2634 = vmatpush1.bf16.msra.mxu0 %v1988
    %2635 = vmatprep.subr.bf16.mxu0 %v1997
    %2636 = vmatpush1.bf16.msra.mxu0 %v1996
    %2637 = vmatprep.subr.bf16.mxu0 %v2005
    %2638 = vmatpush1.bf16.msra.mxu0 %v2004
    %2639 = vmatprep.subr.bf16.mxu0 %v2013
    %2640 = vmatpush1.bf16.msra.mxu0 %v2012
    %2641 = vmatprep.subr.bf16.mxu0 %v2021
    %2642 = vmatpush1.bf16.msra.mxu0 %v2020
    %2643 = vmatprep.subr.bf16.mxu0 %v2029
    %2644 = vmatpush1.bf16.msra.mxu0 %v2028
    %2645 = vmatprep.subr.bf16.mxu0 %v2037
    %2646 = vmatpush1.bf16.msra.mxu0 %v2036
    %2647 = vmatprep.subr.bf16.mxu0 %v2045
    %2648 = vmatpush1.bf16.msra.mxu0 %v2044
    %2649 = vmatprep.subr.bf16.mxu0 %v2053
    %2650 = vmatpush1.bf16.msra.mxu0 %v2052
    %2651 = vmatprep.subr.bf16.mxu0 %v2061
    %2652 = vmatpush1.bf16.msra.mxu0 %v2060
    %2653 = vmatprep.mubr.bf16.mxu0 %v653
    %2654 = vmatmul.mubr.bf16.gmra.mrb[0].mxu0 %v652
    %v2655 = vpop.f32.mrb[0].mxu0
    %v2656 = vadd.f32 %v2615, %v2655
    %v2657 = vpop.f32.mrb[0].mxu0
    %v2658 = vadd.f32 %v2617, %v2657
    %v2659 = vpop.f32.mrb[0].mxu0
    %v2660 = vpop.f32.mrb[0].mxu0
    %2661 = vdwg.mxu0
    %2662 = vmatprep.subr.bf16.mxu0 %v2069
    %2663 = vmatpush1.bf16.msra.mxu0 %v2068
    %2664 = vmatprep.subr.bf16.mxu0 %v2077
    %2665 = vmatpush1.bf16.msra.mxu0 %v2076
    %2666 = vmatprep.subr.bf16.mxu0 %v2085
    %2667 = vmatpush1.bf16.msra.mxu0 %v2084
    %2668 = vmatprep.subr.bf16.mxu0 %v2093
    %2669 = vmatpush1.bf16.msra.mxu0 %v2092
    %2670 = vmatprep.subr.bf16.mxu0 %v2101
    %2671 = vmatpush1.bf16.msra.mxu0 %v2100
    %2672 = vmatprep.subr.bf16.mxu0 %v2109
    %2673 = vmatpush1.bf16.msra.mxu0 %v2108
    %2674 = vmatprep.subr.bf16.mxu0 %v2117
    %2675 = vmatpush1.bf16.msra.mxu0 %v2116
    %2676 = vmatprep.subr.bf16.mxu0 %v2125
    %2677 = vmatpush1.bf16.msra.mxu0 %v2124
    %2678 = vmatprep.subr.bf16.mxu0 %v2133
    %2679 = vmatpush1.bf16.msra.mxu0 %v2132
    %2680 = vmatprep.subr.bf16.mxu0 %v2141
    %2681 = vmatpush1.bf16.msra.mxu0 %v2140
    %2682 = vmatprep.subr.bf16.mxu0 %v2149
    %2683 = vmatpush1.bf16.msra.mxu0 %v2148
    %2684 = vmatprep.subr.bf16.mxu0 %v2157
    %2685 = vmatpush1.bf16.msra.mxu0 %v2156
    %2686 = vmatprep.subr.bf16.mxu0 %v2165
    %2687 = vmatpush1.bf16.msra.mxu0 %v2164
    %2688 = vmatprep.subr.bf16.mxu0 %v2173
    %2689 = vmatpush1.bf16.msra.mxu0 %v2172
    %2690 = vmatprep.subr.bf16.mxu0 %v2181
    %2691 = vmatpush1.bf16.msra.mxu0 %v2180
    %2692 = vmatprep.subr.bf16.mxu0 %v2189
    %2693 = vmatpush1.bf16.msra.mxu0 %v2188
    %2694 = vmatprep.mubr.bf16.mxu0 %v651
    %2695 = vmatmul.mubr.bf16.gmra.mrb[0].mxu0 %v637
    %v2696 = vpop.f32.mrb[0].mxu0
    %v2697 = vadd.f32 %v2656, %v2696
    %v2698 = vpop.f32.mrb[0].mxu0
    %v2699 = vadd.f32 %v2658, %v2698
    %v2700 = vpop.f32.mrb[0].mxu0
    %v2701 = vpop.f32.mrb[0].mxu0
    %2702 = vdwg.mxu0
    %2703 = vmatprep.subr.bf16.mxu0 %v1815
    %2704 = vmatpush1.bf16.msra.mxu0 %v1814
    %2705 = vmatprep.subr.bf16.mxu0 %v1823
    %2706 = vmatpush1.bf16.msra.mxu0 %v1822
    %2707 = vmatprep.subr.bf16.mxu0 %v1831
    %2708 = vmatpush1.bf16.msra.mxu0 %v1830
    %2709 = vmatprep.subr.bf16.mxu0 %v1839
    %2710 = vmatpush1.bf16.msra.mxu0 %v1838
    %2711 = vmatprep.subr.bf16.mxu0 %v1847
    %2712 = vmatpush1.bf16.msra.mxu0 %v1846
    %2713 = vmatprep.subr.bf16.mxu0 %v1855
    %2714 = vmatpush1.bf16.msra.mxu0 %v1854
    %2715 = vmatprep.subr.bf16.mxu0 %v1863
    %2716 = vmatpush1.bf16.msra.mxu0 %v1862
    %2717 = vmatprep.subr.bf16.mxu0 %v1871
    %2718 = vmatpush1.bf16.msra.mxu0 %v1870
    %2719 = vmatprep.subr.bf16.mxu0 %v1879
    %2720 = vmatpush1.bf16.msra.mxu0 %v1878
    %2721 = vmatprep.subr.bf16.mxu0 %v1887
    %2722 = vmatpush1.bf16.msra.mxu0 %v1886
    %2723 = vmatprep.subr.bf16.mxu0 %v1895
    %2724 = vmatpush1.bf16.msra.mxu0 %v1894
    %2725 = vmatprep.subr.bf16.mxu0 %v1903
    %2726 = vmatpush1.bf16.msra.mxu0 %v1902
    %2727 = vmatprep.subr.bf16.mxu0 %v1911
    %2728 = vmatpush1.bf16.msra.mxu0 %v1910
    %2729 = vmatprep.subr.bf16.mxu0 %v1919
    %2730 = vmatpush1.bf16.msra.mxu0 %v1918
    %2731 = vmatprep.subr.bf16.mxu0 %v1927
    %2732 = vmatpush1.bf16.msra.mxu0 %v1926
    %2733 = vmatprep.subr.bf16.mxu0 %v1935
    %2734 = vmatpush1.bf16.msra.mxu0 %v1934
    %2735 = vmatprep.mubr.bf16.mxu0 %v644
    %2736 = vmatmul.mubr.bf16.gmra.mrb[0].mxu0 %v630
    %v2737 = vpop.f32.mrb[0].mxu0
    %v2738 = vadd.f32 %v577, %v2737
    %v2739 = vpop.f32.mrb[0].mxu0
    %v2740 = vadd.f32 %v581, %v2739
    %v2741 = vpop.f32.mrb[0].mxu0
    %v2742 = vpop.f32.mrb[0].mxu0
    %2743 = vdwg.mxu0
    %2744 = vmatprep.subr.bf16.mxu0 %v1943
    %2745 = vmatpush1.bf16.msra.mxu0 %v1942
    %2746 = vmatprep.subr.bf16.mxu0 %v1951
    %2747 = vmatpush1.bf16.msra.mxu0 %v1950
    %2748 = vmatprep.subr.bf16.mxu0 %v1959
    %2749 = vmatpush1.bf16.msra.mxu0 %v1958
    %2750 = vmatprep.subr.bf16.mxu0 %v1967
    %2751 = vmatpush1.bf16.msra.mxu0 %v1966
    %2752 = vmatprep.subr.bf16.mxu0 %v1975
    %2753 = vmatpush1.bf16.msra.mxu0 %v1974
    %2754 = vmatprep.subr.bf16.mxu0 %v1983
    %2755 = vmatpush1.bf16.msra.mxu0 %v1982
    %2756 = vmatprep.subr.bf16.mxu0 %v1991
    %2757 = vmatpush1.bf16.msra.mxu0 %v1990
    %2758 = vmatprep.subr.bf16.mxu0 %v1999
    %2759 = vmatpush1.bf16.msra.mxu0 %v1998
    %2760 = vmatprep.subr.bf16.mxu0 %v2007
    %2761 = vmatpush1.bf16.msra.mxu0 %v2006
    %2762 = vmatprep.subr.bf16.mxu0 %v2015
    %2763 = vmatpush1.bf16.msra.mxu0 %v2014
    %2764 = vmatprep.subr.bf16.mxu0 %v2023
    %2765 = vmatpush1.bf16.msra.mxu0 %v2022
    %2766 = vmatprep.subr.bf16.mxu0 %v2031
    %2767 = vmatpush1.bf16.msra.mxu0 %v2030
    %2768 = vmatprep.subr.bf16.mxu0 %v2039
    %2769 = vmatpush1.bf16.msra.mxu0 %v2038
    %2770 = vmatprep.subr.bf16.mxu0 %v2047
    %2771 = vmatpush1.bf16.msra.mxu0 %v2046
    %2772 = vmatprep.subr.bf16.mxu0 %v2055
    %2773 = vmatpush1.bf16.msra.mxu0 %v2054
    %2774 = vmatprep.subr.bf16.mxu0 %v2063
    %2775 = vmatpush1.bf16.msra.mxu0 %v2062
    %2776 = vmatprep.mubr.bf16.mxu0 %v653
    %2777 = vmatmul.mubr.bf16.gmra.mrb[0].mxu0 %v652
    %v2778 = vpop.f32.mrb[0].mxu0
    %v2779 = vadd.f32 %v2738, %v2778
    %v2780 = vpop.f32.mrb[0].mxu0
    %v2781 = vadd.f32 %v2740, %v2780
    %v2782 = vpop.f32.mrb[0].mxu0
    %v2783 = vpop.f32.mrb[0].mxu0
    %2784 = vdwg.mxu0
    %2785 = vmatprep.subr.bf16.mxu0 %v2071
    %2786 = vmatpush1.bf16.msra.mxu0 %v2070
    %2787 = vmatprep.subr.bf16.mxu0 %v2079
    %2788 = vmatpush1.bf16.msra.mxu0 %v2078
    %2789 = vmatprep.subr.bf16.mxu0 %v2087
    %2790 = vmatpush1.bf16.msra.mxu0 %v2086
    %2791 = vmatprep.subr.bf16.mxu0 %v2095
    %2792 = vmatpush1.bf16.msra.mxu0 %v2094
    %2793 = vmatprep.subr.bf16.mxu0 %v2103
    %2794 = vmatpush1.bf16.msra.mxu0 %v2102
    %2795 = vmatprep.subr.bf16.mxu0 %v2111
    %2796 = vmatpush1.bf16.msra.mxu0 %v2110
    %2797 = vmatprep.subr.bf16.mxu0 %v2119
    %2798 = vmatpush1.bf16.msra.mxu0 %v2118
    %2799 = vmatprep.subr.bf16.mxu0 %v2127
    %2800 = vmatpush1.bf16.msra.mxu0 %v2126
    %2801 = vmatprep.subr.bf16.mxu0 %v2135
    %2802 = vmatpush1.bf16.msra.mxu0 %v2134
    %2803 = vmatprep.subr.bf16.mxu0 %v2143
    %2804 = vmatpush1.bf16.msra.mxu0 %v2142
    %2805 = vmatprep.subr.bf16.mxu0 %v2151
    %2806 = vmatpush1.bf16.msra.mxu0 %v2150
    %2807 = vmatprep.subr.bf16.mxu0 %v2159
    %2808 = vmatpush1.bf16.msra.mxu0 %v2158
    %2809 = vmatprep.subr.bf16.mxu0 %v2167
    %2810 = vmatpush1.bf16.msra.mxu0 %v2166
    %2811 = vmatprep.subr.bf16.mxu0 %v2175
    %2812 = vmatpush1.bf16.msra.mxu0 %v2174
    %2813 = vmatprep.subr.bf16.mxu0 %v2183
    %2814 = vmatpush1.bf16.msra.mxu0 %v2182
    %2815 = vmatprep.subr.bf16.mxu0 %v2191
    %2816 = vmatpush1.bf16.msra.mxu0 %v2190
    %2817 = vmatprep.mubr.bf16.mxu0 %v651
    %2818 = vmatmul.mubr.bf16.gmra.mrb[0].mxu0 %v637
    %v2819 = vpop.f32.mrb[0].mxu0
    %v2820 = vadd.f32 %v2779, %v2819
    %v2821 = vpop.f32.mrb[0].mxu0
    %v2822 = vadd.f32 %v2781, %v2821
    %v2823 = vpop.f32.mrb[0].mxu0
    %v2824 = vpop.f32.mrb[0].mxu0
    %2825 = vdwg.mxu0
    %2826 = vmatprep.subr.bf16.mxu0 %v1817
    %2827 = vmatpush1.bf16.msra.mxu0 %v1816
    %2828 = vmatprep.subr.bf16.mxu0 %v1825
    %2829 = vmatpush1.bf16.msra.mxu0 %v1824
    %2830 = vmatprep.subr.bf16.mxu0 %v1833
    %2831 = vmatpush1.bf16.msra.mxu0 %v1832
    %2832 = vmatprep.subr.bf16.mxu0 %v1841
    %2833 = vmatpush1.bf16.msra.mxu0 %v1840
    %2834 = vmatprep.subr.bf16.mxu0 %v1849
    %2835 = vmatpush1.bf16.msra.mxu0 %v1848
    %2836 = vmatprep.subr.bf16.mxu0 %v1857
    %2837 = vmatpush1.bf16.msra.mxu0 %v1856
    %2838 = vmatprep.subr.bf16.mxu0 %v1865
    %2839 = vmatpush1.bf16.msra.mxu0 %v1864
    %2840 = vmatprep.subr.bf16.mxu0 %v1873
    %2841 = vmatpush1.bf16.msra.mxu0 %v1872
    %2842 = vmatprep.subr.bf16.mxu0 %v1881
    %2843 = vmatpush1.bf16.msra.mxu0 %v1880
    %2844 = vmatprep.subr.bf16.mxu0 %v1889
    %2845 = vmatpush1.bf16.msra.mxu0 %v1888
    %2846 = vmatprep.subr.bf16.mxu0 %v1897
    %2847 = vmatpush1.bf16.msra.mxu0 %v1896
    %2848 = vmatprep.subr.bf16.mxu0 %v1905
    %2849 = vmatpush1.bf16.msra.mxu0 %v1904
    %2850 = vmatprep.subr.bf16.mxu0 %v1913
    %2851 = vmatpush1.bf16.msra.mxu0 %v1912
    %2852 = vmatprep.subr.bf16.mxu0 %v1921
    %2853 = vmatpush1.bf16.msra.mxu0 %v1920
    %2854 = vmatprep.subr.bf16.mxu0 %v1929
    %2855 = vmatpush1.bf16.msra.mxu0 %v1928
    %2856 = vmatprep.subr.bf16.mxu0 %v1937
    %2857 = vmatpush1.bf16.msra.mxu0 %v1936
    %2858 = vmatprep.mubr.bf16.mxu0 %v644
    %2859 = vmatmul.mubr.bf16.gmra.mrb[0].mxu0 %v630
    %v2860 = vpop.f32.mrb[0].mxu0
    %v2861 = vadd.f32 %v585, %v2860
    %v2862 = vpop.f32.mrb[0].mxu0
    %v2863 = vadd.f32 %v589, %v2862
    %v2864 = vpop.f32.mrb[0].mxu0
    %v2865 = vpop.f32.mrb[0].mxu0
    %2866 = vdwg.mxu0
    %2867 = vmatprep.subr.bf16.mxu0 %v1945
    %2868 = vmatpush1.bf16.msra.mxu0 %v1944
    %2869 = vmatprep.subr.bf16.mxu0 %v1953
    %2870 = vmatpush1.bf16.msra.mxu0 %v1952
    %2871 = vmatprep.subr.bf16.mxu0 %v1961
    %2872 = vmatpush1.bf16.msra.mxu0 %v1960
    %2873 = vmatprep.subr.bf16.mxu0 %v1969
    %2874 = vmatpush1.bf16.msra.mxu0 %v1968
    %2875 = vmatprep.subr.bf16.mxu0 %v1977
    %2876 = vmatpush1.bf16.msra.mxu0 %v1976
    %2877 = vmatprep.subr.bf16.mxu0 %v1985
    %2878 = vmatpush1.bf16.msra.mxu0 %v1984
    %2879 = vmatprep.subr.bf16.mxu0 %v1993
    %2880 = vmatpush1.bf16.msra.mxu0 %v1992
    %2881 = vmatprep.subr.bf16.mxu0 %v2001
    %2882 = vmatpush1.bf16.msra.mxu0 %v2000
    %2883 = vmatprep.subr.bf16.mxu0 %v2009
    %2884 = vmatpush1.bf16.msra.mxu0 %v2008
    %2885 = vmatprep.subr.bf16.mxu0 %v2017
    %2886 = vmatpush1.bf16.msra.mxu0 %v2016
    %2887 = vmatprep.subr.bf16.mxu0 %v2025
    %2888 = vmatpush1.bf16.msra.mxu0 %v2024
    %2889 = vmatprep.subr.bf16.mxu0 %v2033
    %2890 = vmatpush1.bf16.msra.mxu0 %v2032
    %2891 = vmatprep.subr.bf16.mxu0 %v2041
    %2892 = vmatpush1.bf16.msra.mxu0 %v2040
    %2893 = vmatprep.subr.bf16.mxu0 %v2049
    %2894 = vmatpush1.bf16.msra.mxu0 %v2048
    %2895 = vmatprep.subr.bf16.mxu0 %v2057
    %2896 = vmatpush1.bf16.msra.mxu0 %v2056
    %2897 = vmatprep.subr.bf16.mxu0 %v2065
    %2898 = vmatpush1.bf16.msra.mxu0 %v2064
    %2899 = vmatprep.mubr.bf16.mxu0 %v653
    %2900 = vmatmul.mubr.bf16.gmra.mrb[0].mxu0 %v652
    %v2901 = vpop.f32.mrb[0].mxu0
    %v2902 = vadd.f32 %v2861, %v2901
    %v2903 = vpop.f32.mrb[0].mxu0
    %v2904 = vadd.f32 %v2863, %v2903
    %v2905 = vpop.f32.mrb[0].mxu0
    %v2906 = vpop.f32.mrb[0].mxu0
    %2907 = vdwg.mxu0
    %2908 = vmatprep.subr.bf16.mxu0 %v2073
    %2909 = vmatpush1.bf16.msra.mxu0 %v2072
    %2910 = vmatprep.subr.bf16.mxu0 %v2081
    %2911 = vmatpush1.bf16.msra.mxu0 %v2080
    %2912 = vmatprep.subr.bf16.mxu0 %v2089
    %2913 = vmatpush1.bf16.msra.mxu0 %v2088
    %2914 = vmatprep.subr.bf16.mxu0 %v2097
    %2915 = vmatpush1.bf16.msra.mxu0 %v2096
    %2916 = vmatprep.subr.bf16.mxu0 %v2105
    %2917 = vmatpush1.bf16.msra.mxu0 %v2104
    %2918 = vmatprep.subr.bf16.mxu0 %v2113
    %2919 = vmatpush1.bf16.msra.mxu0 %v2112
    %2920 = vmatprep.subr.bf16.mxu0 %v2121
    %2921 = vmatpush1.bf16.msra.mxu0 %v2120
    %2922 = vmatprep.subr.bf16.mxu0 %v2129
    %2923 = vmatpush1.bf16.msra.mxu0 %v2128
    %2924 = vmatprep.subr.bf16.mxu0 %v2137
    %2925 = vmatpush1.bf16.msra.mxu0 %v2136
    %2926 = vmatprep.subr.bf16.mxu0 %v2145
    %2927 = vmatpush1.bf16.msra.mxu0 %v2144
    %2928 = vmatprep.subr.bf16.mxu0 %v2153
    %2929 = vmatpush1.bf16.msra.mxu0 %v2152
    %2930 = vmatprep.subr.bf16.mxu0 %v2161
    %2931 = vmatpush1.bf16.msra.mxu0 %v2160
    %2932 = vmatprep.subr.bf16.mxu0 %v2169
    %2933 = vmatpush1.bf16.msra.mxu0 %v2168
    %2934 = vmatprep.subr.bf16.mxu0 %v2177
    %2935 = vmatpush1.bf16.msra.mxu0 %v2176
    %2936 = vmatprep.subr.bf16.mxu0 %v2185
    %2937 = vmatpush1.bf16.msra.mxu0 %v2184
    %2938 = vmatprep.subr.bf16.mxu0 %v2193
    %2939 = vmatpush1.bf16.msra.mxu0 %v2192
    %2940 = vmatprep.mubr.bf16.mxu0 %v651
    %2941 = vmatmul.mubr.bf16.gmra.mrb[0].mxu0 %v637
    %v2942 = vpop.f32.mrb[0].mxu0
    %v2943 = vadd.f32 %v2902, %v2942
    %v2944 = vpop.f32.mrb[0].mxu0
    %v2945 = vadd.f32 %v2904, %v2944
    %v2946 = vpop.f32.mrb[0].mxu0
    %v2947 = vpop.f32.mrb[0].mxu0
    %2948 = vdwg.mxu0
    %2949 = vmatprep.subr.bf16.mxu0 %v1819
    %2950 = vmatpush1.bf16.msra.mxu0 %v1818
    %2951 = vmatprep.subr.bf16.mxu0 %v1827
    %2952 = vmatpush1.bf16.msra.mxu0 %v1826
    %2953 = vmatprep.subr.bf16.mxu0 %v1835
    %2954 = vmatpush1.bf16.msra.mxu0 %v1834
    %2955 = vmatprep.subr.bf16.mxu0 %v1843
    %2956 = vmatpush1.bf16.msra.mxu0 %v1842
    %2957 = vmatprep.subr.bf16.mxu0 %v1851
    %2958 = vmatpush1.bf16.msra.mxu0 %v1850
    %2959 = vmatprep.subr.bf16.mxu0 %v1859
    %2960 = vmatpush1.bf16.msra.mxu0 %v1858
    %2961 = vmatprep.subr.bf16.mxu0 %v1867
    %2962 = vmatpush1.bf16.msra.mxu0 %v1866
    %2963 = vmatprep.subr.bf16.mxu0 %v1875
    %2964 = vmatpush1.bf16.msra.mxu0 %v1874
    %2965 = vmatprep.subr.bf16.mxu0 %v1883
    %2966 = vmatpush1.bf16.msra.mxu0 %v1882
    %2967 = vmatprep.subr.bf16.mxu0 %v1891
    %2968 = vmatpush1.bf16.msra.mxu0 %v1890
    %2969 = vmatprep.subr.bf16.mxu0 %v1899
    %2970 = vmatpush1.bf16.msra.mxu0 %v1898
    %2971 = vmatprep.subr.bf16.mxu0 %v1907
    %2972 = vmatpush1.bf16.msra.mxu0 %v1906
    %2973 = vmatprep.subr.bf16.mxu0 %v1915
    %2974 = vmatpush1.bf16.msra.mxu0 %v1914
    %2975 = vmatprep.subr.bf16.mxu0 %v1923
    %2976 = vmatpush1.bf16.msra.mxu0 %v1922
    %2977 = vmatprep.subr.bf16.mxu0 %v1931
    %2978 = vmatpush1.bf16.msra.mxu0 %v1930
    %2979 = vmatprep.subr.bf16.mxu0 %v1939
    %2980 = vmatpush1.bf16.msra.mxu0 %v1938
    %2981 = vmatprep.mubr.bf16.mxu0 %v644
    %2982 = vmatmul.mubr.bf16.gmra.mrb[0].mxu0 %v630
    %v2983 = vpop.f32.mrb[0].mxu0
    %v2984 = vadd.f32 %v593, %v2983
    %v2985 = vpop.f32.mrb[0].mxu0
    %v2986 = vadd.f32 %v597, %v2985
    %v2987 = vpop.f32.mrb[0].mxu0
    %v2988 = vpop.f32.mrb[0].mxu0
    %2989 = vdwg.mxu0
    %2990 = vmatprep.subr.bf16.mxu0 %v1947
    %2991 = vmatpush1.bf16.msra.mxu0 %v1946
    %2992 = vmatprep.subr.bf16.mxu0 %v1955
    %2993 = vmatpush1.bf16.msra.mxu0 %v1954
    %2994 = vmatprep.subr.bf16.mxu0 %v1963
    %2995 = vmatpush1.bf16.msra.mxu0 %v1962
    %2996 = vmatprep.subr.bf16.mxu0 %v1971
    %2997 = vmatpush1.bf16.msra.mxu0 %v1970
    %2998 = vmatprep.subr.bf16.mxu0 %v1979
    %2999 = vmatpush1.bf16.msra.mxu0 %v1978
    %3000 = vmatprep.subr.bf16.mxu0 %v1987
    %3001 = vmatpush1.bf16.msra.mxu0 %v1986
    %3002 = vmatprep.subr.bf16.mxu0 %v1995
    %3003 = vmatpush1.bf16.msra.mxu0 %v1994
    %3004 = vmatprep.subr.bf16.mxu0 %v2003
    %3005 = vmatpush1.bf16.msra.mxu0 %v2002
    %3006 = vmatprep.subr.bf16.mxu0 %v2011
    %3007 = vmatpush1.bf16.msra.mxu0 %v2010
    %3008 = vmatprep.subr.bf16.mxu0 %v2019
    %3009 = vmatpush1.bf16.msra.mxu0 %v2018
    %3010 = vmatprep.subr.bf16.mxu0 %v2027
    %3011 = vmatpush1.bf16.msra.mxu0 %v2026
    %3012 = vmatprep.subr.bf16.mxu0 %v2035
    %3013 = vmatpush1.bf16.msra.mxu0 %v2034
    %3014 = vmatprep.subr.bf16.mxu0 %v2043
    %3015 = vmatpush1.bf16.msra.mxu0 %v2042
    %3016 = vmatprep.subr.bf16.mxu0 %v2051
    %3017 = vmatpush1.bf16.msra.mxu0 %v2050
    %3018 = vmatprep.subr.bf16.mxu0 %v2059
    %3019 = vmatpush1.bf16.msra.mxu0 %v2058
    %3020 = vmatprep.subr.bf16.mxu0 %v2067
    %3021 = vmatpush1.bf16.msra.mxu0 %v2066
    %3022 = vmatprep.mubr.bf16.mxu0 %v653
    %3023 = vmatmul.mubr.bf16.gmra.mrb[0].mxu0 %v652
    %v3024 = vpop.f32.mrb[0].mxu0
    %v3025 = vadd.f32 %v2984, %v3024
    %v3026 = vpop.f32.mrb[0].mxu0
    %v3027 = vadd.f32 %v2986, %v3026
    %v3028 = vpop.f32.mrb[0].mxu0
    %v3029 = vpop.f32.mrb[0].mxu0
    %3030 = vdwg.mxu0
    %3031 = vmatprep.subr.bf16.mxu0 %v2075
    %3032 = vmatpush1.bf16.msra.mxu0 %v2074
    %3033 = vmatprep.subr.bf16.mxu0 %v2083
    %3034 = vmatpush1.bf16.msra.mxu0 %v2082
    %3035 = vmatprep.subr.bf16.mxu0 %v2091
    %3036 = vmatpush1.bf16.msra.mxu0 %v2090
    %3037 = vmatprep.subr.bf16.mxu0 %v2099
    %3038 = vmatpush1.bf16.msra.mxu0 %v2098
    %3039 = vmatprep.subr.bf16.mxu0 %v2107
    %3040 = vmatpush1.bf16.msra.mxu0 %v2106
    %3041 = vmatprep.subr.bf16.mxu0 %v2115
    %3042 = vmatpush1.bf16.msra.mxu0 %v2114
    %3043 = vmatprep.subr.bf16.mxu0 %v2123
    %3044 = vmatpush1.bf16.msra.mxu0 %v2122
    %3045 = vmatprep.subr.bf16.mxu0 %v2131
    %3046 = vmatpush1.bf16.msra.mxu0 %v2130
    %3047 = vmatprep.subr.bf16.mxu0 %v2139
    %3048 = vmatpush1.bf16.msra.mxu0 %v2138
    %3049 = vmatprep.subr.bf16.mxu0 %v2147
    %3050 = vmatpush1.bf16.msra.mxu0 %v2146
    %3051 = vmatprep.subr.bf16.mxu0 %v2155
    %3052 = vmatpush1.bf16.msra.mxu0 %v2154
    %3053 = vmatprep.subr.bf16.mxu0 %v2163
    %3054 = vmatpush1.bf16.msra.mxu0 %v2162
    %3055 = vmatprep.subr.bf16.mxu0 %v2171
    %3056 = vmatpush1.bf16.msra.mxu0 %v2170
    %3057 = vmatprep.subr.bf16.mxu0 %v2179
    %3058 = vmatpush1.bf16.msra.mxu0 %v2178
    %3059 = vmatprep.subr.bf16.mxu0 %v2187
    %3060 = vmatpush1.bf16.msra.mxu0 %v2186
    %3061 = vmatprep.subr.bf16.mxu0 %v2195
    %3062 = vmatpush1.bf16.msra.mxu0 %v2194
    %3063 = vmatprep.mubr.bf16.mxu0 %v651
    %3064 = vmatmul.mubr.bf16.gmra.mrb[0].mxu0 %v637
    %v3065 = vpop.f32.mrb[0].mxu0
    %v3066 = vadd.f32 %v3025, %v3065
    %v3067 = vpop.f32.mrb[0].mxu0
    %v3068 = vadd.f32 %v3027, %v3067
    %v3069 = vpop.f32.mrb[0].mxu0
    %v3070 = vpop.f32.mrb[0].mxu0
    %3071 = vdwg.mxu0
    %v3072 = vmax.f32 %v2697, 0.0
    %v3073 = vmax.f32 %v2699, 0.0
    %v3074 = vmax.f32 %v2820, 0.0
    %v3075 = vmax.f32 %v2822, 0.0
    %v3076 = vmax.f32 %v2943, 0.0
    %v3077 = vmax.f32 %v2945, 0.0
    %v3078 = vmax.f32 %v3066, 0.0
    %v3079 = vmax.f32 %v3068, 0.0
    %v3080 = vpack.c.bf16 %v3072, %v3072
    %v3081 = vpack.c.bf16 %v3073, %v3073
    %v3082 = vpack.c.bf16 %v3074, %v3074
    %v3083 = vpack.c.bf16 %v3075, %v3075
    %v3084 = vpack.c.bf16 %v3076, %v3076
    %v3085 = vpack.c.bf16 %v3077, %v3077
    %v3086 = vpack.c.bf16 %v3078, %v3078
    %v3087 = vpack.c.bf16 %v3079, %v3079
    %v3088 = vld [vmem:[#allocation10] sm:$0xff]
    %v3089 = vld [vmem:[#allocation10 + $0x8] sm:$0xf]
    %v3090 = vld [vmem:[#allocation10 + $0xc] sm:$0xff]
    %v3091 = vld [vmem:[#allocation10 + $0x14] sm:$0xf]
    %v3092 = vld [vmem:[#allocation10 + $0x18] sm:$0xff]
    %v3093 = vld [vmem:[#allocation10 + $0x20] sm:$0xf]
    %v3094 = vld [vmem:[#allocation10 + $0x24] sm:$0xff]
    %v3095 = vld [vmem:[#allocation10 + $0x2c] sm:$0xf]
    %v3096 = vld [vmem:[#allocation10 + $0x30] sm:$0xff]
    %v3097 = vld [vmem:[#allocation10 + $0x38] sm:$0xf]
    %v3098 = vld [vmem:[#allocation10 + $0x3c] sm:$0xff]
    %v3099 = vld [vmem:[#allocation10 + $0x44] sm:$0xf]
    %v3100 = vld [vmem:[#allocation10 + $0x48] sm:$0xff]
    %v3101 = vld [vmem:[#allocation10 + $0x50] sm:$0xf]
    %v3102 = vld [vmem:[#allocation10 + $0x54] sm:$0xff]
    %v3103 = vld [vmem:[#allocation10 + $0x5c] sm:$0xf]
    %v3104 = vld [vmem:[#allocation10 + $0x60] sm:$0xff]
    %v3105 = vld [vmem:[#allocation10 + $0x68] sm:$0xf]
    %v3106 = vld [vmem:[#allocation10 + $0x6c] sm:$0xff]
    %v3107 = vld [vmem:[#allocation10 + $0x74] sm:$0xf]
    %v3108 = vld [vmem:[#allocation10 + $0x78] sm:$0xff]
    %v3109 = vld [vmem:[#allocation10 + $0x80] sm:$0xf]
    %v3110 = vld [vmem:[#allocation10 + $0x84] sm:$0xff]
    %v3111 = vld [vmem:[#allocation10 + $0x8c] sm:$0xf]
    %v3112 = vld [vmem:[#allocation10 + $0x90] sm:$0xff]
    %v3113 = vld [vmem:[#allocation10 + $0x98] sm:$0xf]
    %v3114 = vld [vmem:[#allocation10 + $0x9c] sm:$0xff]
    %v3115 = vld [vmem:[#allocation10 + $0xa4] sm:$0xf]
    %v3116 = vld [vmem:[#allocation10 + $0xa8] sm:$0xff]
    %v3117 = vld [vmem:[#allocation10 + $0xb0] sm:$0xf]
    %v3118 = vld [vmem:[#allocation10 + $0xb4] sm:$0xff]
    %v3119 = vld [vmem:[#allocation10 + $0xbc] sm:$0xf]
    %v3120 = vld [vmem:[#allocation10 + $0xc0] sm:$0xff]
    %v3121 = vld [vmem:[#allocation10 + $0xc8] sm:$0xf]
    %v3122 = vld [vmem:[#allocation10 + $0xcc] sm:$0xff]
    %v3123 = vld [vmem:[#allocation10 + $0xd4] sm:$0xf]
    %v3124 = vld [vmem:[#allocation10 + $0xd8] sm:$0xff]
    %v3125 = vld [vmem:[#allocation10 + $0xe0] sm:$0xf]
    %v3126 = vld [vmem:[#allocation10 + $0xe4] sm:$0xff]
    %v3127 = vld [vmem:[#allocation10 + $0xec] sm:$0xf]
    %v3128 = vld [vmem:[#allocation10 + $0xf0] sm:$0xff]
    %v3129 = vld [vmem:[#allocation10 + $0xf8] sm:$0xf]
    %v3130 = vld [vmem:[#allocation10 + $0xfc] sm:$0xff]
    %v3131 = vld [vmem:[#allocation10 + $0x104] sm:$0xf]
    %v3132 = vld [vmem:[#allocation10 + $0x108] sm:$0xff]
    %v3133 = vld [vmem:[#allocation10 + $0x110] sm:$0xf]
    %v3134 = vld [vmem:[#allocation10 + $0x114] sm:$0xff]
    %v3135 = vld [vmem:[#allocation10 + $0x11c] sm:$0xf]
    %v3136 = vld [vmem:[#allocation10 + $0x120] sm:$0xff]
    %v3137 = vld [vmem:[#allocation10 + $0x128] sm:$0xf]
    %v3138 = vld [vmem:[#allocation10 + $0x12c] sm:$0xff]
    %v3139 = vld [vmem:[#allocation10 + $0x134] sm:$0xf]
    %v3140 = vld [vmem:[#allocation10 + $0x138] sm:$0xff]
    %v3141 = vld [vmem:[#allocation10 + $0x140] sm:$0xf]
    %v3142 = vld [vmem:[#allocation10 + $0x144] sm:$0xff]
    %v3143 = vld [vmem:[#allocation10 + $0x14c] sm:$0xf]
    %v3144 = vld [vmem:[#allocation10 + $0x150] sm:$0xff]
    %v3145 = vld [vmem:[#allocation10 + $0x158] sm:$0xf]
    %v3146 = vld [vmem:[#allocation10 + $0x15c] sm:$0xff]
    %v3147 = vld [vmem:[#allocation10 + $0x164] sm:$0xf]
    %v3148 = vld [vmem:[#allocation10 + $0x168] sm:$0xff]
    %v3149 = vld [vmem:[#allocation10 + $0x170] sm:$0xf]
    %v3150 = vld [vmem:[#allocation10 + $0x174] sm:$0xff]
    %v3151 = vld [vmem:[#allocation10 + $0x17c] sm:$0xf]
    %v3152 = vld [vmem:[#allocation10 + $0x180] sm:$0xff]
    %v3153 = vld [vmem:[#allocation10 + $0x188] sm:$0xf]
    %v3154 = vld [vmem:[#allocation10 + $0x18c] sm:$0xff]
    %v3155 = vld [vmem:[#allocation10 + $0x194] sm:$0xf]
    %v3156 = vld [vmem:[#allocation10 + $0x198] sm:$0xff]
    %v3157 = vld [vmem:[#allocation10 + $0x1a0] sm:$0xf]
    %v3158 = vld [vmem:[#allocation10 + $0x1a4] sm:$0xff]
    %v3159 = vld [vmem:[#allocation10 + $0x1ac] sm:$0xf]
    %v3160 = vld [vmem:[#allocation10 + $0x1b0] sm:$0xff]
    %v3161 = vld [vmem:[#allocation10 + $0x1b8] sm:$0xf]
    %v3162 = vld [vmem:[#allocation10 + $0x1bc] sm:$0xff]
    %v3163 = vld [vmem:[#allocation10 + $0x1c4] sm:$0xf]
    %v3164 = vld [vmem:[#allocation10 + $0x1c8] sm:$0xff]
    %v3165 = vld [vmem:[#allocation10 + $0x1d0] sm:$0xf]
    %v3166 = vld [vmem:[#allocation10 + $0x1d4] sm:$0xff]
    %v3167 = vld [vmem:[#allocation10 + $0x1dc] sm:$0xf]
    %v3168 = vld [vmem:[#allocation10 + $0x1e0] sm:$0xff]
    %v3169 = vld [vmem:[#allocation10 + $0x1e8] sm:$0xf]
    %v3170 = vld [vmem:[#allocation10 + $0x1ec] sm:$0xff]
    %v3171 = vld [vmem:[#allocation10 + $0x1f4] sm:$0xf]
    %v3172 = vld [vmem:[#allocation10 + $0x1f8] sm:$0xff]
    %v3173 = vld [vmem:[#allocation10 + $0x200] sm:$0xf]
    %v3174 = vld [vmem:[#allocation10 + $0x204] sm:$0xff]
    %v3175 = vld [vmem:[#allocation10 + $0x20c] sm:$0xf]
    %v3176 = vld [vmem:[#allocation10 + $0x210] sm:$0xff]
    %v3177 = vld [vmem:[#allocation10 + $0x218] sm:$0xf]
    %v3178 = vld [vmem:[#allocation10 + $0x21c] sm:$0xff]
    %v3179 = vld [vmem:[#allocation10 + $0x224] sm:$0xf]
    %v3180 = vld [vmem:[#allocation10 + $0x228] sm:$0xff]
    %v3181 = vld [vmem:[#allocation10 + $0x230] sm:$0xf]
    %v3182 = vld [vmem:[#allocation10 + $0x234] sm:$0xff]
    %v3183 = vld [vmem:[#allocation10 + $0x23c] sm:$0xf]
    %v3184 = vld [vmem:[#allocation10 + $0x240] sm:$0xff]
    %v3185 = vld [vmem:[#allocation10 + $0x248] sm:$0xf]
    %v3186 = vld [vmem:[#allocation10 + $0x24c] sm:$0xff]
    %v3187 = vld [vmem:[#allocation10 + $0x254] sm:$0xf]
    %v3188 = vld [vmem:[#allocation10 + $0x258] sm:$0xff]
    %v3189 = vld [vmem:[#allocation10 + $0x260] sm:$0xf]
    %v3190 = vld [vmem:[#allocation10 + $0x264] sm:$0xff]
    %v3191 = vld [vmem:[#allocation10 + $0x26c] sm:$0xf]
    %v3192 = vld [vmem:[#allocation10 + $0x270] sm:$0xff]
    %v3193 = vld [vmem:[#allocation10 + $0x278] sm:$0xf]
    %v3194 = vld [vmem:[#allocation10 + $0x27c] sm:$0xff]
    %v3195 = vld [vmem:[#allocation10 + $0x284] sm:$0xf]
    %v3196 = vld [vmem:[#allocation10 + $0x288] sm:$0xff]
    %v3197 = vld [vmem:[#allocation10 + $0x290] sm:$0xf]
    %v3198 = vld [vmem:[#allocation10 + $0x294] sm:$0xff]
    %v3199 = vld [vmem:[#allocation10 + $0x29c] sm:$0xf]
    %v3200 = vld [vmem:[#allocation10 + $0x2a0] sm:$0xff]
    %v3201 = vld [vmem:[#allocation10 + $0x2a8] sm:$0xf]
    %v3202 = vld [vmem:[#allocation10 + $0x2ac] sm:$0xff]
    %v3203 = vld [vmem:[#allocation10 + $0x2b4] sm:$0xf]
    %v3204 = vld [vmem:[#allocation10 + $0x2b8] sm:$0xff]
    %v3205 = vld [vmem:[#allocation10 + $0x2c0] sm:$0xf]
    %v3206 = vld [vmem:[#allocation10 + $0x2c4] sm:$0xff]
    %v3207 = vld [vmem:[#allocation10 + $0x2cc] sm:$0xf]
    %v3208 = vld [vmem:[#allocation10 + $0x2d0] sm:$0xff]
    %v3209 = vld [vmem:[#allocation10 + $0x2d8] sm:$0xf]
    %v3210 = vld [vmem:[#allocation10 + $0x2dc] sm:$0xff]
    %v3211 = vld [vmem:[#allocation10 + $0x2e4] sm:$0xf]
    %v3212 = vld [vmem:[#allocation10 + $0x2e8] sm:$0xff]
    %v3213 = vld [vmem:[#allocation10 + $0x2f0] sm:$0xf]
    %v3214 = vld [vmem:[#allocation10 + $0x2f4] sm:$0xff]
    %v3215 = vld [vmem:[#allocation10 + $0x2fc] sm:$0xf]
    %v3216 = vld [vmem:[#allocation10 + $0x300] sm:$0xff]
    %v3217 = vld [vmem:[#allocation10 + $0x308] sm:$0xf]
    %v3218 = vld [vmem:[#allocation10 + $0x30c] sm:$0xff]
    %v3219 = vld [vmem:[#allocation10 + $0x314] sm:$0xf]
    %v3220 = vld [vmem:[#allocation10 + $0x318] sm:$0xff]
    %v3221 = vld [vmem:[#allocation10 + $0x320] sm:$0xf]
    %v3222 = vld [vmem:[#allocation10 + $0x324] sm:$0xff]
    %v3223 = vld [vmem:[#allocation10 + $0x32c] sm:$0xf]
    %v3224 = vld [vmem:[#allocation10 + $0x330] sm:$0xff]
    %v3225 = vld [vmem:[#allocation10 + $0x338] sm:$0xf]
    %v3226 = vld [vmem:[#allocation10 + $0x33c] sm:$0xff]
    %v3227 = vld [vmem:[#allocation10 + $0x344] sm:$0xf]
    %v3228 = vld [vmem:[#allocation10 + $0x348] sm:$0xff]
    %v3229 = vld [vmem:[#allocation10 + $0x350] sm:$0xf]
    %v3230 = vld [vmem:[#allocation10 + $0x354] sm:$0xff]
    %v3231 = vld [vmem:[#allocation10 + $0x35c] sm:$0xf]
    %v3232 = vld [vmem:[#allocation10 + $0x360] sm:$0xff]
    %v3233 = vld [vmem:[#allocation10 + $0x368] sm:$0xf]
    %v3234 = vld [vmem:[#allocation10 + $0x36c] sm:$0xff]
    %v3235 = vld [vmem:[#allocation10 + $0x374] sm:$0xf]
    %v3236 = vld [vmem:[#allocation10 + $0x378] sm:$0xff]
    %v3237 = vld [vmem:[#allocation10 + $0x380] sm:$0xf]
    %v3238 = vld [vmem:[#allocation10 + $0x384] sm:$0xff]
    %v3239 = vld [vmem:[#allocation10 + $0x38c] sm:$0xf]
    %v3240 = vld [vmem:[#allocation10 + $0x390] sm:$0xff]
    %v3241 = vld [vmem:[#allocation10 + $0x398] sm:$0xf]
    %v3242 = vld [vmem:[#allocation10 + $0x39c] sm:$0xff]
    %v3243 = vld [vmem:[#allocation10 + $0x3a4] sm:$0xf]
    %v3244 = vld [vmem:[#allocation10 + $0x3a8] sm:$0xff]
    %v3245 = vld [vmem:[#allocation10 + $0x3b0] sm:$0xf]
    %v3246 = vld [vmem:[#allocation10 + $0x3b4] sm:$0xff]
    %v3247 = vld [vmem:[#allocation10 + $0x3bc] sm:$0xf]
    %v3248 = vld [vmem:[#allocation10 + $0x3c0] sm:$0xff]
    %v3249 = vld [vmem:[#allocation10 + $0x3c8] sm:$0xf]
    %v3250 = vld [vmem:[#allocation10 + $0x3cc] sm:$0xff]
    %v3251 = vld [vmem:[#allocation10 + $0x3d4] sm:$0xf]
    %v3252 = vld [vmem:[#allocation10 + $0x3d8] sm:$0xff]
    %v3253 = vld [vmem:[#allocation10 + $0x3e0] sm:$0xf]
    %v3254 = vld [vmem:[#allocation10 + $0x3e4] sm:$0xff]
    %v3255 = vld [vmem:[#allocation10 + $0x3ec] sm:$0xf]
    %v3256 = vld [vmem:[#allocation10 + $0x3f0] sm:$0xff]
    %v3257 = vld [vmem:[#allocation10 + $0x3f8] sm:$0xf]
    %v3258 = vld [vmem:[#allocation10 + $0x3fc] sm:$0xff]
    %v3259 = vld [vmem:[#allocation10 + $0x404] sm:$0xf]
    %v3260 = vld [vmem:[#allocation10 + $0x408] sm:$0xff]
    %v3261 = vld [vmem:[#allocation10 + $0x410] sm:$0xf]
    %v3262 = vld [vmem:[#allocation10 + $0x414] sm:$0xff]
    %v3263 = vld [vmem:[#allocation10 + $0x41c] sm:$0xf]
    %v3264 = vld [vmem:[#allocation10 + $0x420] sm:$0xff]
    %v3265 = vld [vmem:[#allocation10 + $0x428] sm:$0xf]
    %v3266 = vld [vmem:[#allocation10 + $0x42c] sm:$0xff]
    %v3267 = vld [vmem:[#allocation10 + $0x434] sm:$0xf]
    %v3268 = vld [vmem:[#allocation10 + $0x438] sm:$0xff]
    %v3269 = vld [vmem:[#allocation10 + $0x440] sm:$0xf]
    %v3270 = vld [vmem:[#allocation10 + $0x444] sm:$0xff]
    %v3271 = vld [vmem:[#allocation10 + $0x44c] sm:$0xf]
    %v3272 = vld [vmem:[#allocation10 + $0x450] sm:$0xff]
    %v3273 = vld [vmem:[#allocation10 + $0x458] sm:$0xf]
    %v3274 = vld [vmem:[#allocation10 + $0x45c] sm:$0xff]
    %v3275 = vld [vmem:[#allocation10 + $0x464] sm:$0xf]
    %v3276 = vld [vmem:[#allocation10 + $0x468] sm:$0xff]
    %v3277 = vld [vmem:[#allocation10 + $0x470] sm:$0xf]
    %v3278 = vld [vmem:[#allocation10 + $0x474] sm:$0xff]
    %v3279 = vld [vmem:[#allocation10 + $0x47c] sm:$0xf]
    %v3280 = vld [vmem:[#allocation10 + $0x480] sm:$0xff]
    %v3281 = vld [vmem:[#allocation10 + $0x488] sm:$0xf]
    %v3282 = vld [vmem:[#allocation10 + $0x48c] sm:$0xff]
    %v3283 = vld [vmem:[#allocation10 + $0x494] sm:$0xf]
    %v3284 = vld [vmem:[#allocation10 + $0x498] sm:$0xff]
    %v3285 = vld [vmem:[#allocation10 + $0x4a0] sm:$0xf]
    %v3286 = vld [vmem:[#allocation10 + $0x4a4] sm:$0xff]
    %v3287 = vld [vmem:[#allocation10 + $0x4ac] sm:$0xf]
    %v3288 = vld [vmem:[#allocation10 + $0x4b0] sm:$0xff]
    %v3289 = vld [vmem:[#allocation10 + $0x4b8] sm:$0xf]
    %v3290 = vld [vmem:[#allocation10 + $0x4bc] sm:$0xff]
    %v3291 = vld [vmem:[#allocation10 + $0x4c4] sm:$0xf]
    %v3292 = vld [vmem:[#allocation10 + $0x4c8] sm:$0xff]
    %v3293 = vld [vmem:[#allocation10 + $0x4d0] sm:$0xf]
    %v3294 = vld [vmem:[#allocation10 + $0x4d4] sm:$0xff]
    %v3295 = vld [vmem:[#allocation10 + $0x4dc] sm:$0xf]
    %v3296 = vld [vmem:[#allocation10 + $0x4e0] sm:$0xff]
    %v3297 = vld [vmem:[#allocation10 + $0x4e8] sm:$0xf]
    %v3298 = vld [vmem:[#allocation10 + $0x4ec] sm:$0xff]
    %v3299 = vld [vmem:[#allocation10 + $0x4f4] sm:$0xf]
    %v3300 = vld [vmem:[#allocation10 + $0x4f8] sm:$0xff]
    %v3301 = vld [vmem:[#allocation10 + $0x500] sm:$0xf]
    %v3302 = vld [vmem:[#allocation10 + $0x504] sm:$0xff]
    %v3303 = vld [vmem:[#allocation10 + $0x50c] sm:$0xf]
    %v3304 = vld [vmem:[#allocation10 + $0x510] sm:$0xff]
    %v3305 = vld [vmem:[#allocation10 + $0x518] sm:$0xf]
    %v3306 = vld [vmem:[#allocation10 + $0x51c] sm:$0xff]
    %v3307 = vld [vmem:[#allocation10 + $0x524] sm:$0xf]
    %v3308 = vld [vmem:[#allocation10 + $0x528] sm:$0xff]
    %v3309 = vld [vmem:[#allocation10 + $0x530] sm:$0xf]
    %v3310 = vld [vmem:[#allocation10 + $0x534] sm:$0xff]
    %v3311 = vld [vmem:[#allocation10 + $0x53c] sm:$0xf]
    %v3312 = vld [vmem:[#allocation10 + $0x540] sm:$0xff]
    %v3313 = vld [vmem:[#allocation10 + $0x548] sm:$0xf]
    %v3314 = vld [vmem:[#allocation10 + $0x54c] sm:$0xff]
    %v3315 = vld [vmem:[#allocation10 + $0x554] sm:$0xf]
    %v3316 = vld [vmem:[#allocation10 + $0x558] sm:$0xff]
    %v3317 = vld [vmem:[#allocation10 + $0x560] sm:$0xf]
    %v3318 = vld [vmem:[#allocation10 + $0x564] sm:$0xff]
    %v3319 = vld [vmem:[#allocation10 + $0x56c] sm:$0xf]
    %v3320 = vld [vmem:[#allocation10 + $0x570] sm:$0xff]
    %v3321 = vld [vmem:[#allocation10 + $0x578] sm:$0xf]
    %v3322 = vld [vmem:[#allocation10 + $0x57c] sm:$0xff]
    %v3323 = vld [vmem:[#allocation10 + $0x584] sm:$0xf]
    %v3324 = vld [vmem:[#allocation10 + $0x588] sm:$0xff]
    %v3325 = vld [vmem:[#allocation10 + $0x590] sm:$0xf]
    %v3326 = vld [vmem:[#allocation10 + $0x594] sm:$0xff]
    %v3327 = vld [vmem:[#allocation10 + $0x59c] sm:$0xf]
    %v3328 = vld [vmem:[#allocation10 + $0x5a0] sm:$0xff]
    %v3329 = vld [vmem:[#allocation10 + $0x5a8] sm:$0xf]
    %v3330 = vld [vmem:[#allocation10 + $0x5ac] sm:$0xff]
    %v3331 = vld [vmem:[#allocation10 + $0x5b4] sm:$0xf]
    %v3332 = vld [vmem:[#allocation10 + $0x5b8] sm:$0xff]
    %v3333 = vld [vmem:[#allocation10 + $0x5c0] sm:$0xf]
    %v3334 = vld [vmem:[#allocation10 + $0x5c4] sm:$0xff]
    %v3335 = vld [vmem:[#allocation10 + $0x5cc] sm:$0xf]
    %v3336 = vld [vmem:[#allocation10 + $0x5d0] sm:$0xff]
    %v3337 = vld [vmem:[#allocation10 + $0x5d8] sm:$0xf]
    %v3338 = vld [vmem:[#allocation10 + $0x5dc] sm:$0xff]
    %v3339 = vld [vmem:[#allocation10 + $0x5e4] sm:$0xf]
    %v3340 = vld [vmem:[#allocation10 + $0x5e8] sm:$0xff]
    %v3341 = vld [vmem:[#allocation10 + $0x5f0] sm:$0xf]
    %v3342 = vld [vmem:[#allocation10 + $0x5f4] sm:$0xff]
    %v3343 = vld [vmem:[#allocation10 + $0x5fc] sm:$0xf]
    %v3344 = vld [vmem:[#allocation11] sm:$0x7]
    %v3346 = vlaneseq
    %v3347 = vshrl.u32 %v3346, 7
    %v3348 = vsub.s32 0, %v3347
    %v3349 = vrot.slane %v3344, %v3348
    %v3350 = vlaneseq
    %v3351 = vshrl.u32 %v3350, 7
    %v3352 = vsub.s32 1, %v3351
    %v3353 = vrot.slane %v3344, %v3352
    %v3354 = vlaneseq
    %v3355 = vshrl.u32 %v3354, 7
    %v3356 = vsub.s32 2, %v3355
    %v3357 = vrot.slane %v3344, %v3356
    %v3617 = vunpack.c.l.b16 %v3088
    %v3618 = vunpack.c.h.b16 %v3088
    %v3619 = vunpack.c.l.b16 %v3089
    %v3620 = vunpack.c.l.b16 %v3090
    %v3621 = vunpack.c.h.b16 %v3090
    %v3622 = vunpack.c.l.b16 %v3091
    %v3623 = vunpack.c.l.b16 %v3092
    %v3624 = vunpack.c.h.b16 %v3092
    %v3625 = vunpack.c.l.b16 %v3093
    %v3626 = vunpack.c.l.b16 %v3094
    %v3627 = vunpack.c.h.b16 %v3094
    %v3628 = vunpack.c.l.b16 %v3095
    %v3629 = vunpack.c.l.b16 %v3096
    %v3630 = vunpack.c.h.b16 %v3096
    %v3631 = vunpack.c.l.b16 %v3097
    %v3632 = vunpack.c.l.b16 %v3098
    %v3633 = vunpack.c.h.b16 %v3098
    %v3634 = vunpack.c.l.b16 %v3099
    %v3635 = vunpack.c.l.b16 %v3100
    %v3636 = vunpack.c.h.b16 %v3100
    %v3637 = vunpack.c.l.b16 %v3101
    %v3638 = vunpack.c.l.b16 %v3102
    %v3639 = vunpack.c.h.b16 %v3102
    %v3640 = vunpack.c.l.b16 %v3103
    %v3641 = vunpack.c.l.b16 %v3104
    %v3642 = vunpack.c.h.b16 %v3104
    %v3643 = vunpack.c.l.b16 %v3105
    %v3644 = vunpack.c.l.b16 %v3106
    %v3645 = vunpack.c.h.b16 %v3106
    %v3646 = vunpack.c.l.b16 %v3107
    %v3647 = vunpack.c.l.b16 %v3108
    %v3648 = vunpack.c.h.b16 %v3108
    %v3649 = vunpack.c.l.b16 %v3109
    %v3650 = vunpack.c.l.b16 %v3110
    %v3651 = vunpack.c.h.b16 %v3110
    %v3652 = vunpack.c.l.b16 %v3111
    %v3653 = vunpack.c.l.b16 %v3112
    %v3654 = vunpack.c.h.b16 %v3112
    %v3655 = vunpack.c.l.b16 %v3113
    %v3656 = vunpack.c.l.b16 %v3114
    %v3657 = vunpack.c.h.b16 %v3114
    %v3658 = vunpack.c.l.b16 %v3115
    %v3659 = vunpack.c.l.b16 %v3116
    %v3660 = vunpack.c.h.b16 %v3116
    %v3661 = vunpack.c.l.b16 %v3117
    %v3662 = vunpack.c.l.b16 %v3118
    %v3663 = vunpack.c.h.b16 %v3118
    %v3664 = vunpack.c.l.b16 %v3119
    %v3665 = vunpack.c.l.b16 %v3120
    %v3666 = vunpack.c.h.b16 %v3120
    %v3667 = vunpack.c.l.b16 %v3121
    %v3668 = vunpack.c.l.b16 %v3122
    %v3669 = vunpack.c.h.b16 %v3122
    %v3670 = vunpack.c.l.b16 %v3123
    %v3671 = vunpack.c.l.b16 %v3124
    %v3672 = vunpack.c.h.b16 %v3124
    %v3673 = vunpack.c.l.b16 %v3125
    %v3674 = vunpack.c.l.b16 %v3126
    %v3675 = vunpack.c.h.b16 %v3126
    %v3676 = vunpack.c.l.b16 %v3127
    %v3677 = vunpack.c.l.b16 %v3128
    %v3678 = vunpack.c.h.b16 %v3128
    %v3679 = vunpack.c.l.b16 %v3129
    %v3680 = vunpack.c.l.b16 %v3130
    %v3681 = vunpack.c.h.b16 %v3130
    %v3682 = vunpack.c.l.b16 %v3131
    %v3683 = vunpack.c.l.b16 %v3132
    %v3684 = vunpack.c.h.b16 %v3132
    %v3685 = vunpack.c.l.b16 %v3133
    %v3686 = vunpack.c.l.b16 %v3134
    %v3687 = vunpack.c.h.b16 %v3134
    %v3688 = vunpack.c.l.b16 %v3135
    %v3689 = vunpack.c.l.b16 %v3136
    %v3690 = vunpack.c.h.b16 %v3136
    %v3691 = vunpack.c.l.b16 %v3137
    %v3692 = vunpack.c.l.b16 %v3138
    %v3693 = vunpack.c.h.b16 %v3138
    %v3694 = vunpack.c.l.b16 %v3139
    %v3695 = vunpack.c.l.b16 %v3140
    %v3696 = vunpack.c.h.b16 %v3140
    %v3697 = vunpack.c.l.b16 %v3141
    %v3698 = vunpack.c.l.b16 %v3142
    %v3699 = vunpack.c.h.b16 %v3142
    %v3700 = vunpack.c.l.b16 %v3143
    %v3701 = vunpack.c.l.b16 %v3144
    %v3702 = vunpack.c.h.b16 %v3144
    %v3703 = vunpack.c.l.b16 %v3145
    %v3704 = vunpack.c.l.b16 %v3146
    %v3705 = vunpack.c.h.b16 %v3146
    %v3706 = vunpack.c.l.b16 %v3147
    %v3707 = vunpack.c.l.b16 %v3148
    %v3708 = vunpack.c.h.b16 %v3148
    %v3709 = vunpack.c.l.b16 %v3149
    %v3710 = vunpack.c.l.b16 %v3150
    %v3711 = vunpack.c.h.b16 %v3150
    %v3712 = vunpack.c.l.b16 %v3151
    %v3713 = vunpack.c.l.b16 %v3152
    %v3714 = vunpack.c.h.b16 %v3152
    %v3715 = vunpack.c.l.b16 %v3153
    %v3716 = vunpack.c.l.b16 %v3154
    %v3717 = vunpack.c.h.b16 %v3154
    %v3718 = vunpack.c.l.b16 %v3155
    %v3719 = vunpack.c.l.b16 %v3156
    %v3720 = vunpack.c.h.b16 %v3156
    %v3721 = vunpack.c.l.b16 %v3157
    %v3722 = vunpack.c.l.b16 %v3158
    %v3723 = vunpack.c.h.b16 %v3158
    %v3724 = vunpack.c.l.b16 %v3159
    %v3725 = vunpack.c.l.b16 %v3160
    %v3726 = vunpack.c.h.b16 %v3160
    %v3727 = vunpack.c.l.b16 %v3161
    %v3728 = vunpack.c.l.b16 %v3162
    %v3729 = vunpack.c.h.b16 %v3162
    %v3730 = vunpack.c.l.b16 %v3163
    %v3731 = vunpack.c.l.b16 %v3164
    %v3732 = vunpack.c.h.b16 %v3164
    %v3733 = vunpack.c.l.b16 %v3165
    %v3734 = vunpack.c.l.b16 %v3166
    %v3735 = vunpack.c.h.b16 %v3166
    %v3736 = vunpack.c.l.b16 %v3167
    %v3737 = vunpack.c.l.b16 %v3168
    %v3738 = vunpack.c.h.b16 %v3168
    %v3739 = vunpack.c.l.b16 %v3169
    %v3740 = vunpack.c.l.b16 %v3170
    %v3741 = vunpack.c.h.b16 %v3170
    %v3742 = vunpack.c.l.b16 %v3171
    %v3743 = vunpack.c.l.b16 %v3172
    %v3744 = vunpack.c.h.b16 %v3172
    %v3745 = vunpack.c.l.b16 %v3173
    %v3746 = vunpack.c.l.b16 %v3174
    %v3747 = vunpack.c.h.b16 %v3174
    %v3748 = vunpack.c.l.b16 %v3175
    %v3749 = vunpack.c.l.b16 %v3176
    %v3750 = vunpack.c.h.b16 %v3176
    %v3751 = vunpack.c.l.b16 %v3177
    %v3752 = vunpack.c.l.b16 %v3178
    %v3753 = vunpack.c.h.b16 %v3178
    %v3754 = vunpack.c.l.b16 %v3179
    %v3755 = vunpack.c.l.b16 %v3180
    %v3756 = vunpack.c.h.b16 %v3180
    %v3757 = vunpack.c.l.b16 %v3181
    %v3758 = vunpack.c.l.b16 %v3182
    %v3759 = vunpack.c.h.b16 %v3182
    %v3760 = vunpack.c.l.b16 %v3183
    %v3761 = vunpack.c.l.b16 %v3184
    %v3762 = vunpack.c.h.b16 %v3184
    %v3763 = vunpack.c.l.b16 %v3185
    %v3764 = vunpack.c.l.b16 %v3186
    %v3765 = vunpack.c.h.b16 %v3186
    %v3766 = vunpack.c.l.b16 %v3187
    %v3767 = vunpack.c.l.b16 %v3188
    %v3768 = vunpack.c.h.b16 %v3188
    %v3769 = vunpack.c.l.b16 %v3189
    %v3770 = vunpack.c.l.b16 %v3190
    %v3771 = vunpack.c.h.b16 %v3190
    %v3772 = vunpack.c.l.b16 %v3191
    %v3773 = vunpack.c.l.b16 %v3192
    %v3774 = vunpack.c.h.b16 %v3192
    %v3775 = vunpack.c.l.b16 %v3193
    %v3776 = vunpack.c.l.b16 %v3194
    %v3777 = vunpack.c.h.b16 %v3194
    %v3778 = vunpack.c.l.b16 %v3195
    %v3779 = vunpack.c.l.b16 %v3196
    %v3780 = vunpack.c.h.b16 %v3196
    %v3781 = vunpack.c.l.b16 %v3197
    %v3782 = vunpack.c.l.b16 %v3198
    %v3783 = vunpack.c.h.b16 %v3198
    %v3784 = vunpack.c.l.b16 %v3199
    %v3785 = vunpack.c.l.b16 %v3200
    %v3786 = vunpack.c.h.b16 %v3200
    %v3787 = vunpack.c.l.b16 %v3201
    %v3788 = vunpack.c.l.b16 %v3202
    %v3789 = vunpack.c.h.b16 %v3202
    %v3790 = vunpack.c.l.b16 %v3203
    %v3791 = vunpack.c.l.b16 %v3204
    %v3792 = vunpack.c.h.b16 %v3204
    %v3793 = vunpack.c.l.b16 %v3205
    %v3794 = vunpack.c.l.b16 %v3206
    %v3795 = vunpack.c.h.b16 %v3206
    %v3796 = vunpack.c.l.b16 %v3207
    %v3797 = vunpack.c.l.b16 %v3208
    %v3798 = vunpack.c.h.b16 %v3208
    %v3799 = vunpack.c.l.b16 %v3209
    %v3800 = vunpack.c.l.b16 %v3210
    %v3801 = vunpack.c.h.b16 %v3210
    %v3802 = vunpack.c.l.b16 %v3211
    %v3803 = vunpack.c.l.b16 %v3212
    %v3804 = vunpack.c.h.b16 %v3212
    %v3805 = vunpack.c.l.b16 %v3213
    %v3806 = vunpack.c.l.b16 %v3214
    %v3807 = vunpack.c.h.b16 %v3214
    %v3808 = vunpack.c.l.b16 %v3215
    %v3809 = vunpack.c.l.b16 %v3216
    %v3810 = vunpack.c.h.b16 %v3216
    %v3811 = vunpack.c.l.b16 %v3217
    %v3812 = vunpack.c.l.b16 %v3218
    %v3813 = vunpack.c.h.b16 %v3218
    %v3814 = vunpack.c.l.b16 %v3219
    %v3815 = vunpack.c.l.b16 %v3220
    %v3816 = vunpack.c.h.b16 %v3220
    %v3817 = vunpack.c.l.b16 %v3221
    %v3818 = vunpack.c.l.b16 %v3222
    %v3819 = vunpack.c.h.b16 %v3222
    %v3820 = vunpack.c.l.b16 %v3223
    %v3821 = vunpack.c.l.b16 %v3224
    %v3822 = vunpack.c.h.b16 %v3224
    %v3823 = vunpack.c.l.b16 %v3225
    %v3824 = vunpack.c.l.b16 %v3226
    %v3825 = vunpack.c.h.b16 %v3226
    %v3826 = vunpack.c.l.b16 %v3227
    %v3827 = vunpack.c.l.b16 %v3228
    %v3828 = vunpack.c.h.b16 %v3228
    %v3829 = vunpack.c.l.b16 %v3229
    %v3830 = vunpack.c.l.b16 %v3230
    %v3831 = vunpack.c.h.b16 %v3230
    %v3832 = vunpack.c.l.b16 %v3231
    %v3833 = vunpack.c.l.b16 %v3232
    %v3834 = vunpack.c.h.b16 %v3232
    %v3835 = vunpack.c.l.b16 %v3233
    %v3836 = vunpack.c.l.b16 %v3234
    %v3837 = vunpack.c.h.b16 %v3234
    %v3838 = vunpack.c.l.b16 %v3235
    %v3839 = vunpack.c.l.b16 %v3236
    %v3840 = vunpack.c.h.b16 %v3236
    %v3841 = vunpack.c.l.b16 %v3237
    %v3842 = vunpack.c.l.b16 %v3238
    %v3843 = vunpack.c.h.b16 %v3238
    %v3844 = vunpack.c.l.b16 %v3239
    %v3845 = vunpack.c.l.b16 %v3240
    %v3846 = vunpack.c.h.b16 %v3240
    %v3847 = vunpack.c.l.b16 %v3241
    %v3848 = vunpack.c.l.b16 %v3242
    %v3849 = vunpack.c.h.b16 %v3242
    %v3850 = vunpack.c.l.b16 %v3243
    %v3851 = vunpack.c.l.b16 %v3244
    %v3852 = vunpack.c.h.b16 %v3244
    %v3853 = vunpack.c.l.b16 %v3245
    %v3854 = vunpack.c.l.b16 %v3246
    %v3855 = vunpack.c.h.b16 %v3246
    %v3856 = vunpack.c.l.b16 %v3247
    %v3857 = vunpack.c.l.b16 %v3248
    %v3858 = vunpack.c.h.b16 %v3248
    %v3859 = vunpack.c.l.b16 %v3249
    %v3860 = vunpack.c.l.b16 %v3250
    %v3861 = vunpack.c.h.b16 %v3250
    %v3862 = vunpack.c.l.b16 %v3251
    %v3863 = vunpack.c.l.b16 %v3252
    %v3864 = vunpack.c.h.b16 %v3252
    %v3865 = vunpack.c.l.b16 %v3253
    %v3866 = vunpack.c.l.b16 %v3254
    %v3867 = vunpack.c.h.b16 %v3254
    %v3868 = vunpack.c.l.b16 %v3255
    %v3869 = vunpack.c.l.b16 %v3256
    %v3870 = vunpack.c.h.b16 %v3256
    %v3871 = vunpack.c.l.b16 %v3257
    %v3872 = vunpack.c.l.b16 %v3258
    %v3873 = vunpack.c.h.b16 %v3258
    %v3874 = vunpack.c.l.b16 %v3259
    %v3875 = vunpack.c.l.b16 %v3260
    %v3876 = vunpack.c.h.b16 %v3260
    %v3877 = vunpack.c.l.b16 %v3261
    %v3878 = vunpack.c.l.b16 %v3262
    %v3879 = vunpack.c.h.b16 %v3262
    %v3880 = vunpack.c.l.b16 %v3263
    %v3881 = vunpack.c.l.b16 %v3264
    %v3882 = vunpack.c.h.b16 %v3264
    %v3883 = vunpack.c.l.b16 %v3265
    %v3884 = vunpack.c.l.b16 %v3266
    %v3885 = vunpack.c.h.b16 %v3266
    %v3886 = vunpack.c.l.b16 %v3267
    %v3887 = vunpack.c.l.b16 %v3268
    %v3888 = vunpack.c.h.b16 %v3268
    %v3889 = vunpack.c.l.b16 %v3269
    %v3890 = vunpack.c.l.b16 %v3270
    %v3891 = vunpack.c.h.b16 %v3270
    %v3892 = vunpack.c.l.b16 %v3271
    %v3893 = vunpack.c.l.b16 %v3272
    %v3894 = vunpack.c.h.b16 %v3272
    %v3895 = vunpack.c.l.b16 %v3273
    %v3896 = vunpack.c.l.b16 %v3274
    %v3897 = vunpack.c.h.b16 %v3274
    %v3898 = vunpack.c.l.b16 %v3275
    %v3899 = vunpack.c.l.b16 %v3276
    %v3900 = vunpack.c.h.b16 %v3276
    %v3901 = vunpack.c.l.b16 %v3277
    %v3902 = vunpack.c.l.b16 %v3278
    %v3903 = vunpack.c.h.b16 %v3278
    %v3904 = vunpack.c.l.b16 %v3279
    %v3905 = vunpack.c.l.b16 %v3280
    %v3906 = vunpack.c.h.b16 %v3280
    %v3907 = vunpack.c.l.b16 %v3281
    %v3908 = vunpack.c.l.b16 %v3282
    %v3909 = vunpack.c.h.b16 %v3282
    %v3910 = vunpack.c.l.b16 %v3283
    %v3911 = vunpack.c.l.b16 %v3284
    %v3912 = vunpack.c.h.b16 %v3284
    %v3913 = vunpack.c.l.b16 %v3285
    %v3914 = vunpack.c.l.b16 %v3286
    %v3915 = vunpack.c.h.b16 %v3286
    %v3916 = vunpack.c.l.b16 %v3287
    %v3917 = vunpack.c.l.b16 %v3288
    %v3918 = vunpack.c.h.b16 %v3288
    %v3919 = vunpack.c.l.b16 %v3289
    %v3920 = vunpack.c.l.b16 %v3290
    %v3921 = vunpack.c.h.b16 %v3290
    %v3922 = vunpack.c.l.b16 %v3291
    %v3923 = vunpack.c.l.b16 %v3292
    %v3924 = vunpack.c.h.b16 %v3292
    %v3925 = vunpack.c.l.b16 %v3293
    %v3926 = vunpack.c.l.b16 %v3294
    %v3927 = vunpack.c.h.b16 %v3294
    %v3928 = vunpack.c.l.b16 %v3295
    %v3929 = vunpack.c.l.b16 %v3296
    %v3930 = vunpack.c.h.b16 %v3296
    %v3931 = vunpack.c.l.b16 %v3297
    %v3932 = vunpack.c.l.b16 %v3298
    %v3933 = vunpack.c.h.b16 %v3298
    %v3934 = vunpack.c.l.b16 %v3299
    %v3935 = vunpack.c.l.b16 %v3300
    %v3936 = vunpack.c.h.b16 %v3300
    %v3937 = vunpack.c.l.b16 %v3301
    %v3938 = vunpack.c.l.b16 %v3302
    %v3939 = vunpack.c.h.b16 %v3302
    %v3940 = vunpack.c.l.b16 %v3303
    %v3941 = vunpack.c.l.b16 %v3304
    %v3942 = vunpack.c.h.b16 %v3304
    %v3943 = vunpack.c.l.b16 %v3305
    %v3944 = vunpack.c.l.b16 %v3306
    %v3945 = vunpack.c.h.b16 %v3306
    %v3946 = vunpack.c.l.b16 %v3307
    %v3947 = vunpack.c.l.b16 %v3308
    %v3948 = vunpack.c.h.b16 %v3308
    %v3949 = vunpack.c.l.b16 %v3309
    %v3950 = vunpack.c.l.b16 %v3310
    %v3951 = vunpack.c.h.b16 %v3310
    %v3952 = vunpack.c.l.b16 %v3311
    %v3953 = vunpack.c.l.b16 %v3312
    %v3954 = vunpack.c.h.b16 %v3312
    %v3955 = vunpack.c.l.b16 %v3313
    %v3956 = vunpack.c.l.b16 %v3314
    %v3957 = vunpack.c.h.b16 %v3314
    %v3958 = vunpack.c.l.b16 %v3315
    %v3959 = vunpack.c.l.b16 %v3316
    %v3960 = vunpack.c.h.b16 %v3316
    %v3961 = vunpack.c.l.b16 %v3317
    %v3962 = vunpack.c.l.b16 %v3318
    %v3963 = vunpack.c.h.b16 %v3318
    %v3964 = vunpack.c.l.b16 %v3319
    %v3965 = vunpack.c.l.b16 %v3320
    %v3966 = vunpack.c.h.b16 %v3320
    %v3967 = vunpack.c.l.b16 %v3321
    %v3968 = vunpack.c.l.b16 %v3322
    %v3969 = vunpack.c.h.b16 %v3322
    %v3970 = vunpack.c.l.b16 %v3323
    %v3971 = vunpack.c.l.b16 %v3324
    %v3972 = vunpack.c.h.b16 %v3324
    %v3973 = vunpack.c.l.b16 %v3325
    %v3974 = vunpack.c.l.b16 %v3326
    %v3975 = vunpack.c.h.b16 %v3326
    %v3976 = vunpack.c.l.b16 %v3327
    %v3977 = vunpack.c.l.b16 %v3328
    %v3978 = vunpack.c.h.b16 %v3328
    %v3979 = vunpack.c.l.b16 %v3329
    %v3980 = vunpack.c.l.b16 %v3330
    %v3981 = vunpack.c.h.b16 %v3330
    %v3982 = vunpack.c.l.b16 %v3331
    %v3983 = vunpack.c.l.b16 %v3332
    %v3984 = vunpack.c.h.b16 %v3332
    %v3985 = vunpack.c.l.b16 %v3333
    %v3986 = vunpack.c.l.b16 %v3334
    %v3987 = vunpack.c.h.b16 %v3334
    %v3988 = vunpack.c.l.b16 %v3335
    %v3989 = vunpack.c.l.b16 %v3336
    %v3990 = vunpack.c.h.b16 %v3336
    %v3991 = vunpack.c.l.b16 %v3337
    %v3992 = vunpack.c.l.b16 %v3338
    %v3993 = vunpack.c.h.b16 %v3338
    %v3994 = vunpack.c.l.b16 %v3339
    %v3995 = vunpack.c.l.b16 %v3340
    %v3996 = vunpack.c.h.b16 %v3340
    %v3997 = vunpack.c.l.b16 %v3341
    %v3998 = vunpack.c.l.b16 %v3342
    %v3999 = vunpack.c.h.b16 %v3342
    %v4000 = vunpack.c.l.b16 %v3343
    %v4001 = vpack.c.b16 %v3620, %v3617
    %v4002 = vpack.c.b16 %v3621, %v3618
    %v4003 = vpack.c.b16 %v3622, %v3619
    %v4004 = vpack.c.b16 %v3626, %v3623
    %v4005 = vpack.c.b16 %v3627, %v3624
    %v4006 = vpack.c.b16 %v3628, %v3625
    %v4007 = vpack.c.b16 %v3632, %v3629
    %v4008 = vpack.c.b16 %v3633, %v3630
    %v4009 = vpack.c.b16 %v3634, %v3631
    %v4010 = vpack.c.b16 %v3638, %v3635
    %v4011 = vpack.c.b16 %v3639, %v3636
    %v4012 = vpack.c.b16 %v3640, %v3637
    %v4013 = vpack.c.b16 %v3644, %v3641
    %v4014 = vpack.c.b16 %v3645, %v3642
    %v4015 = vpack.c.b16 %v3646, %v3643
    %v4016 = vpack.c.b16 %v3650, %v3647
    %v4017 = vpack.c.b16 %v3651, %v3648
    %v4018 = vpack.c.b16 %v3652, %v3649
    %v4019 = vpack.c.b16 %v3656, %v3653
    %v4020 = vpack.c.b16 %v3657, %v3654
    %v4021 = vpack.c.b16 %v3658, %v3655
    %v4022 = vpack.c.b16 %v3662, %v3659
    %v4023 = vpack.c.b16 %v3663, %v3660
    %v4024 = vpack.c.b16 %v3664, %v3661
    %v4025 = vpack.c.b16 %v3668, %v3665
    %v4026 = vpack.c.b16 %v3669, %v3666
    %v4027 = vpack.c.b16 %v3670, %v3667
    %v4028 = vpack.c.b16 %v3674, %v3671
    %v4029 = vpack.c.b16 %v3675, %v3672
    %v4030 = vpack.c.b16 %v3676, %v3673
    %v4031 = vpack.c.b16 %v3680, %v3677
    %v4032 = vpack.c.b16 %v3681, %v3678
    %v4033 = vpack.c.b16 %v3682, %v3679
    %v4034 = vpack.c.b16 %v3686, %v3683
    %v4035 = vpack.c.b16 %v3687, %v3684
    %v4036 = vpack.c.b16 %v3688, %v3685
    %v4037 = vpack.c.b16 %v3692, %v3689
    %v4038 = vpack.c.b16 %v3693, %v3690
    %v4039 = vpack.c.b16 %v3694, %v3691
    %v4040 = vpack.c.b16 %v3698, %v3695
    %v4041 = vpack.c.b16 %v3699, %v3696
    %v4042 = vpack.c.b16 %v3700, %v3697
    %v4043 = vpack.c.b16 %v3704, %v3701
    %v4044 = vpack.c.b16 %v3705, %v3702
    %v4045 = vpack.c.b16 %v3706, %v3703
    %v4046 = vpack.c.b16 %v3710, %v3707
    %v4047 = vpack.c.b16 %v3711, %v3708
    %v4048 = vpack.c.b16 %v3712, %v3709
    %v4049 = vpack.c.b16 %v3716, %v3713
    %v4050 = vpack.c.b16 %v3717, %v3714
    %v4051 = vpack.c.b16 %v3718, %v3715
    %v4052 = vpack.c.b16 %v3722, %v3719
    %v4053 = vpack.c.b16 %v3723, %v3720
    %v4054 = vpack.c.b16 %v3724, %v3721
    %v4055 = vpack.c.b16 %v3728, %v3725
    %v4056 = vpack.c.b16 %v3729, %v3726
    %v4057 = vpack.c.b16 %v3730, %v3727
    %v4058 = vpack.c.b16 %v3734, %v3731
    %v4059 = vpack.c.b16 %v3735, %v3732
    %v4060 = vpack.c.b16 %v3736, %v3733
    %v4061 = vpack.c.b16 %v3740, %v3737
    %v4062 = vpack.c.b16 %v3741, %v3738
    %v4063 = vpack.c.b16 %v3742, %v3739
    %v4064 = vpack.c.b16 %v3746, %v3743
    %v4065 = vpack.c.b16 %v3747, %v3744
    %v4066 = vpack.c.b16 %v3748, %v3745
    %v4067 = vpack.c.b16 %v3752, %v3749
    %v4068 = vpack.c.b16 %v3753, %v3750
    %v4069 = vpack.c.b16 %v3754, %v3751
    %v4070 = vpack.c.b16 %v3758, %v3755
    %v4071 = vpack.c.b16 %v3759, %v3756
    %v4072 = vpack.c.b16 %v3760, %v3757
    %v4073 = vpack.c.b16 %v3764, %v3761
    %v4074 = vpack.c.b16 %v3765, %v3762
    %v4075 = vpack.c.b16 %v3766, %v3763
    %v4076 = vpack.c.b16 %v3770, %v3767
    %v4077 = vpack.c.b16 %v3771, %v3768
    %v4078 = vpack.c.b16 %v3772, %v3769
    %v4079 = vpack.c.b16 %v3776, %v3773
    %v4080 = vpack.c.b16 %v3777, %v3774
    %v4081 = vpack.c.b16 %v3778, %v3775
    %v4082 = vpack.c.b16 %v3782, %v3779
    %v4083 = vpack.c.b16 %v3783, %v3780
    %v4084 = vpack.c.b16 %v3784, %v3781
    %v4085 = vpack.c.b16 %v3788, %v3785
    %v4086 = vpack.c.b16 %v3789, %v3786
    %v4087 = vpack.c.b16 %v3790, %v3787
    %v4088 = vpack.c.b16 %v3794, %v3791
    %v4089 = vpack.c.b16 %v3795, %v3792
    %v4090 = vpack.c.b16 %v3796, %v3793
    %v4091 = vpack.c.b16 %v3800, %v3797
    %v4092 = vpack.c.b16 %v3801, %v3798
    %v4093 = vpack.c.b16 %v3802, %v3799
    %v4094 = vpack.c.b16 %v3806, %v3803
    %v4095 = vpack.c.b16 %v3807, %v3804
    %v4096 = vpack.c.b16 %v3808, %v3805
    %v4097 = vpack.c.b16 %v3812, %v3809
    %v4098 = vpack.c.b16 %v3813, %v3810
    %v4099 = vpack.c.b16 %v3814, %v3811
    %v4100 = vpack.c.b16 %v3818, %v3815
    %v4101 = vpack.c.b16 %v3819, %v3816
    %v4102 = vpack.c.b16 %v3820, %v3817
    %v4103 = vpack.c.b16 %v3824, %v3821
    %v4104 = vpack.c.b16 %v3825, %v3822
    %v4105 = vpack.c.b16 %v3826, %v3823
    %v4106 = vpack.c.b16 %v3830, %v3827
    %v4107 = vpack.c.b16 %v3831, %v3828
    %v4108 = vpack.c.b16 %v3832, %v3829
    %v4109 = vpack.c.b16 %v3836, %v3833
    %v4110 = vpack.c.b16 %v3837, %v3834
    %v4111 = vpack.c.b16 %v3838, %v3835
    %v4112 = vpack.c.b16 %v3842, %v3839
    %v4113 = vpack.c.b16 %v3843, %v3840
    %v4114 = vpack.c.b16 %v3844, %v3841
    %v4115 = vpack.c.b16 %v3848, %v3845
    %v4116 = vpack.c.b16 %v3849, %v3846
    %v4117 = vpack.c.b16 %v3850, %v3847
    %v4118 = vpack.c.b16 %v3854, %v3851
    %v4119 = vpack.c.b16 %v3855, %v3852
    %v4120 = vpack.c.b16 %v3856, %v3853
    %v4121 = vpack.c.b16 %v3860, %v3857
    %v4122 = vpack.c.b16 %v3861, %v3858
    %v4123 = vpack.c.b16 %v3862, %v3859
    %v4124 = vpack.c.b16 %v3866, %v3863
    %v4125 = vpack.c.b16 %v3867, %v3864
    %v4126 = vpack.c.b16 %v3868, %v3865
    %v4127 = vpack.c.b16 %v3872, %v3869
    %v4128 = vpack.c.b16 %v3873, %v3870
    %v4129 = vpack.c.b16 %v3874, %v3871
    %v4130 = vpack.c.b16 %v3878, %v3875
    %v4131 = vpack.c.b16 %v3879, %v3876
    %v4132 = vpack.c.b16 %v3880, %v3877
    %v4133 = vpack.c.b16 %v3884, %v3881
    %v4134 = vpack.c.b16 %v3885, %v3882
    %v4135 = vpack.c.b16 %v3886, %v3883
    %v4136 = vpack.c.b16 %v3890, %v3887
    %v4137 = vpack.c.b16 %v3891, %v3888
    %v4138 = vpack.c.b16 %v3892, %v3889
    %v4139 = vpack.c.b16 %v3896, %v3893
    %v4140 = vpack.c.b16 %v3897, %v3894
    %v4141 = vpack.c.b16 %v3898, %v3895
    %v4142 = vpack.c.b16 %v3902, %v3899
    %v4143 = vpack.c.b16 %v3903, %v3900
    %v4144 = vpack.c.b16 %v3904, %v3901
    %v4145 = vpack.c.b16 %v3908, %v3905
    %v4146 = vpack.c.b16 %v3909, %v3906
    %v4147 = vpack.c.b16 %v3910, %v3907
    %v4148 = vpack.c.b16 %v3914, %v3911
    %v4149 = vpack.c.b16 %v3915, %v3912
    %v4150 = vpack.c.b16 %v3916, %v3913
    %v4151 = vpack.c.b16 %v3920, %v3917
    %v4152 = vpack.c.b16 %v3921, %v3918
    %v4153 = vpack.c.b16 %v3922, %v3919
    %v4154 = vpack.c.b16 %v3926, %v3923
    %v4155 = vpack.c.b16 %v3927, %v3924
    %v4156 = vpack.c.b16 %v3928, %v3925
    %v4157 = vpack.c.b16 %v3932, %v3929
    %v4158 = vpack.c.b16 %v3933, %v3930
    %v4159 = vpack.c.b16 %v3934, %v3931
    %v4160 = vpack.c.b16 %v3938, %v3935
    %v4161 = vpack.c.b16 %v3939, %v3936
    %v4162 = vpack.c.b16 %v3940, %v3937
    %v4163 = vpack.c.b16 %v3944, %v3941
    %v4164 = vpack.c.b16 %v3945, %v3942
    %v4165 = vpack.c.b16 %v3946, %v3943
    %v4166 = vpack.c.b16 %v3950, %v3947
    %v4167 = vpack.c.b16 %v3951, %v3948
    %v4168 = vpack.c.b16 %v3952, %v3949
    %v4169 = vpack.c.b16 %v3956, %v3953
    %v4170 = vpack.c.b16 %v3957, %v3954
    %v4171 = vpack.c.b16 %v3958, %v3955
    %v4172 = vpack.c.b16 %v3962, %v3959
    %v4173 = vpack.c.b16 %v3963, %v3960
    %v4174 = vpack.c.b16 %v3964, %v3961
    %v4175 = vpack.c.b16 %v3968, %v3965
    %v4176 = vpack.c.b16 %v3969, %v3966
    %v4177 = vpack.c.b16 %v3970, %v3967
    %v4178 = vpack.c.b16 %v3974, %v3971
    %v4179 = vpack.c.b16 %v3975, %v3972
    %v4180 = vpack.c.b16 %v3976, %v3973
    %v4181 = vpack.c.b16 %v3980, %v3977
    %v4182 = vpack.c.b16 %v3981, %v3978
    %v4183 = vpack.c.b16 %v3982, %v3979
    %v4184 = vpack.c.b16 %v3986, %v3983
    %v4185 = vpack.c.b16 %v3987, %v3984
    %v4186 = vpack.c.b16 %v3988, %v3985
    %v4187 = vpack.c.b16 %v3992, %v3989
    %v4188 = vpack.c.b16 %v3993, %v3990
    %v4189 = vpack.c.b16 %v3994, %v3991
    %v4190 = vpack.c.b16 %v3998, %v3995
    %v4191 = vpack.c.b16 %v3999, %v3996
    %v4192 = vpack.c.b16 %v4000, %v3997
    %4385 = vmatprep.subr.bf16.mxu0 %v4002
    %4386 = vmatpush1.bf16.msra.mxu0 %v4001
    %4387 = vmatprep.subr.bf16.mxu0 %v4005
    %4388 = vmatpush1.bf16.msra.mxu0 %v4004
    %4389 = vmatprep.subr.bf16.mxu0 %v4008
    %4390 = vmatpush1.bf16.msra.mxu0 %v4007
    %4391 = vmatprep.subr.bf16.mxu0 %v4011
    %4392 = vmatpush1.bf16.msra.mxu0 %v4010
    %4393 = vmatprep.subr.bf16.mxu0 %v4014
    %4394 = vmatpush1.bf16.msra.mxu0 %v4013
    %4395 = vmatprep.subr.bf16.mxu0 %v4017
    %4396 = vmatpush1.bf16.msra.mxu0 %v4016
    %4397 = vmatprep.subr.bf16.mxu0 %v4020
    %4398 = vmatpush1.bf16.msra.mxu0 %v4019
    %4399 = vmatprep.subr.bf16.mxu0 %v4023
    %4400 = vmatpush1.bf16.msra.mxu0 %v4022
    %4401 = vmatprep.subr.bf16.mxu0 %v4026
    %4402 = vmatpush1.bf16.msra.mxu0 %v4025
    %4403 = vmatprep.subr.bf16.mxu0 %v4029
    %4404 = vmatpush1.bf16.msra.mxu0 %v4028
    %4405 = vmatprep.subr.bf16.mxu0 %v4032
    %4406 = vmatpush1.bf16.msra.mxu0 %v4031
    %4407 = vmatprep.subr.bf16.mxu0 %v4035
    %4408 = vmatpush1.bf16.msra.mxu0 %v4034
    %4409 = vmatprep.subr.bf16.mxu0 %v4038
    %4410 = vmatpush1.bf16.msra.mxu0 %v4037
    %4411 = vmatprep.subr.bf16.mxu0 %v4041
    %4412 = vmatpush1.bf16.msra.mxu0 %v4040
    %4413 = vmatprep.subr.bf16.mxu0 %v4044
    %4414 = vmatpush1.bf16.msra.mxu0 %v4043
    %4415 = vmatprep.subr.bf16.mxu0 %v4047
    %4416 = vmatpush1.bf16.msra.mxu0 %v4046
    %4417 = vmatprep.mubr.bf16.mxu0 %v3081
    %4418 = vmatmul.mubr.bf16.gmra.mrb[0].mxu0 %v3080
    %v4419 = vpop.f32.mrb[0].mxu0
    %v4420 = vadd.f32 %v3349, %v4419
    %v4421 = vpop.f32.mrb[0].mxu0
    %v4422 = vadd.f32 %v3353, %v4421
    %v4423 = vpop.f32.mrb[0].mxu0
    %v4424 = vpop.f32.mrb[0].mxu0
    %4425 = vdwg.mxu0
    %4426 = vmatprep.subr.bf16.mxu0 %v4050
    %4427 = vmatpush1.bf16.msra.mxu0 %v4049
    %4428 = vmatprep.subr.bf16.mxu0 %v4053
    %4429 = vmatpush1.bf16.msra.mxu0 %v4052
    %4430 = vmatprep.subr.bf16.mxu0 %v4056
    %4431 = vmatpush1.bf16.msra.mxu0 %v4055
    %4432 = vmatprep.subr.bf16.mxu0 %v4059
    %4433 = vmatpush1.bf16.msra.mxu0 %v4058
    %4434 = vmatprep.subr.bf16.mxu0 %v4062
    %4435 = vmatpush1.bf16.msra.mxu0 %v4061
    %4436 = vmatprep.subr.bf16.mxu0 %v4065
    %4437 = vmatpush1.bf16.msra.mxu0 %v4064
    %4438 = vmatprep.subr.bf16.mxu0 %v4068
    %4439 = vmatpush1.bf16.msra.mxu0 %v4067
    %4440 = vmatprep.subr.bf16.mxu0 %v4071
    %4441 = vmatpush1.bf16.msra.mxu0 %v4070
    %4442 = vmatprep.subr.bf16.mxu0 %v4074
    %4443 = vmatpush1.bf16.msra.mxu0 %v4073
    %4444 = vmatprep.subr.bf16.mxu0 %v4077
    %4445 = vmatpush1.bf16.msra.mxu0 %v4076
    %4446 = vmatprep.subr.bf16.mxu0 %v4080
    %4447 = vmatpush1.bf16.msra.mxu0 %v4079
    %4448 = vmatprep.subr.bf16.mxu0 %v4083
    %4449 = vmatpush1.bf16.msra.mxu0 %v4082
    %4450 = vmatprep.subr.bf16.mxu0 %v4086
    %4451 = vmatpush1.bf16.msra.mxu0 %v4085
    %4452 = vmatprep.subr.bf16.mxu0 %v4089
    %4453 = vmatpush1.bf16.msra.mxu0 %v4088
    %4454 = vmatprep.subr.bf16.mxu0 %v4092
    %4455 = vmatpush1.bf16.msra.mxu0 %v4091
    %4456 = vmatprep.subr.bf16.mxu0 %v4095
    %4457 = vmatpush1.bf16.msra.mxu0 %v4094
    %4458 = vmatprep.mubr.bf16.mxu0 %v3083
    %4459 = vmatmul.mubr.bf16.gmra.mrb[0].mxu0 %v3082
    %v4460 = vpop.f32.mrb[0].mxu0
    %v4461 = vadd.f32 %v4420, %v4460
    %v4462 = vpop.f32.mrb[0].mxu0
    %v4463 = vadd.f32 %v4422, %v4462
    %v4464 = vpop.f32.mrb[0].mxu0
    %v4465 = vpop.f32.mrb[0].mxu0
    %4466 = vdwg.mxu0
    %4467 = vmatprep.subr.bf16.mxu0 %v4098
    %4468 = vmatpush1.bf16.msra.mxu0 %v4097
    %4469 = vmatprep.subr.bf16.mxu0 %v4101
    %4470 = vmatpush1.bf16.msra.mxu0 %v4100
    %4471 = vmatprep.subr.bf16.mxu0 %v4104
    %4472 = vmatpush1.bf16.msra.mxu0 %v4103
    %4473 = vmatprep.subr.bf16.mxu0 %v4107
    %4474 = vmatpush1.bf16.msra.mxu0 %v4106
    %4475 = vmatprep.subr.bf16.mxu0 %v4110
    %4476 = vmatpush1.bf16.msra.mxu0 %v4109
    %4477 = vmatprep.subr.bf16.mxu0 %v4113
    %4478 = vmatpush1.bf16.msra.mxu0 %v4112
    %4479 = vmatprep.subr.bf16.mxu0 %v4116
    %4480 = vmatpush1.bf16.msra.mxu0 %v4115
    %4481 = vmatprep.subr.bf16.mxu0 %v4119
    %4482 = vmatpush1.bf16.msra.mxu0 %v4118
    %4483 = vmatprep.subr.bf16.mxu0 %v4122
    %4484 = vmatpush1.bf16.msra.mxu0 %v4121
    %4485 = vmatprep.subr.bf16.mxu0 %v4125
    %4486 = vmatpush1.bf16.msra.mxu0 %v4124
    %4487 = vmatprep.subr.bf16.mxu0 %v4128
    %4488 = vmatpush1.bf16.msra.mxu0 %v4127
    %4489 = vmatprep.subr.bf16.mxu0 %v4131
    %4490 = vmatpush1.bf16.msra.mxu0 %v4130
    %4491 = vmatprep.subr.bf16.mxu0 %v4134
    %4492 = vmatpush1.bf16.msra.mxu0 %v4133
    %4493 = vmatprep.subr.bf16.mxu0 %v4137
    %4494 = vmatpush1.bf16.msra.mxu0 %v4136
    %4495 = vmatprep.subr.bf16.mxu0 %v4140
    %4496 = vmatpush1.bf16.msra.mxu0 %v4139
    %4497 = vmatprep.subr.bf16.mxu0 %v4143
    %4498 = vmatpush1.bf16.msra.mxu0 %v4142
    %4499 = vmatprep.mubr.bf16.mxu0 %v3085
    %4500 = vmatmul.mubr.bf16.gmra.mrb[0].mxu0 %v3084
    %v4501 = vpop.f32.mrb[0].mxu0
    %v4502 = vadd.f32 %v4461, %v4501
    %v4503 = vpop.f32.mrb[0].mxu0
    %v4504 = vadd.f32 %v4463, %v4503
    %v4505 = vpop.f32.mrb[0].mxu0
    %v4506 = vpop.f32.mrb[0].mxu0
    %4507 = vdwg.mxu0
    %4508 = vmatprep.subr.bf16.mxu0 %v4146
    %4509 = vmatpush1.bf16.msra.mxu0 %v4145
    %4510 = vmatprep.subr.bf16.mxu0 %v4149
    %4511 = vmatpush1.bf16.msra.mxu0 %v4148
    %4512 = vmatprep.subr.bf16.mxu0 %v4152
    %4513 = vmatpush1.bf16.msra.mxu0 %v4151
    %4514 = vmatprep.subr.bf16.mxu0 %v4155
    %4515 = vmatpush1.bf16.msra.mxu0 %v4154
    %4516 = vmatprep.subr.bf16.mxu0 %v4158
    %4517 = vmatpush1.bf16.msra.mxu0 %v4157
    %4518 = vmatprep.subr.bf16.mxu0 %v4161
    %4519 = vmatpush1.bf16.msra.mxu0 %v4160
    %4520 = vmatprep.subr.bf16.mxu0 %v4164
    %4521 = vmatpush1.bf16.msra.mxu0 %v4163
    %4522 = vmatprep.subr.bf16.mxu0 %v4167
    %4523 = vmatpush1.bf16.msra.mxu0 %v4166
    %4524 = vmatprep.subr.bf16.mxu0 %v4170
    %4525 = vmatpush1.bf16.msra.mxu0 %v4169
    %4526 = vmatprep.subr.bf16.mxu0 %v4173
    %4527 = vmatpush1.bf16.msra.mxu0 %v4172
    %4528 = vmatprep.subr.bf16.mxu0 %v4176
    %4529 = vmatpush1.bf16.msra.mxu0 %v4175
    %4530 = vmatprep.subr.bf16.mxu0 %v4179
    %4531 = vmatpush1.bf16.msra.mxu0 %v4178
    %4532 = vmatprep.subr.bf16.mxu0 %v4182
    %4533 = vmatpush1.bf16.msra.mxu0 %v4181
    %4534 = vmatprep.subr.bf16.mxu0 %v4185
    %4535 = vmatpush1.bf16.msra.mxu0 %v4184
    %4536 = vmatprep.subr.bf16.mxu0 %v4188
    %4537 = vmatpush1.bf16.msra.mxu0 %v4187
    %4538 = vmatprep.subr.bf16.mxu0 %v4191
    %4539 = vmatpush1.bf16.msra.mxu0 %v4190
    %4540 = vmatprep.mubr.bf16.mxu0 %v3087
    %4541 = vmatmul.mubr.bf16.gmra.mrb[0].mxu0 %v3086
    %v4542 = vpop.f32.mrb[0].mxu0
    %v4543 = vadd.f32 %v4502, %v4542
    %v4544 = vpop.f32.mrb[0].mxu0
    %v4545 = vadd.f32 %v4504, %v4544
    %v4546 = vpop.f32.mrb[0].mxu0
    %v4547 = vpop.f32.mrb[0].mxu0
    %4548 = vdwg.mxu0
    %4549 = vmatprep.subr.bf16.mxu0 0
    %4550 = vmatpush1.bf16.msra.mxu0 %v4003
    %4551 = vmatprep.subr.bf16.mxu0 0
    %4552 = vmatpush1.bf16.msra.mxu0 %v4006
    %4553 = vmatprep.subr.bf16.mxu0 0
    %4554 = vmatpush1.bf16.msra.mxu0 %v4009
    %4555 = vmatprep.subr.bf16.mxu0 0
    %4556 = vmatpush1.bf16.msra.mxu0 %v4012
    %4557 = vmatprep.subr.bf16.mxu0 0
    %4558 = vmatpush1.bf16.msra.mxu0 %v4015
    %4559 = vmatprep.subr.bf16.mxu0 0
    %4560 = vmatpush1.bf16.msra.mxu0 %v4018
    %4561 = vmatprep.subr.bf16.mxu0 0
    %4562 = vmatpush1.bf16.msra.mxu0 %v4021
    %4563 = vmatprep.subr.bf16.mxu0 0
    %4564 = vmatpush1.bf16.msra.mxu0 %v4024
    %4565 = vmatprep.subr.bf16.mxu0 0
    %4566 = vmatpush1.bf16.msra.mxu0 %v4027
    %4567 = vmatprep.subr.bf16.mxu0 0
    %4568 = vmatpush1.bf16.msra.mxu0 %v4030
    %4569 = vmatprep.subr.bf16.mxu0 0
    %4570 = vmatpush1.bf16.msra.mxu0 %v4033
    %4571 = vmatprep.subr.bf16.mxu0 0
    %4572 = vmatpush1.bf16.msra.mxu0 %v4036
    %4573 = vmatprep.subr.bf16.mxu0 0
    %4574 = vmatpush1.bf16.msra.mxu0 %v4039
    %4575 = vmatprep.subr.bf16.mxu0 0
    %4576 = vmatpush1.bf16.msra.mxu0 %v4042
    %4577 = vmatprep.subr.bf16.mxu0 0
    %4578 = vmatpush1.bf16.msra.mxu0 %v4045
    %4579 = vmatprep.subr.bf16.mxu0 0
    %4580 = vmatpush1.bf16.msra.mxu0 %v4048
    %4581 = vmatprep.mubr.bf16.mxu0 %v3081
    %4582 = vmatmul.mubr.bf16.gmra.mrb[0].mxu0 %v3080
    %v4583 = vpop.f32.mrb[0].mxu0
    %v4584 = vadd.f32 %v3357, %v4583
    %v4585 = vpop.f32.mrb[0].mxu0
    %v4586 = vpop.f32.mrb[0].mxu0
    %v4587 = vpop.f32.mrb[0].mxu0
    %4588 = vdwg.mxu0
    %4589 = vmatprep.subr.bf16.mxu0 0
    %4590 = vmatpush1.bf16.msra.mxu0 %v4051
    %4591 = vmatprep.subr.bf16.mxu0 0
    %4592 = vmatpush1.bf16.msra.mxu0 %v4054
    %4593 = vmatprep.subr.bf16.mxu0 0
    %4594 = vmatpush1.bf16.msra.mxu0 %v4057
    %4595 = vmatprep.subr.bf16.mxu0 0
    %4596 = vmatpush1.bf16.msra.mxu0 %v4060
    %4597 = vmatprep.subr.bf16.mxu0 0
    %4598 = vmatpush1.bf16.msra.mxu0 %v4063
    %4599 = vmatprep.subr.bf16.mxu0 0
    %4600 = vmatpush1.bf16.msra.mxu0 %v4066
    %4601 = vmatprep.subr.bf16.mxu0 0
    %4602 = vmatpush1.bf16.msra.mxu0 %v4069
    %4603 = vmatprep.subr.bf16.mxu0 0
    %4604 = vmatpush1.bf16.msra.mxu0 %v4072
    %4605 = vmatprep.subr.bf16.mxu0 0
    %4606 = vmatpush1.bf16.msra.mxu0 %v4075
    %4607 = vmatprep.subr.bf16.mxu0 0
    %4608 = vmatpush1.bf16.msra.mxu0 %v4078
    %4609 = vmatprep.subr.bf16.mxu0 0
    %4610 = vmatpush1.bf16.msra.mxu0 %v4081
    %4611 = vmatprep.subr.bf16.mxu0 0
    %4612 = vmatpush1.bf16.msra.mxu0 %v4084
    %4613 = vmatprep.subr.bf16.mxu0 0
    %4614 = vmatpush1.bf16.msra.mxu0 %v4087
    %4615 = vmatprep.subr.bf16.mxu0 0
    %4616 = vmatpush1.bf16.msra.mxu0 %v4090
    %4617 = vmatprep.subr.bf16.mxu0 0
    %4618 = vmatpush1.bf16.msra.mxu0 %v4093
    %4619 = vmatprep.subr.bf16.mxu0 0
    %4620 = vmatpush1.bf16.msra.mxu0 %v4096
    %4621 = vmatprep.mubr.bf16.mxu0 %v3083
    %4622 = vmatmul.mubr.bf16.gmra.mrb[0].mxu0 %v3082
    %v4623 = vpop.f32.mrb[0].mxu0
    %v4624 = vadd.f32 %v4584, %v4623
    %v4625 = vpop.f32.mrb[0].mxu0
    %v4626 = vpop.f32.mrb[0].mxu0
    %v4627 = vpop.f32.mrb[0].mxu0
    %4628 = vdwg.mxu0
    %4629 = vmatprep.subr.bf16.mxu0 0
    %4630 = vmatpush1.bf16.msra.mxu0 %v4099
    %4631 = vmatprep.subr.bf16.mxu0 0
    %4632 = vmatpush1.bf16.msra.mxu0 %v4102
    %4633 = vmatprep.subr.bf16.mxu0 0
    %4634 = vmatpush1.bf16.msra.mxu0 %v4105
    %4635 = vmatprep.subr.bf16.mxu0 0
    %4636 = vmatpush1.bf16.msra.mxu0 %v4108
    %4637 = vmatprep.subr.bf16.mxu0 0
    %4638 = vmatpush1.bf16.msra.mxu0 %v4111
    %4639 = vmatprep.subr.bf16.mxu0 0
    %4640 = vmatpush1.bf16.msra.mxu0 %v4114
    %4641 = vmatprep.subr.bf16.mxu0 0
    %4642 = vmatpush1.bf16.msra.mxu0 %v4117
    %4643 = vmatprep.subr.bf16.mxu0 0
    %4644 = vmatpush1.bf16.msra.mxu0 %v4120
    %4645 = vmatprep.subr.bf16.mxu0 0
    %4646 = vmatpush1.bf16.msra.mxu0 %v4123
    %4647 = vmatprep.subr.bf16.mxu0 0
    %4648 = vmatpush1.bf16.msra.mxu0 %v4126
    %4649 = vmatprep.subr.bf16.mxu0 0
    %4650 = vmatpush1.bf16.msra.mxu0 %v4129
    %4651 = vmatprep.subr.bf16.mxu0 0
    %4652 = vmatpush1.bf16.msra.mxu0 %v4132
    %4653 = vmatprep.subr.bf16.mxu0 0
    %4654 = vmatpush1.bf16.msra.mxu0 %v4135
    %4655 = vmatprep.subr.bf16.mxu0 0
    %4656 = vmatpush1.bf16.msra.mxu0 %v4138
    %4657 = vmatprep.subr.bf16.mxu0 0
    %4658 = vmatpush1.bf16.msra.mxu0 %v4141
    %4659 = vmatprep.subr.bf16.mxu0 0
    %4660 = vmatpush1.bf16.msra.mxu0 %v4144
    %4661 = vmatprep.mubr.bf16.mxu0 %v3085
    %4662 = vmatmul.mubr.bf16.gmra.mrb[0].mxu0 %v3084
    %v4663 = vpop.f32.mrb[0].mxu0
    %v4664 = vadd.f32 %v4624, %v4663
    %v4665 = vpop.f32.mrb[0].mxu0
    %v4666 = vpop.f32.mrb[0].mxu0
    %v4667 = vpop.f32.mrb[0].mxu0
    %4668 = vdwg.mxu0
    %4669 = vmatprep.subr.bf16.mxu0 0
    %4670 = vmatpush1.bf16.msra.mxu0 %v4147
    %4671 = vmatprep.subr.bf16.mxu0 0
    %4672 = vmatpush1.bf16.msra.mxu0 %v4150
    %4673 = vmatprep.subr.bf16.mxu0 0
    %4674 = vmatpush1.bf16.msra.mxu0 %v4153
    %4675 = vmatprep.subr.bf16.mxu0 0
    %4676 = vmatpush1.bf16.msra.mxu0 %v4156
    %4677 = vmatprep.subr.bf16.mxu0 0
    %4678 = vmatpush1.bf16.msra.mxu0 %v4159
    %4679 = vmatprep.subr.bf16.mxu0 0
    %4680 = vmatpush1.bf16.msra.mxu0 %v4162
    %4681 = vmatprep.subr.bf16.mxu0 0
    %4682 = vmatpush1.bf16.msra.mxu0 %v4165
    %4683 = vmatprep.subr.bf16.mxu0 0
    %4684 = vmatpush1.bf16.msra.mxu0 %v4168
    %4685 = vmatprep.subr.bf16.mxu0 0
    %4686 = vmatpush1.bf16.msra.mxu0 %v4171
    %4687 = vmatprep.subr.bf16.mxu0 0
    %4688 = vmatpush1.bf16.msra.mxu0 %v4174
    %4689 = vmatprep.subr.bf16.mxu0 0
    %4690 = vmatpush1.bf16.msra.mxu0 %v4177
    %4691 = vmatprep.subr.bf16.mxu0 0
    %4692 = vmatpush1.bf16.msra.mxu0 %v4180
    %4693 = vmatprep.subr.bf16.mxu0 0
    %4694 = vmatpush1.bf16.msra.mxu0 %v4183
    %4695 = vmatprep.subr.bf16.mxu0 0
    %4696 = vmatpush1.bf16.msra.mxu0 %v4186
    %4697 = vmatprep.subr.bf16.mxu0 0
    %4698 = vmatpush1.bf16.msra.mxu0 %v4189
    %4699 = vmatprep.subr.bf16.mxu0 0
    %4700 = vmatpush1.bf16.msra.mxu0 %v4192
    %4701 = vmatprep.mubr.bf16.mxu0 %v3087
    %4702 = vmatmul.mubr.bf16.gmra.mrb[0].mxu0 %v3086
    %v4703 = vpop.f32.mrb[0].mxu0
    %v4704 = vadd.f32 %v4664, %v4703
    %v4705 = vpop.f32.mrb[0].mxu0
    %v4706 = vpop.f32.mrb[0].mxu0
    %v4707 = vpop.f32.mrb[0].mxu0
    %4708 = vdwg.mxu0
    %v4709 = vmax.f32 %v4543, 0.0
    %v4710 = vmax.f32 %v4545, 0.0
    %v4711 = vmax.f32 %v4704, 0.0
    %v4712 = vld [vmem:[#allocation13] sm:$0xff]
    %v4713 = vld [vmem:[#allocation13 + $0x8] sm:$0xff]
    %v4714 = vld [vmem:[#allocation13 + $0x10] sm:$0xff]
    %v4715 = vld [vmem:[#allocation13 + $0x18] sm:$0xff]
    %v4716 = vld [vmem:[#allocation13 + $0x20] sm:$0xff]
    %v4717 = vld [vmem:[#allocation13 + $0x28] sm:$0xff]
    %v4718 = vld [vmem:[#allocation13 + $0x30] sm:$0xff]
    %v4719 = vld [vmem:[#allocation13 + $0x38] sm:$0xff]
    %v4720 = vld [vmem:[#allocation13 + $0x40] sm:$0xff]
    %v4721 = vld [vmem:[#allocation13 + $0x48] sm:$0xff]
    %v4722 = vld [vmem:[#allocation13 + $0x50] sm:$0xff]
    %v4723 = vld [vmem:[#allocation13 + $0x58] sm:$0xff]
    %v4724 = vld [vmem:[#allocation13 + $0x60] sm:$0xff]
    %v4725 = vld [vmem:[#allocation13 + $0x68] sm:$0xff]
    %v4726 = vld [vmem:[#allocation13 + $0x70] sm:$0xff]
    %v4727 = vld [vmem:[#allocation13 + $0x78] sm:$0xff]
    %v4728 = vld [vmem:[#allocation13 + $0x80] sm:$0xff]
    %v4729 = vld [vmem:[#allocation13 + $0x88] sm:$0xff]
    %v4730 = vld [vmem:[#allocation13 + $0x90] sm:$0xff]
    %v4731 = vld [vmem:[#allocation13 + $0x98] sm:$0xff]
    %v4732 = vld [vmem:[#allocation13 + $0xa0] sm:$0xff]
    %v4733 = vld [vmem:[#allocation13 + $0xa8] sm:$0xff]
    %v4734 = vld [vmem:[#allocation13 + $0xb0] sm:$0xff]
    %v4735 = vld [vmem:[#allocation13 + $0xb8] sm:$0xff]
    %v4736 = vld [vmem:[#allocation13 + $0xc0] sm:$0xff]
    %v4737 = vld [vmem:[#allocation13 + $0xc8] sm:$0xff]
    %v4738 = vld [vmem:[#allocation13 + $0xd0] sm:$0xff]
    %v4739 = vld [vmem:[#allocation13 + $0xd8] sm:$0xff]
    %v4740 = vld [vmem:[#allocation13 + $0xe0] sm:$0xff]
    %v4741 = vld [vmem:[#allocation13 + $0xe8] sm:$0xff]
    %v4742 = vld [vmem:[#allocation13 + $0xf0] sm:$0xff]
    %v4743 = vld [vmem:[#allocation13 + $0xf8] sm:$0xff]
    %v4744 = vld [vmem:[#allocation13 + $0x100] sm:$0xff]
    %v4745 = vld [vmem:[#allocation13 + $0x108] sm:$0xff]
    %v4746 = vld [vmem:[#allocation13 + $0x110] sm:$0xff]
    %v4747 = vld [vmem:[#allocation13 + $0x118] sm:$0xff]
    %v4748 = vld [vmem:[#allocation13 + $0x120] sm:$0xff]
    %v4749 = vld [vmem:[#allocation13 + $0x128] sm:$0xff]
    %v4750 = vld [vmem:[#allocation13 + $0x130] sm:$0xff]
    %v4751 = vld [vmem:[#allocation13 + $0x138] sm:$0xff]
    %v4752 = vld [vmem:[#allocation13 + $0x140] sm:$0xff]
    %v4753 = vld [vmem:[#allocation13 + $0x148] sm:$0xff]
    %v4754 = vld [vmem:[#allocation13 + $0x150] sm:$0xff]
    %v4755 = vld [vmem:[#allocation13 + $0x158] sm:$0xff]
    %v4756 = vld [vmem:[#allocation13 + $0x160] sm:$0xff]
    %v4757 = vld [vmem:[#allocation13 + $0x168] sm:$0xff]
    %v4758 = vld [vmem:[#allocation13 + $0x170] sm:$0xff]
    %v4759 = vld [vmem:[#allocation13 + $0x178] sm:$0xff]
    %v4760 = vld [vmem:[#allocation14] sm:$0x1]
    %v4762 = vlaneseq
    %v4763 = vshrl.u32 %v4762, 7
    %v4764 = vsub.s32 0, %v4763
    %v4765 = vrot.slane %v4760, %v4764
    %4767 = vmatprep.subr.mxu0 0.0
    %4768 = vmatpush1.msra.mxu0 %v4712
    %4769 = vmatprep.subr.mxu0 0.0
    %4770 = vmatpush1.msra.mxu0 %v4713
    %4771 = vmatprep.subr.mxu0 0.0
    %4772 = vmatpush1.msra.mxu0 %v4714
    %4773 = vmatprep.subr.mxu0 0.0
    %4774 = vmatpush1.msra.mxu0 %v4715
    %4775 = vmatprep.subr.mxu0 0.0
    %4776 = vmatpush1.msra.mxu0 %v4716
    %4777 = vmatprep.subr.mxu0 0.0
    %4778 = vmatpush1.msra.mxu0 %v4717
    %4779 = vmatprep.subr.mxu0 0.0
    %4780 = vmatpush1.msra.mxu0 %v4718
    %4781 = vmatprep.subr.mxu0 0.0
    %4782 = vmatpush1.msra.mxu0 %v4719
    %4783 = vmatprep.subr.mxu0 0.0
    %4784 = vmatpush1.msra.mxu0 %v4720
    %4785 = vmatprep.subr.mxu0 0.0
    %4786 = vmatpush1.msra.mxu0 %v4721
    %4787 = vmatprep.subr.mxu0 0.0
    %4788 = vmatpush1.msra.mxu0 %v4722
    %4789 = vmatprep.subr.mxu0 0.0
    %4790 = vmatpush1.msra.mxu0 %v4723
    %4791 = vmatprep.subr.mxu0 0.0
    %4792 = vmatpush1.msra.mxu0 %v4724
    %4793 = vmatprep.subr.mxu0 0.0
    %4794 = vmatpush1.msra.mxu0 %v4725
    %4795 = vmatprep.subr.mxu0 0.0
    %4796 = vmatpush1.msra.mxu0 %v4726
    %4797 = vmatprep.subr.mxu0 0.0
    %4798 = vmatpush1.msra.mxu0 %v4727
    %4799 = vmatprep.subr.mxu0 0.0
    %4800 = vmatpush1.msra.mxu0 %v4728
    %4801 = vmatprep.subr.mxu0 0.0
    %4802 = vmatpush1.msra.mxu0 %v4729
    %4803 = vmatprep.subr.mxu0 0.0
    %4804 = vmatpush1.msra.mxu0 %v4730
    %4805 = vmatprep.subr.mxu0 0.0
    %4806 = vmatpush1.msra.mxu0 %v4731
    %4807 = vmatprep.subr.mxu0 0.0
    %4808 = vmatpush1.msra.mxu0 %v4732
    %4809 = vmatprep.subr.mxu0 0.0
    %4810 = vmatpush1.msra.mxu0 %v4733
    %4811 = vmatprep.subr.mxu0 0.0
    %4812 = vmatpush1.msra.mxu0 %v4734
    %4813 = vmatprep.subr.mxu0 0.0
    %4814 = vmatpush1.msra.mxu0 %v4735
    %4815 = vmatprep.subr.mxu0 0.0
    %4816 = vmatpush1.msra.mxu0 %v4736
    %4817 = vmatprep.subr.mxu0 0.0
    %4818 = vmatpush1.msra.mxu0 %v4737
    %4819 = vmatprep.subr.mxu0 0.0
    %4820 = vmatpush1.msra.mxu0 %v4738
    %4821 = vmatprep.subr.mxu0 0.0
    %4822 = vmatpush1.msra.mxu0 %v4739
    %4823 = vmatprep.subr.mxu0 0.0
    %4824 = vmatpush1.msra.mxu0 %v4740
    %4825 = vmatprep.subr.mxu0 0.0
    %4826 = vmatpush1.msra.mxu0 %v4741
    %4827 = vmatprep.subr.mxu0 0.0
    %4828 = vmatpush1.msra.mxu0 %v4742
    %4829 = vmatprep.subr.mxu0 0.0
    %4830 = vmatpush1.msra.mxu0 %v4743
    %4831 = vmatprep.mubr.f32.mxu0 %v4710
    %4832 = vmatmul.mubr.f32.gmra.mrb[0].mxu0 %v4709
    %v4833 = vpop.f32.mrb[0].mxu0
    %v4834 = vadd.f32 %v4765, %v4833
    %v4835 = vpop.f32.mrb[0].mxu0
    %4836 = vdwg.mxu0
    %4837 = vmatprep.subr.mxu0 0.0
    %4838 = vmatpush1.msra.mxu0 %v4744
    %4839 = vmatprep.subr.mxu0 0.0
    %4840 = vmatpush1.msra.mxu0 %v4745
    %4841 = vmatprep.subr.mxu0 0.0
    %4842 = vmatpush1.msra.mxu0 %v4746
    %4843 = vmatprep.subr.mxu0 0.0
    %4844 = vmatpush1.msra.mxu0 %v4747
    %4845 = vmatprep.subr.mxu0 0.0
    %4846 = vmatpush1.msra.mxu0 %v4748
    %4847 = vmatprep.subr.mxu0 0.0
    %4848 = vmatpush1.msra.mxu0 %v4749
    %4849 = vmatprep.subr.mxu0 0.0
    %4850 = vmatpush1.msra.mxu0 %v4750
    %4851 = vmatprep.subr.mxu0 0.0
    %4852 = vmatpush1.msra.mxu0 %v4751
    %4853 = vmatprep.subr.mxu0 0.0
    %4854 = vmatpush1.msra.mxu0 %v4752
    %4855 = vmatprep.subr.mxu0 0.0
    %4856 = vmatpush1.msra.mxu0 %v4753
    %4857 = vmatprep.subr.mxu0 0.0
    %4858 = vmatpush1.msra.mxu0 %v4754
    %4859 = vmatprep.subr.mxu0 0.0
    %4860 = vmatpush1.msra.mxu0 %v4755
    %4861 = vmatprep.subr.mxu0 0.0
    %4862 = vmatpush1.msra.mxu0 %v4756
    %4863 = vmatprep.subr.mxu0 0.0
    %4864 = vmatpush1.msra.mxu0 %v4757
    %4865 = vmatprep.subr.mxu0 0.0
    %4866 = vmatpush1.msra.mxu0 %v4758
    %4867 = vmatprep.subr.mxu0 0.0
    %4868 = vmatpush1.msra.mxu0 %v4759
    %4869 = vmatprep.subr.mxu0 0.0
    %4870 = vmatpush1.msra.mxu0 0.0
    %4871 = vmatprep.subr.mxu0 0.0
    %4872 = vmatpush1.msra.mxu0 0.0
    %4873 = vmatprep.subr.mxu0 0.0
    %4874 = vmatpush1.msra.mxu0 0.0
    %4875 = vmatprep.subr.mxu0 0.0
    %4876 = vmatpush1.msra.mxu0 0.0
    %4877 = vmatprep.subr.mxu0 0.0
    %4878 = vmatpush1.msra.mxu0 0.0
    %4879 = vmatprep.subr.mxu0 0.0
    %4880 = vmatpush1.msra.mxu0 0.0
    %4881 = vmatprep.subr.mxu0 0.0
    %4882 = vmatpush1.msra.mxu0 0.0
    %4883 = vmatprep.subr.mxu0 0.0
    %4884 = vmatpush1.msra.mxu0 0.0
    %4885 = vmatprep.subr.mxu0 0.0
    %4886 = vmatpush1.msra.mxu0 0.0
    %4887 = vmatprep.subr.mxu0 0.0
    %4888 = vmatpush1.msra.mxu0 0.0
    %4889 = vmatprep.subr.mxu0 0.0
    %4890 = vmatpush1.msra.mxu0 0.0
    %4891 = vmatprep.subr.mxu0 0.0
    %4892 = vmatpush1.msra.mxu0 0.0
    %4893 = vmatprep.subr.mxu0 0.0
    %4894 = vmatpush1.msra.mxu0 0.0
    %4895 = vmatprep.subr.mxu0 0.0
    %4896 = vmatpush1.msra.mxu0 0.0
    %4897 = vmatprep.subr.mxu0 0.0
    %4898 = vmatpush1.msra.mxu0 0.0
    %4899 = vmatprep.subr.mxu0 0.0
    %4900 = vmatpush1.msra.mxu0 0.0
    %4901 = vmatprep.mubr.f32.mxu0 0.0
    %4902 = vmatmul.mubr.f32.gmra.mrb[0].mxu0 %v4711
    %v4903 = vpop.f32.mrb[0].mxu0
    %v4904 = vadd.f32 %v4834, %v4903
    %v4905 = vpop.f32.mrb[0].mxu0
    %4906 = vdwg.mxu0
    %v4907 = vmax.f32 %v4904, 0.0
    %v4908 = vld [vmem:[#allocation17] sm:$0x3]
    %v4909 = vld [vmem:[#allocation5] sm:$0x3]
    %v4910 = vld [vmem:[#allocation16] ss:$8 sm:$0x3]
    %4912 = vset.pattern.permute.xlu0 0
    %4913 = vperm.xlu0 %4912, %v4909
    %v4914 = vpop.permute.xlu0 %4913
    %v4917 = vlaneseq
    %v4918 = vshrl.u32 %v4917, 7
    %v4919 = vsub.s32 0, %v4918
    %v4920 = vrot.slane %v4910, %v4919
    %v4921 = vlaneseq
    %v4922 = vshrl.u32 %v4921, 7
    %v4923 = vsub.s32 1, %v4922
    %v4924 = vrot.slane %v4910, %v4923
    %v4927 = vmul.f32 %v4914, %v4920
    %v4928 = vmul.f32 %v4914, %v4924
    %v4930 = vlaneseq
    %v4931 = vshrl.u32 %v4930, 7
    %v4932 = vsub.s32 0, %v4931
    %v4933 = vrot.slane %v4908, %v4932
    %v4934 = vlaneseq
    %v4935 = vshrl.u32 %v4934, 7
    %v4936 = vsub.s32 1, %v4935
    %v4937 = vrot.slane %v4908, %v4936
    %v4940 = vadd.f32 %v4933, %v4927
    %v4941 = vadd.f32 %v4937, %v4928
    %s4942 = scalar_lea.vmem [#allocation16], 1
    %v4943 = vld [vmem:[%s4942] ss:$8 sm:$0x3]
    %4944 = vset.pattern.permute.xlu0 1
    %4945 = vperm.xlu0 %4944, %v4909
    %v4946 = vpop.permute.xlu0 %4945
    %v4949 = vlaneseq
    %v4950 = vshrl.u32 %v4949, 7
    %v4951 = vsub.s32 0, %v4950
    %v4952 = vrot.slane %v4943, %v4951
    %v4953 = vlaneseq
    %v4954 = vshrl.u32 %v4953, 7
    %v4955 = vsub.s32 1, %v4954
    %v4956 = vrot.slane %v4943, %v4955
    %v4959 = vmul.f32 %v4946, %v4952
    %v4960 = vmul.f32 %v4946, %v4956
    %v4961 = vadd.f32 %v4940, %v4959
    %v4962 = vadd.f32 %v4941, %v4960
    %s4963 = scalar_lea.vmem [#allocation16], 2
    %v4964 = vld [vmem:[%s4963] ss:$8 sm:$0x3]
    %4965 = vset.pattern.permute.xlu0 2
    %4966 = vperm.xlu0 %4965, %v4909
    %v4967 = vpop.permute.xlu0 %4966
    %v4970 = vlaneseq
    %v4971 = vshrl.u32 %v4970, 7
    %v4972 = vsub.s32 0, %v4971
    %v4973 = vrot.slane %v4964, %v4972
    %v4974 = vlaneseq
    %v4975 = vshrl.u32 %v4974, 7
    %v4976 = vsub.s32 1, %v4975
    %v4977 = vrot.slane %v4964, %v4976
    %v4980 = vmul.f32 %v4967, %v4973
    %v4981 = vmul.f32 %v4967, %v4977
    %v4982 = vadd.f32 %v4961, %v4980
    %v4983 = vadd.f32 %v4962, %v4981
    %s4984 = scalar_lea.vmem [#allocation16], 3
    %v4985 = vld [vmem:[%s4984] ss:$8 sm:$0x3]
    %4986 = vset.pattern.permute.xlu0 3
    %4987 = vperm.xlu0 %4986, %v4909
    %v4988 = vpop.permute.xlu0 %4987
    %v4991 = vlaneseq
    %v4992 = vshrl.u32 %v4991, 7
    %v4993 = vsub.s32 0, %v4992
    %v4994 = vrot.slane %v4985, %v4993
    %v4995 = vlaneseq
    %v4996 = vshrl.u32 %v4995, 7
    %v4997 = vsub.s32 1, %v4996
    %v4998 = vrot.slane %v4985, %v4997
    %v5001 = vmul.f32 %v4988, %v4994
    %v5002 = vmul.f32 %v4988, %v4998
    %v5003 = vadd.f32 %v4982, %v5001
    %v5004 = vadd.f32 %v4983, %v5002
    %s5005 = scalar_lea.vmem [#allocation16], 4
    %v5006 = vld [vmem:[%s5005] ss:$8 sm:$0x3]
    %5007 = vset.pattern.permute.xlu0 4
    %5008 = vperm.xlu0 %5007, %v4909
    %v5009 = vpop.permute.xlu0 %5008
    %v5012 = vlaneseq
    %v5013 = vshrl.u32 %v5012, 7
    %v5014 = vsub.s32 0, %v5013
    %v5015 = vrot.slane %v5006, %v5014
    %v5016 = vlaneseq
    %v5017 = vshrl.u32 %v5016, 7
    %v5018 = vsub.s32 1, %v5017
    %v5019 = vrot.slane %v5006, %v5018
    %v5022 = vmul.f32 %v5009, %v5015
    %v5023 = vmul.f32 %v5009, %v5019
    %v5024 = vadd.f32 %v5003, %v5022
    %v5025 = vadd.f32 %v5004, %v5023
    %s5026 = scalar_lea.vmem [#allocation16], 5
    %v5027 = vld [vmem:[%s5026] ss:$8 sm:$0x3]
    %5028 = vset.pattern.permute.xlu0 5
    %5029 = vperm.xlu0 %5028, %v4909
    %v5030 = vpop.permute.xlu0 %5029
    %v5033 = vlaneseq
    %v5034 = vshrl.u32 %v5033, 7
    %v5035 = vsub.s32 0, %v5034
    %v5036 = vrot.slane %v5027, %v5035
    %v5037 = vlaneseq
    %v5038 = vshrl.u32 %v5037, 7
    %v5039 = vsub.s32 1, %v5038
    %v5040 = vrot.slane %v5027, %v5039
    %v5043 = vmul.f32 %v5030, %v5036
    %v5044 = vmul.f32 %v5030, %v5040
    %v5045 = vadd.f32 %v5024, %v5043
    %v5046 = vadd.f32 %v5025, %v5044
    %v5047 = vmax.f32 %v5045, 0.0
    %v5048 = vmax.f32 %v5046, 0.0
    %v5049 = vld [vmem:[%s10] sm:$0xff]
    %v5050 = vld [vmem:[%s10 + $0x8] sm:$0xff]
    %v5051 = vld [vmem:[%s10 + $0x10] sm:$0xff]
    %v5052 = vld [vmem:[%s10 + $0x18] sm:$0xff]
    %v5053 = vld [vmem:[%s10 + $0x20] sm:$0xff]
    %v5054 = vld [vmem:[%s10 + $0x28] sm:$0xff]
    %v5055 = vld [vmem:[%s10 + $0x30] sm:$0xff]
    %v5056 = vld [vmem:[%s10 + $0x38] sm:$0xff]
    %v5057 = vld [vmem:[%s10 + $0x40] sm:$0xff]
    %v5058 = vld [vmem:[%s10 + $0x48] sm:$0xff]
    %v5059 = vld [vmem:[%s10 + $0x50] sm:$0xff]
    %v5060 = vld [vmem:[%s10 + $0x58] sm:$0xff]
    %v5061 = vld [vmem:[%s10 + $0x60] sm:$0xff]
    %v5062 = vld [vmem:[%s10 + $0x68] sm:$0xff]
    %v5063 = vld [vmem:[%s10 + $0x70] sm:$0xff]
    %v5064 = vld [vmem:[%s10 + $0x78] sm:$0xff]
    %v5065 = vld [vmem:[%s11] sm:$0xff]
    %v5066 = vld [vmem:[%s11 + $0x8] sm:$0xff]
    %v5067 = vld [vmem:[%s11 + $0x10] sm:$0xff]
    %v5068 = vld [vmem:[%s11 + $0x18] sm:$0xff]
    %v5069 = vld [vmem:[%s11 + $0x20] sm:$0xff]
    %v5070 = vld [vmem:[%s11 + $0x28] sm:$0xff]
    %v5071 = vld [vmem:[%s11 + $0x30] sm:$0xff]
    %v5072 = vld [vmem:[%s11 + $0x38] sm:$0xff]
    %v5073 = vld [vmem:[%s11 + $0x40] sm:$0xff]
    %v5074 = vld [vmem:[%s11 + $0x48] sm:$0xff]
    %v5075 = vld [vmem:[%s11 + $0x50] sm:$0xff]
    %v5076 = vld [vmem:[%s11 + $0x58] sm:$0xff]
    %v5077 = vld [vmem:[%s11 + $0x60] sm:$0xff]
    %v5078 = vld [vmem:[%s11 + $0x68] sm:$0xff]
    %v5079 = vld [vmem:[%s11 + $0x70] sm:$0xff]
    %v5080 = vld [vmem:[%s11 + $0x78] sm:$0xff]
    %v5081 = vld [vmem:[%s11 + $0x80] sm:$0xff]
    %v5082 = vld [vmem:[%s11 + $0x88] sm:$0xff]
    %v5083 = vld [vmem:[%s11 + $0x90] sm:$0xff]
    %v5084 = vld [vmem:[%s11 + $0x98] sm:$0xff]
    %v5085 = vld [vmem:[%s11 + $0xa0] sm:$0xff]
    %v5086 = vld [vmem:[%s11 + $0xa8] sm:$0xff]
    %v5087 = vld [vmem:[%s11 + $0xb0] sm:$0xff]
    %v5088 = vld [vmem:[%s11 + $0xb8] sm:$0xff]
    %v5089 = vld [vmem:[%s11 + $0xc0] sm:$0xff]
    %v5090 = vld [vmem:[%s11 + $0xc8] sm:$0xff]
    %v5091 = vld [vmem:[%s11 + $0xd0] sm:$0xff]
    %v5092 = vld [vmem:[%s11 + $0xd8] sm:$0xff]
    %v5093 = vld [vmem:[%s11 + $0xe0] sm:$0xff]
    %v5094 = vld [vmem:[%s11 + $0xe8] sm:$0xff]
    %v5095 = vld [vmem:[%s11 + $0xf0] sm:$0xff]
    %v5096 = vld [vmem:[%s11 + $0xf8] sm:$0xff]
    %5097 = vmatprep.subr.mxu0 0.0
    %5098 = vmatpush1.msra.mxu0 %v5065
    %5099 = vmatprep.subr.mxu0 0.0
    %5100 = vmatpush1.msra.mxu0 %v5066
    %5101 = vmatprep.subr.mxu0 0.0
    %5102 = vmatpush1.msra.mxu0 %v5067
    %5103 = vmatprep.subr.mxu0 0.0
    %5104 = vmatpush1.msra.mxu0 %v5068
    %5105 = vmatprep.subr.mxu0 0.0
    %5106 = vmatpush1.msra.mxu0 %v5069
    %5107 = vmatprep.subr.mxu0 0.0
    %5108 = vmatpush1.msra.mxu0 %v5070
    %5109 = vmatprep.subr.mxu0 0.0
    %5110 = vmatpush1.msra.mxu0 %v5071
    %5111 = vmatprep.subr.mxu0 0.0
    %5112 = vmatpush1.msra.mxu0 %v5072
    %5113 = vmatprep.subr.mxu0 0.0
    %5114 = vmatpush1.msra.mxu0 %v5073
    %5115 = vmatprep.subr.mxu0 0.0
    %5116 = vmatpush1.msra.mxu0 %v5074
    %5117 = vmatprep.subr.mxu0 0.0
    %5118 = vmatpush1.msra.mxu0 %v5075
    %5119 = vmatprep.subr.mxu0 0.0
    %5120 = vmatpush1.msra.mxu0 %v5076
    %5121 = vmatprep.subr.mxu0 0.0
    %5122 = vmatpush1.msra.mxu0 %v5077
    %5123 = vmatprep.subr.mxu0 0.0
    %5124 = vmatpush1.msra.mxu0 %v5078
    %5125 = vmatprep.subr.mxu0 0.0
    %5126 = vmatpush1.msra.mxu0 %v5079
    %5127 = vmatprep.subr.mxu0 0.0
    %5128 = vmatpush1.msra.mxu0 %v5080
    %5129 = vmatprep.subr.mxu0 0.0
    %5130 = vmatpush1.msra.mxu0 %v5081
    %5131 = vmatprep.subr.mxu0 0.0
    %5132 = vmatpush1.msra.mxu0 %v5082
    %5133 = vmatprep.subr.mxu0 0.0
    %5134 = vmatpush1.msra.mxu0 %v5083
    %5135 = vmatprep.subr.mxu0 0.0
    %5136 = vmatpush1.msra.mxu0 %v5084
    %5137 = vmatprep.subr.mxu0 0.0
    %5138 = vmatpush1.msra.mxu0 %v5085
    %5139 = vmatprep.subr.mxu0 0.0
    %5140 = vmatpush1.msra.mxu0 %v5086
    %5141 = vmatprep.subr.mxu0 0.0
    %5142 = vmatpush1.msra.mxu0 %v5087
    %5143 = vmatprep.subr.mxu0 0.0
    %5144 = vmatpush1.msra.mxu0 %v5088
    %5145 = vmatprep.subr.mxu0 0.0
    %5146 = vmatpush1.msra.mxu0 %v5089
    %5147 = vmatprep.subr.mxu0 0.0
    %5148 = vmatpush1.msra.mxu0 %v5090
    %5149 = vmatprep.subr.mxu0 0.0
    %5150 = vmatpush1.msra.mxu0 %v5091
    %5151 = vmatprep.subr.mxu0 0.0
    %5152 = vmatpush1.msra.mxu0 %v5092
    %5153 = vmatprep.subr.mxu0 0.0
    %5154 = vmatpush1.msra.mxu0 %v5093
    %5155 = vmatprep.subr.mxu0 0.0
    %5156 = vmatpush1.msra.mxu0 %v5094
    %5157 = vmatprep.subr.mxu0 0.0
    %5158 = vmatpush1.msra.mxu0 %v5095
    %5159 = vmatprep.subr.mxu0 0.0
    %5160 = vmatpush1.msra.mxu0 %v5096
    %5161 = vmatprep.mubr.f32.mxu0 %v5048
    %5162 = vmatmul.mubr.f32.gmra.mrb[0].mxu0 %v5047
    %v5163 = vpop.f32.mrb[0].mxu0
    %v5164 = vadd.f32 0.0, %v5163
    %v5165 = vpop.f32.mrb[0].mxu0
    %5166 = vdwg.mxu0
    %5167 = vmatprep.subr.mxu0 0.0
    %5168 = vmatpush1.msra.mxu0 %v5049
    %5169 = vmatprep.subr.mxu0 0.0
    %5170 = vmatpush1.msra.mxu0 %v5050
    %5171 = vmatprep.subr.mxu0 0.0
    %5172 = vmatpush1.msra.mxu0 %v5051
    %5173 = vmatprep.subr.mxu0 0.0
    %5174 = vmatpush1.msra.mxu0 %v5052
    %5175 = vmatprep.subr.mxu0 0.0
    %5176 = vmatpush1.msra.mxu0 %v5053
    %5177 = vmatprep.subr.mxu0 0.0
    %5178 = vmatpush1.msra.mxu0 %v5054
    %5179 = vmatprep.subr.mxu0 0.0
    %5180 = vmatpush1.msra.mxu0 %v5055
    %5181 = vmatprep.subr.mxu0 0.0
    %5182 = vmatpush1.msra.mxu0 %v5056
    %5183 = vmatprep.subr.mxu0 0.0
    %5184 = vmatpush1.msra.mxu0 %v5057
    %5185 = vmatprep.subr.mxu0 0.0
    %5186 = vmatpush1.msra.mxu0 %v5058
    %5187 = vmatprep.subr.mxu0 0.0
    %5188 = vmatpush1.msra.mxu0 %v5059
    %5189 = vmatprep.subr.mxu0 0.0
    %5190 = vmatpush1.msra.mxu0 %v5060
    %5191 = vmatprep.subr.mxu0 0.0
    %5192 = vmatpush1.msra.mxu0 %v5061
    %5193 = vmatprep.subr.mxu0 0.0
    %5194 = vmatpush1.msra.mxu0 %v5062
    %5195 = vmatprep.subr.mxu0 0.0
    %5196 = vmatpush1.msra.mxu0 %v5063
    %5197 = vmatprep.subr.mxu0 0.0
    %5198 = vmatpush1.msra.mxu0 %v5064
    %5199 = vmatprep.subr.mxu0 0.0
    %5200 = vmatpush1.msra.mxu0 0.0
    %5201 = vmatprep.subr.mxu0 0.0
    %5202 = vmatpush1.msra.mxu0 0.0
    %5203 = vmatprep.subr.mxu0 0.0
    %5204 = vmatpush1.msra.mxu0 0.0
    %5205 = vmatprep.subr.mxu0 0.0
    %5206 = vmatpush1.msra.mxu0 0.0
    %5207 = vmatprep.subr.mxu0 0.0
    %5208 = vmatpush1.msra.mxu0 0.0
    %5209 = vmatprep.subr.mxu0 0.0
    %5210 = vmatpush1.msra.mxu0 0.0
    %5211 = vmatprep.subr.mxu0 0.0
    %5212 = vmatpush1.msra.mxu0 0.0
    %5213 = vmatprep.subr.mxu0 0.0
    %5214 = vmatpush1.msra.mxu0 0.0
    %5215 = vmatprep.subr.mxu0 0.0
    %5216 = vmatpush1.msra.mxu0 0.0
    %5217 = vmatprep.subr.mxu0 0.0
    %5218 = vmatpush1.msra.mxu0 0.0
    %5219 = vmatprep.subr.mxu0 0.0
    %5220 = vmatpush1.msra.mxu0 0.0
    %5221 = vmatprep.subr.mxu0 0.0
    %5222 = vmatpush1.msra.mxu0 0.0
    %5223 = vmatprep.subr.mxu0 0.0
    %5224 = vmatpush1.msra.mxu0 0.0
    %5225 = vmatprep.subr.mxu0 0.0
    %5226 = vmatpush1.msra.mxu0 0.0
    %5227 = vmatprep.subr.mxu0 0.0
    %5228 = vmatpush1.msra.mxu0 0.0
    %5229 = vmatprep.subr.mxu0 0.0
    %5230 = vmatpush1.msra.mxu0 0.0
    %5231 = vmatprep.mubr.f32.mxu0 0.0
    %5232 = vmatmul.mubr.f32.gmra.mrb[0].mxu0 %v4907
    %v5233 = vpop.f32.mrb[0].mxu0
    %v5234 = vadd.f32 %v5164, %v5233
    %v5235 = vpop.f32.mrb[0].mxu0
    %5236 = vdwg.mxu0
    %v5237 = vld [vmem:[#allocation19] sm:$0x1]
    %v5239 = vlaneseq
    %v5240 = vshrl.u32 %v5239, 7
    %v5241 = vsub.s32 0, %v5240
    %v5242 = vrot.slane %v5237, %v5241
    %v5244 = vadd.f32 %v5234, %v5242
    %vm5245 = vcmask 74752
    %v5246 = vsel %vm5245, %v5244, -inf
    %5247 = vmax.xlane.f32.xlu0 %v5246
    %v5248 = vpop.xlane.xlu0 %5247
    %v5249 = vsub.f32 %v5244, %v5248
    %v5250 = vmul.f32 %v5249, 1.442695
    %v5251 = vpow.pop %v5250
    %v5252 = vsel %vm5245, %v5251, 0.0
    %5253 = vadd.xlane.f32.xlu0 %v5252
    %v5254 = vpop.xlane.xlu0 %5253
    %v5255 = vrcp.pop %v5254
    %v5256 = vmul.f32 %v5251, %v5255
    %5257 = vst.msk [vmem:[#allocation20] sm:$0x3] %vm5245, %v5256
    // Predicated region
    $region98: #{tpu_custom_call.1} parent=1 // pred_check
      _
    $region99: #{tpu_custom_call.1} parent=1 // pred_check_branch
      %5259 = sbr.rel (0) target = $region101
    $region100: #{tpu_custom_call.1} parent=1 // pred_region
      %s5261 = ssub.s32 32, 32
      %5262 = vsyncadd [#allocation4], %s5261
      %s5264 = sshll.u32 [#allocation20], 4
      %s5265 = int_to_ptr.vmem [resolvable:$true] %s5264
      %5267 = dma.vmem_to_hbm [thread:$0]  %s5265, 32, %s13, [#allocation4]
    $region101: #{tpu_custom_call.1} parent=1 // pred_fallthru
      _
    // Predicated region
    $region102: #{tpu_custom_call.1} parent=1 // pred_check
      _
    $region103: #{tpu_custom_call.1} parent=1 // pred_check_branch
      %5269 = sbr.rel (0) target = $region105
    $region104: #{tpu_custom_call.1} parent=1 // pred_region
      %5270 = dma.done [#allocation4], 32
    $region105: #{tpu_custom_call.1} parent=1 // pred_fallthru
      _
    %5271 = vsyncpa [#allocation3], 1
    %5272 = vsyncpa [#allocation6], 1
    %5273 = vsyncpa [#allocation9], 1
    %5274 = vsyncpa [#allocation12], 1
    %5275 = vsyncpa [#allocation15], 1
    %5276 = vsyncpa [#allocation18], 1
    %5277 = vsyncpa [#allocation4], 1

</llo_original>
